<compile_context>
chip_gen: v7x
topology: tpu7x:2x2x1
jax: 0.10.0
libtpu: 0.0.40
codegen_flags: <defaults>
</compile_context>

<pallas_src>
import math
import jax
import jax.numpy as jnp
from jax.experimental import pallas as pl
from jax.experimental.pallas import tpu as pltpu


def _gelu_tanh(x):
    # exact match of the PyTorch GELU module in the reference:
    # 0.5 * x * (1 + tanh(sqrt(2/pi) * (x + 0.044715 * x**3)))
    c = math.sqrt(2.0 / math.pi)
    return 0.5 * x * (1.0 + jnp.tanh(c * (x + 0.044715 * x * x * x)))


def vae_kernel(
    x_ref, eps_ref,
    w0_ref, b0_ref,
    w1_ref, b1_ref,
    wh_ref, bh_ref,    # fused + lane-padded heads: (128, 128) / (1, 128)
    w3_ref, b3_ref,    # zero-padded fc3: (128, 128) / (1, 128); rows 2:128 are zero
    w4_ref, b4_ref,
    w5_ref, b5_ref,
    recon_ref, head_ref,
):
    bf16 = jnp.bfloat16
    f32 = jnp.float32
    x = x_ref[...]                                   # (TB, 512) f32

    # ---- encode ----
    h1 = _gelu_tanh(
        jnp.dot(x.astype(bf16), w0_ref[...], preferred_element_type=f32) + b0_ref[...]
    )
    h2 = _gelu_tanh(
        jnp.dot(h1.astype(bf16), w1_ref[...], preferred_element_type=f32) + b1_ref[...]
    )
    # one fused head matmul on a single 128-lane slab:
    #   lanes 0:2 = mu, lanes 64:66 = logvar, everything else exactly zero
    head = (
        jnp.dot(h2.astype(bf16), wh_ref[...], preferred_element_type=f32) + bh_ref[...]
    )                                                # (TB, 128) f32

    # ---- reparametrize: z = eps * exp(0.5 * logvar) + mu ----
    # XLU roll brings logvar (lanes 64:66) to lanes 0:2; mask before exp() so the
    # EUP never sees mu/junk lanes (avoids a potential 0 * inf = NaN).
    lv_rot = pltpu.roll(head, shift=64, axis=1)
    lane = jax.lax.broadcasted_iota(jnp.int32, head.shape, 1)
    logvar = jnp.where(lane < 2, lv_rot, 0.0)
    # z lanes 0:2 = eps*std + mu (the real latent); lanes 64:66 pick up finite
    # logvar junk from `head`, which is harmless because w3 rows 2:128 are zero.
    z = eps_ref[...].astype(f32) * jnp.exp(0.5 * logvar) + head

    # ---- decode ----
    h3 = _gelu_tanh(
        jnp.dot(z.astype(bf16), w3_ref[...], preferred_element_type=f32) + b3_ref[...]
    )
    h4 = _gelu_tanh(
        jnp.dot(h3.astype(bf16), w4_ref[...], preferred_element_type=f32) + b4_ref[...]
    )
    logits = (
        jnp.dot(h4.astype(bf16), w5_ref[...], preferred_element_type=f32) + b5_ref[...]
    )

    recon_ref[...] = jax.nn.sigmoid(logits).astype(recon_ref.dtype)
    head_ref[...] = head.astype(head_ref.dtype)      # lane-dense mu/logvar slab


def prepare_kernel_params(params):
    """Cast weights to bf16, fuse+pad the mu/logvar heads into one 128-lane slab,
    zero-pad fc3's input dim.  Call once, outside the hot path."""
    bf16 = jnp.bfloat16
    # fused heads: (128, 128), mu weights in cols 0:2, logvar weights in cols 64:66
    wh = jnp.zeros((128, 128), jnp.float32)
    wh = wh.at[:, 0:2].set(params["w21"]).at[:, 64:66].set(params["w22"])
    bh = jnp.zeros((1, 128), jnp.float32)
    bh = bh.at[:, 0:2].set(params["b21"]).at[:, 64:66].set(params["b22"])
    # fc3 zero-padded on the (latent) input dim: rows 0:2 real, rows 2:128 zero.
    # NOTE: these zero rows are the sole guarantee that junk latent lanes >= 2
    # never reach h3.
    w3 = jnp.zeros((128, 128), jnp.float32).at[0:2, :].set(params["w3"])
    return [
        params["w0"].astype(bf16), params["b0"],
        params["w1"].astype(bf16), params["b1"],
        wh.astype(bf16), bh,
        w3.astype(bf16), params["b3"],
        params["w4"].astype(bf16), params["b4"],
        params["w5"].astype(bf16), params["b5"],
    ]


def vae_forward(x, eps, kparams, *, block_b=None, recon_dtype=jnp.float32):
    """x: (B, 512) f32, eps: (B, 2) f32, kparams: output of prepare_kernel_params."""
    B, F = x.shape
    assert F == 512
    if block_b is None:
        # Small batches: single block / single grid step (launch+DMA overhead bound,
        # and avoids duplicating the weight DMA across v7x's two TensorCores).
        # Large batches: 512-row tiles amortize per-step overhead and per-TC weight fetch.
        block_b = B if B <= 512 else 512
    if B % block_b != 0:
        block_b = B  # single full block (full-array exemption from the (8,128) rule)
    num_blocks = B // block_b

    # reparametrization noise padded to a full 128-lane vreg, transported as bf16
    # (halves a 98%-zero input DMA; noise at bf16 precision is fine for a VAE).
    eps_pad = jnp.zeros((B, 128), jnp.bfloat16).at[:, 0:2].set(eps.astype(jnp.bfloat16))

    batch_spec = lambda cols: pl.BlockSpec((block_b, cols), lambda i: (i, 0))
    const_spec = lambda arr: pl.BlockSpec(arr.shape, lambda i: (0, 0))  # weights stay VMEM-resident

    grid_spec = pltpu.PrefetchScalarGridSpec(
        num_scalar_prefetch=0,
        grid=(num_blocks,),
        in_specs=[batch_spec(512), batch_spec(128)] + [const_spec(p) for p in kparams],
        out_specs=(batch_spec(512), batch_spec(128)),
    )
    out_shape = (
        jax.ShapeDtypeStruct((B, 512), recon_dtype),  # reconstruction
        jax.ShapeDtypeStruct((B, 128), jnp.float32),  # mu/logvar slab
    )

    # VMEM budget: double-buffered per-block activations + ~0.8 MiB resident weights.
    recon_bytes = jnp.dtype(recon_dtype).itemsize
    act_bytes = block_b * (512 * 4 + 128 * 2 + 512 * recon_bytes + 128 * 4)
    vmem_limit = int(min(64 << 20, max(8 << 20, (4 << 20) + 2 * act_bytes)))

    # Single block -> nothing to shard across TensorCores; multi-block only happens
    # at block_b=512 so per-TC rows >= 512 and "parallel" sharding pays for itself.
    semantics = ("arbitrary",) if num_blocks == 1 else ("parallel",)

    recon, head = pl.pallas_call(
        vae_kernel,
        out_shape=out_shape,
        grid_spec=grid_spec,
        compiler_params=pltpu.CompilerParams(
            dimension_semantics=semantics,
            vmem_limit_bytes=vmem_limit,
        ),
    )(x, eps_pad, *kparams)

    mu = head[:, 0:2]
    logvar = head[:, 64:66]
    return recon, mu, logvar


def init_params(key):
    """Deterministic init matching nn.Linear shapes; weights stored (in, out), f32."""
    dims = {
        "0": (512, 256),
        "1": (256, 128),
        "21": (128, 2),
        "22": (128, 2),
        "3": (2, 128),
        "4": (128, 256),
        "5": (256, 512),
    }
    params = {}
    for name, (fan_in, fan_out) in dims.items():
        key, kw, kb = jax.random.split(key, 3)
        bound = 1.0 / math.sqrt(fan_in)
        params[f"w{name}"] = jax.random.uniform(
            kw, (fan_in, fan_out), jnp.float32, -bound, bound
        )
        params[f"b{name}"] = jax.random.uniform(
            kb, (1, fan_out), jnp.float32, -bound, bound
        )
    return params


def _dot_bf16(a, w):
    # reference mimics the kernel's precision: bf16 operands, f32 accumulation
    return jnp.dot(a.astype(jnp.bfloat16), w.astype(jnp.bfloat16),
                   preferred_element_type=jnp.float32)


def reference_forward(x, eps, params):
    """Pure-JAX reference of the same math (same bf16 dot / eps precision)."""
    eps_b = eps.astype(jnp.bfloat16).astype(jnp.float32)  # kernel transports eps as bf16
    h1 = _gelu_tanh(_dot_bf16(x, params["w0"]) + params["b0"])
    h2 = _gelu_tanh(_dot_bf16(h1, params["w1"]) + params["b1"])
    mu = _dot_bf16(h2, params["w21"]) + params["b21"]
    logvar = _dot_bf16(h2, params["w22"]) + params["b22"]
    z = eps_b * jnp.exp(0.5 * logvar) + mu
    h3 = _gelu_tanh(_dot_bf16(z, params["w3"]) + params["b3"])
    h4 = _gelu_tanh(_dot_bf16(h3, params["w4"]) + params["b4"])
    recon = jax.nn.sigmoid(_dot_bf16(h4, params["w5"]) + params["b5"])
    return recon, mu, logvar


if __name__ == "__main__":
    key = jax.random.PRNGKey(0)
    key, kx, keps, kp = jax.random.split(key, 4)

    B = 128  # small batch -> single grid step, one MXU pass at M=128
    x = jax.random.normal(kx, (B, 512), jnp.float32)
    # reparametrization noise: in PyTorch this is FloatTensor(...).normal_();
    # here it is generated deterministically and passed into the kernel.
    eps = jax.random.normal(keps, (B, 2), jnp.float32)
    params = init_params(kp)

    kparams = prepare_kernel_params(params)  # once, off the hot path

    fwd = jax.jit(vae_forward)
    recon, mu, logvar = jax.block_until_ready(fwd(x, eps, kparams))

    # sanity check vs pure-JAX reference (same bf16 matmul / eps precision)
    r_ref, mu_ref, lv_ref = reference_forward(x, eps, params)
    assert recon.shape == (B, 512) and mu.shape == (B, 2) and logvar.shape == (B, 2)
    assert jnp.allclose(recon, r_ref, atol=1e-2, rtol=1e-2), "recon mismatch"
    assert jnp.allclose(mu, mu_ref, atol=1e-2, rtol=1e-2), "mu mismatch"
    assert jnp.allclose(logvar, lv_ref, atol=1e-2, rtol=1e-2), "logvar mismatch"

    print("KERNEL_OK")
</pallas_src>

<mosaic_0001>
module attributes {stable_mosaic.version = 11 : i64} {
  func.func @vae_kernel(%arg0: i32, %arg1: memref<128x512xf32, #tpu.memory_space<vmem>>, %arg2: memref<128x128xbf16, #tpu.memory_space<vmem>>, %arg3: memref<512x256xbf16, #tpu.memory_space<vmem>>, %arg4: memref<1x256xf32, #tpu.memory_space<vmem>>, %arg5: memref<256x128xbf16, #tpu.memory_space<vmem>>, %arg6: memref<1x128xf32, #tpu.memory_space<vmem>>, %arg7: memref<128x128xbf16, #tpu.memory_space<vmem>>, %arg8: memref<1x128xf32, #tpu.memory_space<vmem>>, %arg9: memref<128x128xbf16, #tpu.memory_space<vmem>>, %arg10: memref<1x128xf32, #tpu.memory_space<vmem>>, %arg11: memref<128x256xbf16, #tpu.memory_space<vmem>>, %arg12: memref<1x256xf32, #tpu.memory_space<vmem>>, %arg13: memref<256x512xbf16, #tpu.memory_space<vmem>>, %arg14: memref<1x512xf32, #tpu.memory_space<vmem>>, %arg15: memref<128x512xf32, #tpu.memory_space<vmem>>, %arg16: memref<128x128xf32, #tpu.memory_space<vmem>>) attributes {dimension_semantics = [#tpu.dimension_semantics<arbitrary>], iteration_bounds = array<i64: 1>, scalar_prefetch = 0 : i64, scratch_operands = 0 : i64, tpu.core_type = #tpu.core_type<tc>, window_params = [{transform_indices = @transform_0, window_bounds = array<i64: 128, 512>}, {transform_indices = @transform_1, window_bounds = array<i64: 128, 128>}, {pipeline_mode = #tpu.pipeline_mode<synchronous>, transform_indices = @transform_2, window_bounds = array<i64: 512, 256>}, {pipeline_mode = #tpu.pipeline_mode<synchronous>, transform_indices = @transform_3, window_bounds = array<i64: 1, 256>}, {pipeline_mode = #tpu.pipeline_mode<synchronous>, transform_indices = @transform_4, window_bounds = array<i64: 256, 128>}, {pipeline_mode = #tpu.pipeline_mode<synchronous>, transform_indices = @transform_5, window_bounds = array<i64: 1, 128>}, {pipeline_mode = #tpu.pipeline_mode<synchronous>, transform_indices = @transform_6, window_bounds = array<i64: 128, 128>}, {pipeline_mode = #tpu.pipeline_mode<synchronous>, transform_indices = @transform_7, window_bounds = array<i64: 1, 128>}, {pipeline_mode = #tpu.pipeline_mode<synchronous>, transform_indices = @transform_8, window_bounds = array<i64: 128, 128>}, {pipeline_mode = #tpu.pipeline_mode<synchronous>, transform_indices = @transform_9, window_bounds = array<i64: 1, 128>}, {pipeline_mode = #tpu.pipeline_mode<synchronous>, transform_indices = @transform_10, window_bounds = array<i64: 128, 256>}, {pipeline_mode = #tpu.pipeline_mode<synchronous>, transform_indices = @transform_11, window_bounds = array<i64: 1, 256>}, {pipeline_mode = #tpu.pipeline_mode<synchronous>, transform_indices = @transform_12, window_bounds = array<i64: 256, 512>}, {pipeline_mode = #tpu.pipeline_mode<synchronous>, transform_indices = @transform_13, window_bounds = array<i64: 1, 512>}, {transform_indices = @transform_14, window_bounds = array<i64: 128, 512>}, {transform_indices = @transform_15, window_bounds = array<i64: 128, 128>}]} {
    %c0 = arith.constant 0 : index
    %c0_0 = arith.constant 0 : index
    %0 = vector.load %arg1[%c0, %c0_0] : memref<128x512xf32, #tpu.memory_space<vmem>>, vector<128x512xf32>
    %1 = arith.truncf %0 : vector<128x512xf32> to vector<128x512xbf16>
    %c0_1 = arith.constant 0 : index
    %c0_2 = arith.constant 0 : index
    %2 = vector.load %arg3[%c0_1, %c0_2] : memref<512x256xbf16, #tpu.memory_space<vmem>>, vector<512x256xbf16>
    %cst = arith.constant dense<0.000000e+00> : vector<128x256xf32>
    %3 = tpu.matmul %1, %2, %cst {dimension_numbers = #tpu.dot_dimension_numbers<[1], [0], [0], [1], [0, 0, 1, 1], [], []>} : vector<128x512xbf16>, vector<512x256xbf16>, vector<128x256xf32> -> vector<128x256xf32>
    %c0_3 = arith.constant 0 : index
    %c0_4 = arith.constant 0 : index
    %4 = vector.load %arg4[%c0_3, %c0_4] : memref<1x256xf32, #tpu.memory_space<vmem>>, vector<1x256xf32>
    %5 = vector.broadcast %4 : vector<1x256xf32> to vector<128x256xf32>
    %6 = arith.addf %3, %5 : vector<128x256xf32>
    %cst_5 = arith.constant 5.000000e-01 : f32
    %7 = vector.broadcast %cst_5 : f32 to vector<128x256xf32>
    %8 = arith.mulf %7, %6 : vector<128x256xf32>
    %cst_6 = arith.constant 4.471500e-02 : f32
    %9 = vector.broadcast %cst_6 : f32 to vector<128x256xf32>
    %10 = arith.mulf %9, %6 : vector<128x256xf32>
    %11 = arith.mulf %10, %6 : vector<128x256xf32>
    %12 = arith.mulf %11, %6 : vector<128x256xf32>
    %13 = arith.addf %6, %12 : vector<128x256xf32>
    %cst_7 = arith.constant 0.797884583 : f32
    %14 = vector.broadcast %cst_7 : f32 to vector<128x256xf32>
    %15 = arith.mulf %14, %13 : vector<128x256xf32>
    %16 = math.tanh %15 : vector<128x256xf32>
    %cst_8 = arith.constant 1.000000e+00 : f32
    %17 = vector.broadcast %cst_8 : f32 to vector<128x256xf32>
    %18 = arith.addf %17, %16 : vector<128x256xf32>
    %19 = arith.mulf %8, %18 : vector<128x256xf32>
    %20 = arith.truncf %19 : vector<128x256xf32> to vector<128x256xbf16>
    %c0_9 = arith.constant 0 : index
    %c0_10 = arith.constant 0 : index
    %21 = vector.load %arg5[%c0_9, %c0_10] : memref<256x128xbf16, #tpu.memory_space<vmem>>, vector<256x128xbf16>
    %cst_11 = arith.constant dense<0.000000e+00> : vector<128x128xf32>
    %22 = tpu.matmul %20, %21, %cst_11 {dimension_numbers = #tpu.dot_dimension_numbers<[1], [0], [0], [1], [0, 0, 1, 1], [], []>} : vector<128x256xbf16>, vector<256x128xbf16>, vector<128x128xf32> -> vector<128x128xf32>
    %c0_12 = arith.constant 0 : index
    %c0_13 = arith.constant 0 : index
    %23 = vector.load %arg6[%c0_12, %c0_13] : memref<1x128xf32, #tpu.memory_space<vmem>>, vector<1x128xf32>
    %24 = vector.broadcast %23 : vector<1x128xf32> to vector<128x128xf32>
    %25 = arith.addf %22, %24 : vector<128x128xf32>
    %cst_14 = arith.constant 5.000000e-01 : f32
    %26 = vector.broadcast %cst_14 : f32 to vector<128x128xf32>
    %27 = arith.mulf %26, %25 : vector<128x128xf32>
    %cst_15 = arith.constant 4.471500e-02 : f32
    %28 = vector.broadcast %cst_15 : f32 to vector<128x128xf32>
    %29 = arith.mulf %28, %25 : vector<128x128xf32>
    %30 = arith.mulf %29, %25 : vector<128x128xf32>
    %31 = arith.mulf %30, %25 : vector<128x128xf32>
    %32 = arith.addf %25, %31 : vector<128x128xf32>
    %cst_16 = arith.constant 0.797884583 : f32
    %33 = vector.broadcast %cst_16 : f32 to vector<128x128xf32>
    %34 = arith.mulf %33, %32 : vector<128x128xf32>
    %35 = math.tanh %34 : vector<128x128xf32>
    %cst_17 = arith.constant 1.000000e+00 : f32
    %36 = vector.broadcast %cst_17 : f32 to vector<128x128xf32>
    %37 = arith.addf %36, %35 : vector<128x128xf32>
    %38 = arith.mulf %27, %37 : vector<128x128xf32>
    %39 = arith.truncf %38 : vector<128x128xf32> to vector<128x128xbf16>
    %c0_18 = arith.constant 0 : index
    %c0_19 = arith.constant 0 : index
    %40 = vector.load %arg7[%c0_18, %c0_19] : memref<128x128xbf16, #tpu.memory_space<vmem>>, vector<128x128xbf16>
    %cst_20 = arith.constant dense<0.000000e+00> : vector<128x128xf32>
    %41 = tpu.matmul %39, %40, %cst_20 {dimension_numbers = #tpu.dot_dimension_numbers<[1], [0], [0], [1], [0, 0, 1, 1], [], []>} : vector<128x128xbf16>, vector<128x128xbf16>, vector<128x128xf32> -> vector<128x128xf32>
    %c0_21 = arith.constant 0 : index
    %c0_22 = arith.constant 0 : index
    %42 = vector.load %arg8[%c0_21, %c0_22] : memref<1x128xf32, #tpu.memory_space<vmem>>, vector<1x128xf32>
    %43 = vector.broadcast %42 : vector<1x128xf32> to vector<128x128xf32>
    %44 = arith.addf %41, %43 : vector<128x128xf32>
    %c64_i32 = arith.constant 64 : i32
    %45 = tpu.dynamic_rotate %44 by %c64_i32 dim 1 : vector<128x128xf32>, i32 -> vector<128x128xf32>
    %46 = tpu.iota {dimensions = array<i32: 1>} : vector<128x128xi32>
    %c2_i32 = arith.constant 2 : i32
    %47 = vector.broadcast %c2_i32 : i32 to vector<128x128xi32>
    %48 = arith.cmpi slt, %46, %47 : vector<128x128xi32>
    %cst_23 = arith.constant 0.000000e+00 : f32
    %49 = vector.broadcast %cst_23 : f32 to vector<128x128xf32>
    %50 = arith.select %48, %45, %49 : vector<128x128xi1>, vector<128x128xf32>
    %c0_24 = arith.constant 0 : index
    %c0_25 = arith.constant 0 : index
    %51 = vector.load %arg2[%c0_24, %c0_25] : memref<128x128xbf16, #tpu.memory_space<vmem>>, vector<128x128xbf16>
    %52 = arith.extf %51 : vector<128x128xbf16> to vector<128x128xf32>
    %cst_26 = arith.constant 5.000000e-01 : f32
    %53 = vector.broadcast %cst_26 : f32 to vector<128x128xf32>
    %54 = arith.mulf %53, %50 : vector<128x128xf32>
    %55 = math.exp %54 : vector<128x128xf32>
    %56 = arith.mulf %52, %55 : vector<128x128xf32>
    %57 = arith.addf %56, %44 : vector<128x128xf32>
    %58 = arith.truncf %57 : vector<128x128xf32> to vector<128x128xbf16>
    %c0_27 = arith.constant 0 : index
    %c0_28 = arith.constant 0 : index
    %59 = vector.load %arg9[%c0_27, %c0_28] : memref<128x128xbf16, #tpu.memory_space<vmem>>, vector<128x128xbf16>
    %cst_29 = arith.constant dense<0.000000e+00> : vector<128x128xf32>
    %60 = tpu.matmul %58, %59, %cst_29 {dimension_numbers = #tpu.dot_dimension_numbers<[1], [0], [0], [1], [0, 0, 1, 1], [], []>} : vector<128x128xbf16>, vector<128x128xbf16>, vector<128x128xf32> -> vector<128x128xf32>
    %c0_30 = arith.constant 0 : index
    %c0_31 = arith.constant 0 : index
    %61 = vector.load %arg10[%c0_30, %c0_31] : memref<1x128xf32, #tpu.memory_space<vmem>>, vector<1x128xf32>
    %62 = vector.broadcast %61 : vector<1x128xf32> to vector<128x128xf32>
    %63 = arith.addf %60, %62 : vector<128x128xf32>
    %cst_32 = arith.constant 5.000000e-01 : f32
    %64 = vector.broadcast %cst_32 : f32 to vector<128x128xf32>
    %65 = arith.mulf %64, %63 : vector<128x128xf32>
    %cst_33 = arith.constant 4.471500e-02 : f32
    %66 = vector.broadcast %cst_33 : f32 to vector<128x128xf32>
    %67 = arith.mulf %66, %63 : vector<128x128xf32>
    %68 = arith.mulf %67, %63 : vector<128x128xf32>
    %69 = arith.mulf %68, %63 : vector<128x128xf32>
    %70 = arith.addf %63, %69 : vector<128x128xf32>
    %cst_34 = arith.constant 0.797884583 : f32
    %71 = vector.broadcast %cst_34 : f32 to vector<128x128xf32>
    %72 = arith.mulf %71, %70 : vector<128x128xf32>
    %73 = math.tanh %72 : vector<128x128xf32>
    %cst_35 = arith.constant 1.000000e+00 : f32
    %74 = vector.broadcast %cst_35 : f32 to vector<128x128xf32>
    %75 = arith.addf %74, %73 : vector<128x128xf32>
    %76 = arith.mulf %65, %75 : vector<128x128xf32>
    %77 = arith.truncf %76 : vector<128x128xf32> to vector<128x128xbf16>
    %c0_36 = arith.constant 0 : index
    %c0_37 = arith.constant 0 : index
    %78 = vector.load %arg11[%c0_36, %c0_37] : memref<128x256xbf16, #tpu.memory_space<vmem>>, vector<128x256xbf16>
    %cst_38 = arith.constant dense<0.000000e+00> : vector<128x256xf32>
    %79 = tpu.matmul %77, %78, %cst_38 {dimension_numbers = #tpu.dot_dimension_numbers<[1], [0], [0], [1], [0, 0, 1, 1], [], []>} : vector<128x128xbf16>, vector<128x256xbf16>, vector<128x256xf32> -> vector<128x256xf32>
    %c0_39 = arith.constant 0 : index
    %c0_40 = arith.constant 0 : index
    %80 = vector.load %arg12[%c0_39, %c0_40] : memref<1x256xf32, #tpu.memory_space<vmem>>, vector<1x256xf32>
    %81 = vector.broadcast %80 : vector<1x256xf32> to vector<128x256xf32>
    %82 = arith.addf %79, %81 : vector<128x256xf32>
    %cst_41 = arith.constant 5.000000e-01 : f32
    %83 = vector.broadcast %cst_41 : f32 to vector<128x256xf32>
    %84 = arith.mulf %83, %82 : vector<128x256xf32>
    %cst_42 = arith.constant 4.471500e-02 : f32
    %85 = vector.broadcast %cst_42 : f32 to vector<128x256xf32>
    %86 = arith.mulf %85, %82 : vector<128x256xf32>
    %87 = arith.mulf %86, %82 : vector<128x256xf32>
    %88 = arith.mulf %87, %82 : vector<128x256xf32>
    %89 = arith.addf %82, %88 : vector<128x256xf32>
    %cst_43 = arith.constant 0.797884583 : f32
    %90 = vector.broadcast %cst_43 : f32 to vector<128x256xf32>
    %91 = arith.mulf %90, %89 : vector<128x256xf32>
    %92 = math.tanh %91 : vector<128x256xf32>
    %cst_44 = arith.constant 1.000000e+00 : f32
    %93 = vector.broadcast %cst_44 : f32 to vector<128x256xf32>
    %94 = arith.addf %93, %92 : vector<128x256xf32>
    %95 = arith.mulf %84, %94 : vector<128x256xf32>
    %96 = arith.truncf %95 : vector<128x256xf32> to vector<128x256xbf16>
    %c0_45 = arith.constant 0 : index
    %c0_46 = arith.constant 0 : index
    %97 = vector.load %arg13[%c0_45, %c0_46] : memref<256x512xbf16, #tpu.memory_space<vmem>>, vector<256x512xbf16>
    %cst_47 = arith.constant dense<0.000000e+00> : vector<128x512xf32>
    %98 = tpu.matmul %96, %97, %cst_47 {dimension_numbers = #tpu.dot_dimension_numbers<[1], [0], [0], [1], [0, 0, 1, 1], [], []>} : vector<128x256xbf16>, vector<256x512xbf16>, vector<128x512xf32> -> vector<128x512xf32>
    %c0_48 = arith.constant 0 : index
    %c0_49 = arith.constant 0 : index
    %99 = vector.load %arg14[%c0_48, %c0_49] : memref<1x512xf32, #tpu.memory_space<vmem>>, vector<1x512xf32>
    %100 = vector.broadcast %99 : vector<1x512xf32> to vector<128x512xf32>
    %101 = arith.addf %98, %100 : vector<128x512xf32>
    %102 = arith.negf %101 : vector<128x512xf32>
    %103 = math.exp %102 : vector<128x512xf32>
    %cst_50 = arith.constant 1.000000e+00 : f32
    %104 = vector.broadcast %cst_50 : f32 to vector<128x512xf32>
    %105 = arith.addf %104, %103 : vector<128x512xf32>
    %106 = arith.divf %104, %105 : vector<128x512xf32>
    %c0_51 = arith.constant 0 : index
    %c0_52 = arith.constant 0 : index
    %107 = vector.load %arg15[%c0_51, %c0_52] : memref<128x512xf32, #tpu.memory_space<vmem>>, vector<128x512xf32>
    tpu.vector_store %arg15[%c0_51, %c0_52], %106 {strides = array<i32>} : memref<128x512xf32, #tpu.memory_space<vmem>>, vector<128x512xf32>,
    %c0_53 = arith.constant 0 : index
    %c0_54 = arith.constant 0 : index
    %108 = vector.load %arg16[%c0_53, %c0_54] : memref<128x128xf32, #tpu.memory_space<vmem>>, vector<128x128xf32>
    tpu.vector_store %arg16[%c0_53, %c0_54], %44 {strides = array<i32>} : memref<128x128xf32, #tpu.memory_space<vmem>>, vector<128x128xf32>,
    return
  }
  func.func @transform_0(%arg0: i32) -> (i32, i32) {
    %c0_i32 = arith.constant 0 : i32
    %c0_i32_0 = arith.constant 0 : i32
    return %arg0, %c0_i32 : i32, i32
  }
  func.func @transform_1(%arg0: i32) -> (i32, i32) {
    %c0_i32 = arith.constant 0 : i32
    %c0_i32_0 = arith.constant 0 : i32
    return %arg0, %c0_i32 : i32, i32
  }
  func.func @transform_2(%arg0: i32) -> (i32, i32) {
    %c0_i32 = arith.constant 0 : i32
    %c0_i32_0 = arith.constant 0 : i32
    %c0_i32_1 = arith.constant 0 : i32
    return %c0_i32, %c0_i32_0 : i32, i32
  }
  func.func @transform_3(%arg0: i32) -> (i32, i32) {
    %c0_i32 = arith.constant 0 : i32
    %c0_i32_0 = arith.constant 0 : i32
    %c0_i32_1 = arith.constant 0 : i32
    return %c0_i32, %c0_i32_0 : i32, i32
  }
  func.func @transform_4(%arg0: i32) -> (i32, i32) {
    %c0_i32 = arith.constant 0 : i32
    %c0_i32_0 = arith.constant 0 : i32
    %c0_i32_1 = arith.constant 0 : i32
    return %c0_i32, %c0_i32_0 : i32, i32
  }
  func.func @transform_5(%arg0: i32) -> (i32, i32) {
    %c0_i32 = arith.constant 0 : i32
    %c0_i32_0 = arith.constant 0 : i32
    %c0_i32_1 = arith.constant 0 : i32
    return %c0_i32, %c0_i32_0 : i32, i32
  }
  func.func @transform_6(%arg0: i32) -> (i32, i32) {
    %c0_i32 = arith.constant 0 : i32
    %c0_i32_0 = arith.constant 0 : i32
    %c0_i32_1 = arith.constant 0 : i32
    return %c0_i32, %c0_i32_0 : i32, i32
  }
  func.func @transform_7(%arg0: i32) -> (i32, i32) {
    %c0_i32 = arith.constant 0 : i32
    %c0_i32_0 = arith.constant 0 : i32
    %c0_i32_1 = arith.constant 0 : i32
    return %c0_i32, %c0_i32_0 : i32, i32
  }
  func.func @transform_8(%arg0: i32) -> (i32, i32) {
    %c0_i32 = arith.constant 0 : i32
    %c0_i32_0 = arith.constant 0 : i32
    %c0_i32_1 = arith.constant 0 : i32
    return %c0_i32, %c0_i32_0 : i32, i32
  }
  func.func @transform_9(%arg0: i32) -> (i32, i32) {
    %c0_i32 = arith.constant 0 : i32
    %c0_i32_0 = arith.constant 0 : i32
    %c0_i32_1 = arith.constant 0 : i32
    return %c0_i32, %c0_i32_0 : i32, i32
  }
  func.func @transform_10(%arg0: i32) -> (i32, i32) {
    %c0_i32 = arith.constant 0 : i32
    %c0_i32_0 = arith.constant 0 : i32
    %c0_i32_1 = arith.constant 0 : i32
    return %c0_i32, %c0_i32_0 : i32, i32
  }
  func.func @transform_11(%arg0: i32) -> (i32, i32) {
    %c0_i32 = arith.constant 0 : i32
    %c0_i32_0 = arith.constant 0 : i32
    %c0_i32_1 = arith.constant 0 : i32
    return %c0_i32, %c0_i32_0 : i32, i32
  }
  func.func @transform_12(%arg0: i32) -> (i32, i32) {
    %c0_i32 = arith.constant 0 : i32
    %c0_i32_0 = arith.constant 0 : i32
    %c0_i32_1 = arith.constant 0 : i32
    return %c0_i32, %c0_i32_0 : i32, i32
  }
  func.func @transform_13(%arg0: i32) -> (i32, i32) {
    %c0_i32 = arith.constant 0 : i32
    %c0_i32_0 = arith.constant 0 : i32
    %c0_i32_1 = arith.constant 0 : i32
    return %c0_i32, %c0_i32_0 : i32, i32
  }
  func.func @transform_14(%arg0: i32) -> (i32, i32) {
    %c0_i32 = arith.constant 0 : i32
    %c0_i32_0 = arith.constant 0 : i32
    return %arg0, %c0_i32 : i32, i32
  }
  func.func @transform_15(%arg0: i32) -> (i32, i32) {
    %c0_i32 = arith.constant 0 : i32
    %c0_i32_0 = arith.constant 0 : i32
    return %arg0, %c0_i32 : i32, i32
  }
}

</mosaic_0001>

<llo_original>
// kernel: vae_forward.1
$region0: #{vae_forward.1}
  #allocation0 [shape = 'u32[]', space=smem, size = 0x4, offset = 0x4, fixed_abs, tag = 'smem constant byte address 0x4 - core index']
  #allocation1 [shape = 'u32[144,128]{1,0:T(1,128)}', space=vmem, size = 0x12000, scoped, tag = 'internal scratch']
  %s0 = inlined_call_operand.hbm [shape: f32[128,512], index: 0, kind: input, shape index: {}]
  %s1 = inlined_call_operand.vmem [shape: bf16[128,128], index: 1, kind: input, shape index: {}]
  %s2 = inlined_call_operand.hbm [shape: bf16[512,256], index: 2, kind: input, shape index: {}]
  %s3 = inlined_call_operand.vmem [shape: f32[1,256], index: 3, kind: input, shape index: {}]
  %s4 = inlined_call_operand.vmem [shape: bf16[256,128], index: 4, kind: input, shape index: {}]
  %s5 = inlined_call_operand.vmem [shape: f32[1,128], index: 5, kind: input, shape index: {}]
  %s6 = inlined_call_operand.vmem [shape: bf16[128,128], index: 6, kind: input, shape index: {}]
  %s7 = inlined_call_operand.vmem [shape: f32[1,128], index: 7, kind: input, shape index: {}]
  %s8 = inlined_call_operand.hbm [shape: bf16[128,128], index: 8, kind: input, shape index: {}]
  %s9 = inlined_call_operand.vmem [shape: f32[1,128], index: 9, kind: input, shape index: {}]
  %s10 = inlined_call_operand.vmem [shape: bf16[128,256], index: 10, kind: input, shape index: {}]
  %s11 = inlined_call_operand.vmem [shape: f32[1,256], index: 11, kind: input, shape index: {}]
  %s12 = inlined_call_operand.hbm [shape: bf16[256,512], index: 12, kind: input, shape index: {}]
  %s13 = inlined_call_operand.vmem [shape: f32[1,512], index: 13, kind: input, shape index: {}]
  %s14 = inlined_call_operand.hbm [shape: f32[128,512], index: 14, kind: output, shape index: {0}]
  %s15 = inlined_call_operand.vmem [shape: f32[128,128], index: 15, kind: output, shape index: {1}]
  %16 = xla_tuple %s14, %s15
  %s17 = sld [smem:[#allocation0]]
  $region90: #{vae_forward.1} parent=0
    _
  %s19 = ssub.s32 1, %s17
  %s20 = scalar_select 0, %s19, %s17
  $region1: #{vae_forward.1} parent=0
    #allocation2 [shape = 'u8[262144]{0}', space=vmem, size = 0x40000, scoped, tag = 'input window, operand 0, single buffered']
    #allocation3 [shape = 's32[1]{0}', space=sflag, size = 0x4, scoped, tag = 'scoped memory for vae_forward.1']
    #allocation4 [shape = 's32[1]{0}', space=sflag, size = 0x4, scoped, tag = 'scoped memory for vae_forward.1']
    #allocation5 [shape = 'u8[262144]{0}', space=vmem, size = 0x40000, scoped, tag = 'input window, operand 2, single buffered']
    #allocation6 [shape = 's32[1]{0}', space=sflag, size = 0x4, scoped, tag = 'scoped memory for vae_forward.1']
    #allocation7 [shape = 'u8[32768]{0}', space=vmem, size = 0x8000, scoped, tag = 'input window, operand 8, single buffered']
    #allocation8 [shape = 'u8[262144]{0}', space=vmem, size = 0x40000, scoped, tag = 'input window, operand 12, single buffered']
    #allocation9 [shape = 's32[1]{0}', space=sflag, size = 0x4, scoped, tag = 'scoped memory for vae_forward.1']
    #allocation10 [shape = 'u8[262144]{0}', space=vmem, size = 0x40000, scoped, tag = 'output window, operand 0, single buffered']
    %21 = vsyncpa [#allocation3], 0
    %22 = vsyncpa [#allocation6], 0
    %23 = vsyncpa [#allocation9], 0
    %24 = vsyncpa [#allocation4], 0
    // Predicated region
    $region2: #{vae_forward.1} parent=1 // pred_check
      _
    $region3: #{vae_forward.1} parent=1 // pred_check_branch
      %26 = sbr.rel (0) target = $region5
    $region4: #{vae_forward.1} parent=1 // pred_region
      %s28 = ssub.s32 8192, 8192
      %29 = vsyncadd [#allocation3], %s28
      %s30 = sshll.u32 [#allocation2], 4
      %s31 = int_to_ptr.vmem [resolvable:$true] %s30
      %36 = dma.hbm_to_vmem [thread:$0]  %s0, 8192, %s31, [#allocation3], 512, 512, 32
    $region5: #{vae_forward.1} parent=1 // pred_fallthru
      _
    // Predicated region
    $region6: #{vae_forward.1} parent=1 // pred_check
      _
    $region7: #{vae_forward.1} parent=1 // pred_check_branch
      %38 = sbr.rel (0) target = $region9
    $region8: #{vae_forward.1} parent=1 // pred_region
      _
    $region9: #{vae_forward.1} parent=1 // pred_fallthru
      _
    // Predicated region
    $region10: #{vae_forward.1} parent=1 // pred_check
      _
    $region11: #{vae_forward.1} parent=1 // pred_check_branch
      %40 = sbr.rel (0) target = $region13
    $region12: #{vae_forward.1} parent=1 // pred_region
      %s42 = ssub.s32 8192, 8192
      %43 = vsyncadd [#allocation6], %s42
      %s44 = sshll.u32 [#allocation5], 4
      %s45 = int_to_ptr.vmem [resolvable:$true] %s44
      %50 = dma.hbm_to_vmem [thread:$0]  %s2, 8192, %s45, [#allocation6], 128, 128, 8
    $region13: #{vae_forward.1} parent=1 // pred_fallthru
      _
    // Predicated region
    $region14: #{vae_forward.1} parent=1 // pred_check
      _
    $region15: #{vae_forward.1} parent=1 // pred_check_branch
      %52 = sbr.rel (0) target = $region17
    $region16: #{vae_forward.1} parent=1 // pred_region
      _
    $region17: #{vae_forward.1} parent=1 // pred_fallthru
      _
    // Predicated region
    $region18: #{vae_forward.1} parent=1 // pred_check
      _
    $region19: #{vae_forward.1} parent=1 // pred_check_branch
      %54 = sbr.rel (0) target = $region21
    $region20: #{vae_forward.1} parent=1 // pred_region
      _
    $region21: #{vae_forward.1} parent=1 // pred_fallthru
      _
    // Predicated region
    $region22: #{vae_forward.1} parent=1 // pred_check
      _
    $region23: #{vae_forward.1} parent=1 // pred_check_branch
      %56 = sbr.rel (0) target = $region25
    $region24: #{vae_forward.1} parent=1 // pred_region
      _
    $region25: #{vae_forward.1} parent=1 // pred_fallthru
      _
    // Predicated region
    $region26: #{vae_forward.1} parent=1 // pred_check
      _
    $region27: #{vae_forward.1} parent=1 // pred_check_branch
      %58 = sbr.rel (0) target = $region29
    $region28: #{vae_forward.1} parent=1 // pred_region
      _
    $region29: #{vae_forward.1} parent=1 // pred_fallthru
      _
    // Predicated region
    $region30: #{vae_forward.1} parent=1 // pred_check
      _
    $region31: #{vae_forward.1} parent=1 // pred_check_branch
      %60 = sbr.rel (0) target = $region33
    $region32: #{vae_forward.1} parent=1 // pred_region
      _
    $region33: #{vae_forward.1} parent=1 // pred_fallthru
      _
    // Predicated region
    $region34: #{vae_forward.1} parent=1 // pred_check
      _
    $region35: #{vae_forward.1} parent=1 // pred_check_branch
      %62 = sbr.rel (0) target = $region37
    $region36: #{vae_forward.1} parent=1 // pred_region
      %s64 = ssub.s32 1024, 1024
      %65 = vsyncadd [#allocation6], %s64
      %s66 = sshll.u32 [#allocation7], 4
      %s67 = int_to_ptr.vmem [resolvable:$true] %s66
      %72 = dma.hbm_to_vmem [thread:$0]  %s8, 1024, %s67, [#allocation6], 64, 64, 4
    $region37: #{vae_forward.1} parent=1 // pred_fallthru
      _
    // Predicated region
    $region38: #{vae_forward.1} parent=1 // pred_check
      _
    $region39: #{vae_forward.1} parent=1 // pred_check_branch
      %74 = sbr.rel (0) target = $region41
    $region40: #{vae_forward.1} parent=1 // pred_region
      _
    $region41: #{vae_forward.1} parent=1 // pred_fallthru
      _
    // Predicated region
    $region42: #{vae_forward.1} parent=1 // pred_check
      _
    $region43: #{vae_forward.1} parent=1 // pred_check_branch
      %76 = sbr.rel (0) target = $region45
    $region44: #{vae_forward.1} parent=1 // pred_region
      _
    $region45: #{vae_forward.1} parent=1 // pred_fallthru
      _
    // Predicated region
    $region46: #{vae_forward.1} parent=1 // pred_check
      _
    $region47: #{vae_forward.1} parent=1 // pred_check_branch
      %78 = sbr.rel (0) target = $region49
    $region48: #{vae_forward.1} parent=1 // pred_region
      _
    $region49: #{vae_forward.1} parent=1 // pred_fallthru
      _
    // Predicated region
    $region50: #{vae_forward.1} parent=1 // pred_check
      _
    $region51: #{vae_forward.1} parent=1 // pred_check_branch
      %80 = sbr.rel (0) target = $region53
    $region52: #{vae_forward.1} parent=1 // pred_region
      %s82 = ssub.s32 8192, 8192
      %83 = vsyncadd [#allocation9], %s82
      %s84 = sshll.u32 [#allocation8], 4
      %s85 = int_to_ptr.vmem [resolvable:$true] %s84
      %90 = dma.hbm_to_vmem [thread:$0]  %s12, 8192, %s85, [#allocation9], 256, 256, 16
    $region53: #{vae_forward.1} parent=1 // pred_fallthru
      _
    // Predicated region
    $region54: #{vae_forward.1} parent=1 // pred_check
      _
    $region55: #{vae_forward.1} parent=1 // pred_check_branch
      %92 = sbr.rel (0) target = $region57
    $region56: #{vae_forward.1} parent=1 // pred_region
      _
    $region57: #{vae_forward.1} parent=1 // pred_fallthru
      _
    // Predicated region
    $region58: #{vae_forward.1} parent=1 // pred_check
      _
    $region59: #{vae_forward.1} parent=1 // pred_check_branch
      %94 = sbr.rel (0) target = $region61
    $region60: #{vae_forward.1} parent=1 // pred_region
      %95 = dma.done [#allocation3], 8192
    $region61: #{vae_forward.1} parent=1 // pred_fallthru
      _
    // Predicated region
    $region62: #{vae_forward.1} parent=1 // pred_check
      _
    $region63: #{vae_forward.1} parent=1 // pred_check_branch
      %97 = sbr.rel (0) target = $region65
    $region64: #{vae_forward.1} parent=1 // pred_region
      %98 = dma.done [#allocation6], 8192
    $region65: #{vae_forward.1} parent=1 // pred_fallthru
      _
    // Predicated region
    $region66: #{vae_forward.1} parent=1 // pred_check
      _
    $region67: #{vae_forward.1} parent=1 // pred_check_branch
      %100 = sbr.rel (0) target = $region69
    $region68: #{vae_forward.1} parent=1 // pred_region
      %101 = dma.done [#allocation6], 1024
    $region69: #{vae_forward.1} parent=1 // pred_fallthru
      _
    // Predicated region
    $region70: #{vae_forward.1} parent=1 // pred_check
      _
    $region71: #{vae_forward.1} parent=1 // pred_check_branch
      %103 = sbr.rel (0) target = $region73
    $region72: #{vae_forward.1} parent=1 // pred_region
      %104 = dma.done [#allocation9], 8192
    $region73: #{vae_forward.1} parent=1 // pred_fallthru
      _
    %v106 = vld [vmem:[#allocation2] sm:$0xff]
    %v107 = vld [vmem:[#allocation2 + $0x8] sm:$0xff]
    %v108 = vld [vmem:[#allocation2 + $0x10] sm:$0xff]
    %v109 = vld [vmem:[#allocation2 + $0x18] sm:$0xff]
    %v110 = vld [vmem:[#allocation2 + $0x20] sm:$0xff]
    %v111 = vld [vmem:[#allocation2 + $0x28] sm:$0xff]
    %v112 = vld [vmem:[#allocation2 + $0x30] sm:$0xff]
    %v113 = vld [vmem:[#allocation2 + $0x38] sm:$0xff]
    %v114 = vld [vmem:[#allocation2 + $0x40] sm:$0xff]
    %v115 = vld [vmem:[#allocation2 + $0x48] sm:$0xff]
    %v116 = vld [vmem:[#allocation2 + $0x50] sm:$0xff]
    %v117 = vld [vmem:[#allocation2 + $0x58] sm:$0xff]
    %v118 = vld [vmem:[#allocation2 + $0x60] sm:$0xff]
    %v119 = vld [vmem:[#allocation2 + $0x68] sm:$0xff]
    %v120 = vld [vmem:[#allocation2 + $0x70] sm:$0xff]
    %v121 = vld [vmem:[#allocation2 + $0x78] sm:$0xff]
    %v122 = vld [vmem:[#allocation2 + $0x80] sm:$0xff]
    %v123 = vld [vmem:[#allocation2 + $0x88] sm:$0xff]
    %v124 = vld [vmem:[#allocation2 + $0x90] sm:$0xff]
    %v125 = vld [vmem:[#allocation2 + $0x98] sm:$0xff]
    %v126 = vld [vmem:[#allocation2 + $0xa0] sm:$0xff]
    %v127 = vld [vmem:[#allocation2 + $0xa8] sm:$0xff]
    %v128 = vld [vmem:[#allocation2 + $0xb0] sm:$0xff]
    %v129 = vld [vmem:[#allocation2 + $0xb8] sm:$0xff]
    %v130 = vld [vmem:[#allocation2 + $0xc0] sm:$0xff]
    %v131 = vld [vmem:[#allocation2 + $0xc8] sm:$0xff]
    %v132 = vld [vmem:[#allocation2 + $0xd0] sm:$0xff]
    %v133 = vld [vmem:[#allocation2 + $0xd8] sm:$0xff]
    %v134 = vld [vmem:[#allocation2 + $0xe0] sm:$0xff]
    %v135 = vld [vmem:[#allocation2 + $0xe8] sm:$0xff]
    %v136 = vld [vmem:[#allocation2 + $0xf0] sm:$0xff]
    %v137 = vld [vmem:[#allocation2 + $0xf8] sm:$0xff]
    %v138 = vld [vmem:[#allocation2 + $0x100] sm:$0xff]
    %v139 = vld [vmem:[#allocation2 + $0x108] sm:$0xff]
    %v140 = vld [vmem:[#allocation2 + $0x110] sm:$0xff]
    %v141 = vld [vmem:[#allocation2 + $0x118] sm:$0xff]
    %v142 = vld [vmem:[#allocation2 + $0x120] sm:$0xff]
    %v143 = vld [vmem:[#allocation2 + $0x128] sm:$0xff]
    %v144 = vld [vmem:[#allocation2 + $0x130] sm:$0xff]
    %v145 = vld [vmem:[#allocation2 + $0x138] sm:$0xff]
    %v146 = vld [vmem:[#allocation2 + $0x140] sm:$0xff]
    %v147 = vld [vmem:[#allocation2 + $0x148] sm:$0xff]
    %v148 = vld [vmem:[#allocation2 + $0x150] sm:$0xff]
    %v149 = vld [vmem:[#allocation2 + $0x158] sm:$0xff]
    %v150 = vld [vmem:[#allocation2 + $0x160] sm:$0xff]
    %v151 = vld [vmem:[#allocation2 + $0x168] sm:$0xff]
    %v152 = vld [vmem:[#allocation2 + $0x170] sm:$0xff]
    %v153 = vld [vmem:[#allocation2 + $0x178] sm:$0xff]
    %v154 = vld [vmem:[#allocation2 + $0x180] sm:$0xff]
    %v155 = vld [vmem:[#allocation2 + $0x188] sm:$0xff]
    %v156 = vld [vmem:[#allocation2 + $0x190] sm:$0xff]
    %v157 = vld [vmem:[#allocation2 + $0x198] sm:$0xff]
    %v158 = vld [vmem:[#allocation2 + $0x1a0] sm:$0xff]
    %v159 = vld [vmem:[#allocation2 + $0x1a8] sm:$0xff]
    %v160 = vld [vmem:[#allocation2 + $0x1b0] sm:$0xff]
    %v161 = vld [vmem:[#allocation2 + $0x1b8] sm:$0xff]
    %v162 = vld [vmem:[#allocation2 + $0x1c0] sm:$0xff]
    %v163 = vld [vmem:[#allocation2 + $0x1c8] sm:$0xff]
    %v164 = vld [vmem:[#allocation2 + $0x1d0] sm:$0xff]
    %v165 = vld [vmem:[#allocation2 + $0x1d8] sm:$0xff]
    %v166 = vld [vmem:[#allocation2 + $0x1e0] sm:$0xff]
    %v167 = vld [vmem:[#allocation2 + $0x1e8] sm:$0xff]
    %v168 = vld [vmem:[#allocation2 + $0x1f0] sm:$0xff]
    %v169 = vld [vmem:[#allocation2 + $0x1f8] sm:$0xff]
    %v170 = vpack.c.bf16 %v110, %v106
    %v171 = vpack.c.bf16 %v111, %v107
    %v172 = vpack.c.bf16 %v112, %v108
    %v173 = vpack.c.bf16 %v113, %v109
    %v174 = vpack.c.bf16 %v118, %v114
    %v175 = vpack.c.bf16 %v119, %v115
    %v176 = vpack.c.bf16 %v120, %v116
    %v177 = vpack.c.bf16 %v121, %v117
    %v178 = vpack.c.bf16 %v126, %v122
    %v179 = vpack.c.bf16 %v127, %v123
    %v180 = vpack.c.bf16 %v128, %v124
    %v181 = vpack.c.bf16 %v129, %v125
    %v182 = vpack.c.bf16 %v134, %v130
    %v183 = vpack.c.bf16 %v135, %v131
    %v184 = vpack.c.bf16 %v136, %v132
    %v185 = vpack.c.bf16 %v137, %v133
    %v186 = vpack.c.bf16 %v142, %v138
    %v187 = vpack.c.bf16 %v143, %v139
    %v188 = vpack.c.bf16 %v144, %v140
    %v189 = vpack.c.bf16 %v145, %v141
    %v190 = vpack.c.bf16 %v150, %v146
    %v191 = vpack.c.bf16 %v151, %v147
    %v192 = vpack.c.bf16 %v152, %v148
    %v193 = vpack.c.bf16 %v153, %v149
    %v194 = vpack.c.bf16 %v158, %v154
    %v195 = vpack.c.bf16 %v159, %v155
    %v196 = vpack.c.bf16 %v160, %v156
    %v197 = vpack.c.bf16 %v161, %v157
    %v198 = vpack.c.bf16 %v166, %v162
    %v199 = vpack.c.bf16 %v167, %v163
    %v200 = vpack.c.bf16 %v168, %v164
    %v201 = vpack.c.bf16 %v169, %v165
    %v202 = vld [vmem:[#allocation5] sm:$0xff]
    %v203 = vld [vmem:[#allocation5 + $0x8] sm:$0xff]
    %v204 = vld [vmem:[#allocation5 + $0x10] sm:$0xff]
    %v205 = vld [vmem:[#allocation5 + $0x18] sm:$0xff]
    %v206 = vld [vmem:[#allocation5 + $0x20] sm:$0xff]
    %v207 = vld [vmem:[#allocation5 + $0x28] sm:$0xff]
    %v208 = vld [vmem:[#allocation5 + $0x30] sm:$0xff]
    %v209 = vld [vmem:[#allocation5 + $0x38] sm:$0xff]
    %v210 = vld [vmem:[#allocation5 + $0x40] sm:$0xff]
    %v211 = vld [vmem:[#allocation5 + $0x48] sm:$0xff]
    %v212 = vld [vmem:[#allocation5 + $0x50] sm:$0xff]
    %v213 = vld [vmem:[#allocation5 + $0x58] sm:$0xff]
    %v214 = vld [vmem:[#allocation5 + $0x60] sm:$0xff]
    %v215 = vld [vmem:[#allocation5 + $0x68] sm:$0xff]
    %v216 = vld [vmem:[#allocation5 + $0x70] sm:$0xff]
    %v217 = vld [vmem:[#allocation5 + $0x78] sm:$0xff]
    %v218 = vld [vmem:[#allocation5 + $0x80] sm:$0xff]
    %v219 = vld [vmem:[#allocation5 + $0x88] sm:$0xff]
    %v220 = vld [vmem:[#allocation5 + $0x90] sm:$0xff]
    %v221 = vld [vmem:[#allocation5 + $0x98] sm:$0xff]
    %v222 = vld [vmem:[#allocation5 + $0xa0] sm:$0xff]
    %v223 = vld [vmem:[#allocation5 + $0xa8] sm:$0xff]
    %v224 = vld [vmem:[#allocation5 + $0xb0] sm:$0xff]
    %v225 = vld [vmem:[#allocation5 + $0xb8] sm:$0xff]
    %v226 = vld [vmem:[#allocation5 + $0xc0] sm:$0xff]
    %v227 = vld [vmem:[#allocation5 + $0xc8] sm:$0xff]
    %v228 = vld [vmem:[#allocation5 + $0xd0] sm:$0xff]
    %v229 = vld [vmem:[#allocation5 + $0xd8] sm:$0xff]
    %v230 = vld [vmem:[#allocation5 + $0xe0] sm:$0xff]
    %v231 = vld [vmem:[#allocation5 + $0xe8] sm:$0xff]
    %v232 = vld [vmem:[#allocation5 + $0xf0] sm:$0xff]
    %v233 = vld [vmem:[#allocation5 + $0xf8] sm:$0xff]
    %v234 = vld [vmem:[#allocation5 + $0x100] sm:$0xff]
    %v235 = vld [vmem:[#allocation5 + $0x108] sm:$0xff]
    %v236 = vld [vmem:[#allocation5 + $0x110] sm:$0xff]
    %v237 = vld [vmem:[#allocation5 + $0x118] sm:$0xff]
    %v238 = vld [vmem:[#allocation5 + $0x120] sm:$0xff]
    %v239 = vld [vmem:[#allocation5 + $0x128] sm:$0xff]
    %v240 = vld [vmem:[#allocation5 + $0x130] sm:$0xff]
    %v241 = vld [vmem:[#allocation5 + $0x138] sm:$0xff]
    %v242 = vld [vmem:[#allocation5 + $0x140] sm:$0xff]
    %v243 = vld [vmem:[#allocation5 + $0x148] sm:$0xff]
    %v244 = vld [vmem:[#allocation5 + $0x150] sm:$0xff]
    %v245 = vld [vmem:[#allocation5 + $0x158] sm:$0xff]
    %v246 = vld [vmem:[#allocation5 + $0x160] sm:$0xff]
    %v247 = vld [vmem:[#allocation5 + $0x168] sm:$0xff]
    %v248 = vld [vmem:[#allocation5 + $0x170] sm:$0xff]
    %v249 = vld [vmem:[#allocation5 + $0x178] sm:$0xff]
    %v250 = vld [vmem:[#allocation5 + $0x180] sm:$0xff]
    %v251 = vld [vmem:[#allocation5 + $0x188] sm:$0xff]
    %v252 = vld [vmem:[#allocation5 + $0x190] sm:$0xff]
    %v253 = vld [vmem:[#allocation5 + $0x198] sm:$0xff]
    %v254 = vld [vmem:[#allocation5 + $0x1a0] sm:$0xff]
    %v255 = vld [vmem:[#allocation5 + $0x1a8] sm:$0xff]
    %v256 = vld [vmem:[#allocation5 + $0x1b0] sm:$0xff]
    %v257 = vld [vmem:[#allocation5 + $0x1b8] sm:$0xff]
    %v258 = vld [vmem:[#allocation5 + $0x1c0] sm:$0xff]
    %v259 = vld [vmem:[#allocation5 + $0x1c8] sm:$0xff]
    %v260 = vld [vmem:[#allocation5 + $0x1d0] sm:$0xff]
    %v261 = vld [vmem:[#allocation5 + $0x1d8] sm:$0xff]
    %v262 = vld [vmem:[#allocation5 + $0x1e0] sm:$0xff]
    %v263 = vld [vmem:[#allocation5 + $0x1e8] sm:$0xff]
    %v264 = vld [vmem:[#allocation5 + $0x1f0] sm:$0xff]
    %v265 = vld [vmem:[#allocation5 + $0x1f8] sm:$0xff]
    %v266 = vld [vmem:[%s3] sm:$0x3]
    %v268 = vlaneseq
    %v269 = vshrl.u32 %v268, 7
    %v270 = vsub.s32 0, %v269
    %v271 = vrot.slane %v266, %v270
    %v272 = vlaneseq
    %v273 = vshrl.u32 %v272, 7
    %v274 = vsub.s32 1, %v273
    %v275 = vrot.slane %v266, %v274
    %v342 = vunpack.c.l.b16 %v202
    %v343 = vunpack.c.h.b16 %v202
    %v344 = vunpack.c.l.b16 %v203
    %v345 = vunpack.c.h.b16 %v203
    %v346 = vunpack.c.l.b16 %v204
    %v347 = vunpack.c.h.b16 %v204
    %v348 = vunpack.c.l.b16 %v205
    %v349 = vunpack.c.h.b16 %v205
    %v350 = vunpack.c.l.b16 %v206
    %v351 = vunpack.c.h.b16 %v206
    %v352 = vunpack.c.l.b16 %v207
    %v353 = vunpack.c.h.b16 %v207
    %v354 = vunpack.c.l.b16 %v208
    %v355 = vunpack.c.h.b16 %v208
    %v356 = vunpack.c.l.b16 %v209
    %v357 = vunpack.c.h.b16 %v209
    %v358 = vunpack.c.l.b16 %v210
    %v359 = vunpack.c.h.b16 %v210
    %v360 = vunpack.c.l.b16 %v211
    %v361 = vunpack.c.h.b16 %v211
    %v362 = vunpack.c.l.b16 %v212
    %v363 = vunpack.c.h.b16 %v212
    %v364 = vunpack.c.l.b16 %v213
    %v365 = vunpack.c.h.b16 %v213
    %v366 = vunpack.c.l.b16 %v214
    %v367 = vunpack.c.h.b16 %v214
    %v368 = vunpack.c.l.b16 %v215
    %v369 = vunpack.c.h.b16 %v215
    %v370 = vunpack.c.l.b16 %v216
    %v371 = vunpack.c.h.b16 %v216
    %v372 = vunpack.c.l.b16 %v217
    %v373 = vunpack.c.h.b16 %v217
    %v374 = vunpack.c.l.b16 %v218
    %v375 = vunpack.c.h.b16 %v218
    %v376 = vunpack.c.l.b16 %v219
    %v377 = vunpack.c.h.b16 %v219
    %v378 = vunpack.c.l.b16 %v220
    %v379 = vunpack.c.h.b16 %v220
    %v380 = vunpack.c.l.b16 %v221
    %v381 = vunpack.c.h.b16 %v221
    %v382 = vunpack.c.l.b16 %v222
    %v383 = vunpack.c.h.b16 %v222
    %v384 = vunpack.c.l.b16 %v223
    %v385 = vunpack.c.h.b16 %v223
    %v386 = vunpack.c.l.b16 %v224
    %v387 = vunpack.c.h.b16 %v224
    %v388 = vunpack.c.l.b16 %v225
    %v389 = vunpack.c.h.b16 %v225
    %v390 = vunpack.c.l.b16 %v226
    %v391 = vunpack.c.h.b16 %v226
    %v392 = vunpack.c.l.b16 %v227
    %v393 = vunpack.c.h.b16 %v227
    %v394 = vunpack.c.l.b16 %v228
    %v395 = vunpack.c.h.b16 %v228
    %v396 = vunpack.c.l.b16 %v229
    %v397 = vunpack.c.h.b16 %v229
    %v398 = vunpack.c.l.b16 %v230
    %v399 = vunpack.c.h.b16 %v230
    %v400 = vunpack.c.l.b16 %v231
    %v401 = vunpack.c.h.b16 %v231
    %v402 = vunpack.c.l.b16 %v232
    %v403 = vunpack.c.h.b16 %v232
    %v404 = vunpack.c.l.b16 %v233
    %v405 = vunpack.c.h.b16 %v233
    %v406 = vunpack.c.l.b16 %v234
    %v407 = vunpack.c.h.b16 %v234
    %v408 = vunpack.c.l.b16 %v235
    %v409 = vunpack.c.h.b16 %v235
    %v410 = vunpack.c.l.b16 %v236
    %v411 = vunpack.c.h.b16 %v236
    %v412 = vunpack.c.l.b16 %v237
    %v413 = vunpack.c.h.b16 %v237
    %v414 = vunpack.c.l.b16 %v238
    %v415 = vunpack.c.h.b16 %v238
    %v416 = vunpack.c.l.b16 %v239
    %v417 = vunpack.c.h.b16 %v239
    %v418 = vunpack.c.l.b16 %v240
    %v419 = vunpack.c.h.b16 %v240
    %v420 = vunpack.c.l.b16 %v241
    %v421 = vunpack.c.h.b16 %v241
    %v422 = vunpack.c.l.b16 %v242
    %v423 = vunpack.c.h.b16 %v242
    %v424 = vunpack.c.l.b16 %v243
    %v425 = vunpack.c.h.b16 %v243
    %v426 = vunpack.c.l.b16 %v244
    %v427 = vunpack.c.h.b16 %v244
    %v428 = vunpack.c.l.b16 %v245
    %v429 = vunpack.c.h.b16 %v245
    %v430 = vunpack.c.l.b16 %v246
    %v431 = vunpack.c.h.b16 %v246
    %v432 = vunpack.c.l.b16 %v247
    %v433 = vunpack.c.h.b16 %v247
    %v434 = vunpack.c.l.b16 %v248
    %v435 = vunpack.c.h.b16 %v248
    %v436 = vunpack.c.l.b16 %v249
    %v437 = vunpack.c.h.b16 %v249
    %v438 = vunpack.c.l.b16 %v250
    %v439 = vunpack.c.h.b16 %v250
    %v440 = vunpack.c.l.b16 %v251
    %v441 = vunpack.c.h.b16 %v251
    %v442 = vunpack.c.l.b16 %v252
    %v443 = vunpack.c.h.b16 %v252
    %v444 = vunpack.c.l.b16 %v253
    %v445 = vunpack.c.h.b16 %v253
    %v446 = vunpack.c.l.b16 %v254
    %v447 = vunpack.c.h.b16 %v254
    %v448 = vunpack.c.l.b16 %v255
    %v449 = vunpack.c.h.b16 %v255
    %v450 = vunpack.c.l.b16 %v256
    %v451 = vunpack.c.h.b16 %v256
    %v452 = vunpack.c.l.b16 %v257
    %v453 = vunpack.c.h.b16 %v257
    %v454 = vunpack.c.l.b16 %v258
    %v455 = vunpack.c.h.b16 %v258
    %v456 = vunpack.c.l.b16 %v259
    %v457 = vunpack.c.h.b16 %v259
    %v458 = vunpack.c.l.b16 %v260
    %v459 = vunpack.c.h.b16 %v260
    %v460 = vunpack.c.l.b16 %v261
    %v461 = vunpack.c.h.b16 %v261
    %v462 = vunpack.c.l.b16 %v262
    %v463 = vunpack.c.h.b16 %v262
    %v464 = vunpack.c.l.b16 %v263
    %v465 = vunpack.c.h.b16 %v263
    %v466 = vunpack.c.l.b16 %v264
    %v467 = vunpack.c.h.b16 %v264
    %v468 = vunpack.c.l.b16 %v265
    %v469 = vunpack.c.h.b16 %v265
    %v470 = vpack.c.b16 %v344, %v342
    %v471 = vpack.c.b16 %v345, %v343
    %v472 = vpack.c.b16 %v348, %v346
    %v473 = vpack.c.b16 %v349, %v347
    %v474 = vpack.c.b16 %v352, %v350
    %v475 = vpack.c.b16 %v353, %v351
    %v476 = vpack.c.b16 %v356, %v354
    %v477 = vpack.c.b16 %v357, %v355
    %v478 = vpack.c.b16 %v360, %v358
    %v479 = vpack.c.b16 %v361, %v359
    %v480 = vpack.c.b16 %v364, %v362
    %v481 = vpack.c.b16 %v365, %v363
    %v482 = vpack.c.b16 %v368, %v366
    %v483 = vpack.c.b16 %v369, %v367
    %v484 = vpack.c.b16 %v372, %v370
    %v485 = vpack.c.b16 %v373, %v371
    %v486 = vpack.c.b16 %v376, %v374
    %v487 = vpack.c.b16 %v377, %v375
    %v488 = vpack.c.b16 %v380, %v378
    %v489 = vpack.c.b16 %v381, %v379
    %v490 = vpack.c.b16 %v384, %v382
    %v491 = vpack.c.b16 %v385, %v383
    %v492 = vpack.c.b16 %v388, %v386
    %v493 = vpack.c.b16 %v389, %v387
    %v494 = vpack.c.b16 %v392, %v390
    %v495 = vpack.c.b16 %v393, %v391
    %v496 = vpack.c.b16 %v396, %v394
    %v497 = vpack.c.b16 %v397, %v395
    %v498 = vpack.c.b16 %v400, %v398
    %v499 = vpack.c.b16 %v401, %v399
    %v500 = vpack.c.b16 %v404, %v402
    %v501 = vpack.c.b16 %v405, %v403
    %v502 = vpack.c.b16 %v408, %v406
    %v503 = vpack.c.b16 %v409, %v407
    %v504 = vpack.c.b16 %v412, %v410
    %v505 = vpack.c.b16 %v413, %v411
    %v506 = vpack.c.b16 %v416, %v414
    %v507 = vpack.c.b16 %v417, %v415
    %v508 = vpack.c.b16 %v420, %v418
    %v509 = vpack.c.b16 %v421, %v419
    %v510 = vpack.c.b16 %v424, %v422
    %v511 = vpack.c.b16 %v425, %v423
    %v512 = vpack.c.b16 %v428, %v426
    %v513 = vpack.c.b16 %v429, %v427
    %v514 = vpack.c.b16 %v432, %v430
    %v515 = vpack.c.b16 %v433, %v431
    %v516 = vpack.c.b16 %v436, %v434
    %v517 = vpack.c.b16 %v437, %v435
    %v518 = vpack.c.b16 %v440, %v438
    %v519 = vpack.c.b16 %v441, %v439
    %v520 = vpack.c.b16 %v444, %v442
    %v521 = vpack.c.b16 %v445, %v443
    %v522 = vpack.c.b16 %v448, %v446
    %v523 = vpack.c.b16 %v449, %v447
    %v524 = vpack.c.b16 %v452, %v450
    %v525 = vpack.c.b16 %v453, %v451
    %v526 = vpack.c.b16 %v456, %v454
    %v527 = vpack.c.b16 %v457, %v455
    %v528 = vpack.c.b16 %v460, %v458
    %v529 = vpack.c.b16 %v461, %v459
    %v530 = vpack.c.b16 %v464, %v462
    %v531 = vpack.c.b16 %v465, %v463
    %v532 = vpack.c.b16 %v468, %v466
    %v533 = vpack.c.b16 %v469, %v467
    %598 = vmatprep.subr.bf16.mxu0 %v471
    %599 = vmatpush1.bf16.msra.mxu0 %v470
    %600 = vmatprep.subr.bf16.mxu0 %v473
    %601 = vmatpush1.bf16.msra.mxu0 %v472
    %602 = vmatprep.subr.bf16.mxu0 %v475
    %603 = vmatpush1.bf16.msra.mxu0 %v474
    %604 = vmatprep.subr.bf16.mxu0 %v477
    %605 = vmatpush1.bf16.msra.mxu0 %v476
    %606 = vmatprep.subr.bf16.mxu0 %v479
    %607 = vmatpush1.bf16.msra.mxu0 %v478
    %608 = vmatprep.subr.bf16.mxu0 %v481
    %609 = vmatpush1.bf16.msra.mxu0 %v480
    %610 = vmatprep.subr.bf16.mxu0 %v483
    %611 = vmatpush1.bf16.msra.mxu0 %v482
    %612 = vmatprep.subr.bf16.mxu0 %v485
    %613 = vmatpush1.bf16.msra.mxu0 %v484
    %614 = vmatprep.subr.bf16.mxu0 %v487
    %615 = vmatpush1.bf16.msra.mxu0 %v486
    %616 = vmatprep.subr.bf16.mxu0 %v489
    %617 = vmatpush1.bf16.msra.mxu0 %v488
    %618 = vmatprep.subr.bf16.mxu0 %v491
    %619 = vmatpush1.bf16.msra.mxu0 %v490
    %620 = vmatprep.subr.bf16.mxu0 %v493
    %621 = vmatpush1.bf16.msra.mxu0 %v492
    %622 = vmatprep.subr.bf16.mxu0 %v495
    %623 = vmatpush1.bf16.msra.mxu0 %v494
    %624 = vmatprep.subr.bf16.mxu0 %v497
    %625 = vmatpush1.bf16.msra.mxu0 %v496
    %626 = vmatprep.subr.bf16.mxu0 %v499
    %627 = vmatpush1.bf16.msra.mxu0 %v498
    %628 = vmatprep.subr.bf16.mxu0 %v501
    %629 = vmatpush1.bf16.msra.mxu0 %v500
    %630 = vmatprep.mubr.bf16.mxu0 %v171
    %631 = vmatmul.mubr.bf16.gmra.mrb[0].mxu0 %v170
    %v632 = vpop.f32.mrb[0].mxu0
    %v633 = vadd.f32 %v271, %v632
    %v634 = vpop.f32.mrb[0].mxu0
    %v635 = vadd.f32 %v275, %v634
    %v636 = vpop.f32.mrb[0].mxu0
    %v637 = vadd.f32 %v271, %v636
    %v638 = vpop.f32.mrb[0].mxu0
    %v639 = vadd.f32 %v275, %v638
    %640 = vmatprep.mubr.bf16.mxu0 %v175
    %641 = vmatmul.mubr.bf16.gmra.mrb[0].mxu0 %v174
    %v642 = vpop.f32.mrb[0].mxu0
    %v643 = vadd.f32 %v271, %v642
    %v644 = vpop.f32.mrb[0].mxu0
    %v645 = vadd.f32 %v275, %v644
    %v646 = vpop.f32.mrb[0].mxu0
    %v647 = vadd.f32 %v271, %v646
    %v648 = vpop.f32.mrb[0].mxu0
    %v649 = vadd.f32 %v275, %v648
    %650 = vmatprep.mubr.bf16.mxu0 %v179
    %651 = vmatmul.mubr.bf16.gmra.mrb[0].mxu0 %v178
    %v652 = vpop.f32.mrb[0].mxu0
    %v653 = vadd.f32 %v271, %v652
    %v654 = vpop.f32.mrb[0].mxu0
    %v655 = vadd.f32 %v275, %v654
    %v656 = vpop.f32.mrb[0].mxu0
    %v657 = vadd.f32 %v271, %v656
    %v658 = vpop.f32.mrb[0].mxu0
    %v659 = vadd.f32 %v275, %v658
    %660 = vmatprep.mubr.bf16.mxu0 %v183
    %661 = vmatmul.mubr.bf16.gmra.mrb[0].mxu0 %v182
    %v662 = vpop.f32.mrb[0].mxu0
    %v663 = vadd.f32 %v271, %v662
    %v664 = vpop.f32.mrb[0].mxu0
    %v665 = vadd.f32 %v275, %v664
    %v666 = vpop.f32.mrb[0].mxu0
    %v667 = vadd.f32 %v271, %v666
    %v668 = vpop.f32.mrb[0].mxu0
    %v669 = vadd.f32 %v275, %v668
    %670 = vmatprep.mubr.bf16.mxu0 %v187
    %671 = vmatmul.mubr.bf16.gmra.mrb[0].mxu0 %v186
    %v672 = vpop.f32.mrb[0].mxu0
    %v673 = vadd.f32 %v271, %v672
    %v674 = vpop.f32.mrb[0].mxu0
    %v675 = vadd.f32 %v275, %v674
    %v676 = vpop.f32.mrb[0].mxu0
    %v677 = vadd.f32 %v271, %v676
    %v678 = vpop.f32.mrb[0].mxu0
    %v679 = vadd.f32 %v275, %v678
    %680 = vmatprep.mubr.bf16.mxu0 %v191
    %681 = vmatmul.mubr.bf16.gmra.mrb[0].mxu0 %v190
    %v682 = vpop.f32.mrb[0].mxu0
    %v683 = vadd.f32 %v271, %v682
    %v684 = vpop.f32.mrb[0].mxu0
    %v685 = vadd.f32 %v275, %v684
    %v686 = vpop.f32.mrb[0].mxu0
    %v687 = vadd.f32 %v271, %v686
    %v688 = vpop.f32.mrb[0].mxu0
    %v689 = vadd.f32 %v275, %v688
    %690 = vmatprep.mubr.bf16.mxu0 %v195
    %691 = vmatmul.mubr.bf16.gmra.mrb[0].mxu0 %v194
    %v692 = vpop.f32.mrb[0].mxu0
    %v693 = vadd.f32 %v271, %v692
    %v694 = vpop.f32.mrb[0].mxu0
    %v695 = vadd.f32 %v275, %v694
    %v696 = vpop.f32.mrb[0].mxu0
    %v697 = vadd.f32 %v271, %v696
    %v698 = vpop.f32.mrb[0].mxu0
    %v699 = vadd.f32 %v275, %v698
    %700 = vmatprep.mubr.bf16.mxu0 %v199
    %701 = vmatmul.mubr.bf16.gmra.mrb[0].mxu0 %v198
    %v702 = vpop.f32.mrb[0].mxu0
    %v703 = vadd.f32 %v271, %v702
    %v704 = vpop.f32.mrb[0].mxu0
    %v705 = vadd.f32 %v275, %v704
    %v706 = vpop.f32.mrb[0].mxu0
    %v707 = vadd.f32 %v271, %v706
    %v708 = vpop.f32.mrb[0].mxu0
    %v709 = vadd.f32 %v275, %v708
    %710 = vdwg.mxu0
    %711 = vmatprep.subr.bf16.mxu0 %v503
    %712 = vmatpush1.bf16.msra.mxu0 %v502
    %713 = vmatprep.subr.bf16.mxu0 %v505
    %714 = vmatpush1.bf16.msra.mxu0 %v504
    %715 = vmatprep.subr.bf16.mxu0 %v507
    %716 = vmatpush1.bf16.msra.mxu0 %v506
    %717 = vmatprep.subr.bf16.mxu0 %v509
    %718 = vmatpush1.bf16.msra.mxu0 %v508
    %719 = vmatprep.subr.bf16.mxu0 %v511
    %720 = vmatpush1.bf16.msra.mxu0 %v510
    %721 = vmatprep.subr.bf16.mxu0 %v513
    %722 = vmatpush1.bf16.msra.mxu0 %v512
    %723 = vmatprep.subr.bf16.mxu0 %v515
    %724 = vmatpush1.bf16.msra.mxu0 %v514
    %725 = vmatprep.subr.bf16.mxu0 %v517
    %726 = vmatpush1.bf16.msra.mxu0 %v516
    %727 = vmatprep.subr.bf16.mxu0 %v519
    %728 = vmatpush1.bf16.msra.mxu0 %v518
    %729 = vmatprep.subr.bf16.mxu0 %v521
    %730 = vmatpush1.bf16.msra.mxu0 %v520
    %731 = vmatprep.subr.bf16.mxu0 %v523
    %732 = vmatpush1.bf16.msra.mxu0 %v522
    %733 = vmatprep.subr.bf16.mxu0 %v525
    %734 = vmatpush1.bf16.msra.mxu0 %v524
    %735 = vmatprep.subr.bf16.mxu0 %v527
    %736 = vmatpush1.bf16.msra.mxu0 %v526
    %737 = vmatprep.subr.bf16.mxu0 %v529
    %738 = vmatpush1.bf16.msra.mxu0 %v528
    %739 = vmatprep.subr.bf16.mxu0 %v531
    %740 = vmatpush1.bf16.msra.mxu0 %v530
    %741 = vmatprep.subr.bf16.mxu0 %v533
    %742 = vmatpush1.bf16.msra.mxu0 %v532
    %743 = vmatprep.mubr.bf16.mxu0 %v173
    %744 = vmatmul.mubr.bf16.gmra.mrb[0].mxu0 %v172
    %v745 = vpop.f32.mrb[0].mxu0
    %v746 = vadd.f32 %v633, %v745
    %v747 = vpop.f32.mrb[0].mxu0
    %v748 = vadd.f32 %v635, %v747
    %v749 = vpop.f32.mrb[0].mxu0
    %v750 = vadd.f32 %v637, %v749
    %v751 = vpop.f32.mrb[0].mxu0
    %v752 = vadd.f32 %v639, %v751
    %753 = vmatprep.mubr.bf16.mxu0 %v177
    %754 = vmatmul.mubr.bf16.gmra.mrb[0].mxu0 %v176
    %v755 = vpop.f32.mrb[0].mxu0
    %v756 = vadd.f32 %v643, %v755
    %v757 = vpop.f32.mrb[0].mxu0
    %v758 = vadd.f32 %v645, %v757
    %v759 = vpop.f32.mrb[0].mxu0
    %v760 = vadd.f32 %v647, %v759
    %v761 = vpop.f32.mrb[0].mxu0
    %v762 = vadd.f32 %v649, %v761
    %763 = vmatprep.mubr.bf16.mxu0 %v181
    %764 = vmatmul.mubr.bf16.gmra.mrb[0].mxu0 %v180
    %v765 = vpop.f32.mrb[0].mxu0
    %v766 = vadd.f32 %v653, %v765
    %v767 = vpop.f32.mrb[0].mxu0
    %v768 = vadd.f32 %v655, %v767
    %v769 = vpop.f32.mrb[0].mxu0
    %v770 = vadd.f32 %v657, %v769
    %v771 = vpop.f32.mrb[0].mxu0
    %v772 = vadd.f32 %v659, %v771
    %773 = vmatprep.mubr.bf16.mxu0 %v185
    %774 = vmatmul.mubr.bf16.gmra.mrb[0].mxu0 %v184
    %v775 = vpop.f32.mrb[0].mxu0
    %v776 = vadd.f32 %v663, %v775
    %v777 = vpop.f32.mrb[0].mxu0
    %v778 = vadd.f32 %v665, %v777
    %v779 = vpop.f32.mrb[0].mxu0
    %v780 = vadd.f32 %v667, %v779
    %v781 = vpop.f32.mrb[0].mxu0
    %v782 = vadd.f32 %v669, %v781
    %783 = vmatprep.mubr.bf16.mxu0 %v189
    %784 = vmatmul.mubr.bf16.gmra.mrb[0].mxu0 %v188
    %v785 = vpop.f32.mrb[0].mxu0
    %v786 = vadd.f32 %v673, %v785
    %v787 = vpop.f32.mrb[0].mxu0
    %v788 = vadd.f32 %v675, %v787
    %v789 = vpop.f32.mrb[0].mxu0
    %v790 = vadd.f32 %v677, %v789
    %v791 = vpop.f32.mrb[0].mxu0
    %v792 = vadd.f32 %v679, %v791
    %793 = vmatprep.mubr.bf16.mxu0 %v193
    %794 = vmatmul.mubr.bf16.gmra.mrb[0].mxu0 %v192
    %v795 = vpop.f32.mrb[0].mxu0
    %v796 = vadd.f32 %v683, %v795
    %v797 = vpop.f32.mrb[0].mxu0
    %v798 = vadd.f32 %v685, %v797
    %v799 = vpop.f32.mrb[0].mxu0
    %v800 = vadd.f32 %v687, %v799
    %v801 = vpop.f32.mrb[0].mxu0
    %v802 = vadd.f32 %v689, %v801
    %803 = vmatprep.mubr.bf16.mxu0 %v197
    %804 = vmatmul.mubr.bf16.gmra.mrb[0].mxu0 %v196
    %v805 = vpop.f32.mrb[0].mxu0
    %v806 = vadd.f32 %v693, %v805
    %v807 = vpop.f32.mrb[0].mxu0
    %v808 = vadd.f32 %v695, %v807
    %v809 = vpop.f32.mrb[0].mxu0
    %v810 = vadd.f32 %v697, %v809
    %v811 = vpop.f32.mrb[0].mxu0
    %v812 = vadd.f32 %v699, %v811
    %813 = vmatprep.mubr.bf16.mxu0 %v201
    %814 = vmatmul.mubr.bf16.gmra.mrb[0].mxu0 %v200
    %v815 = vpop.f32.mrb[0].mxu0
    %v816 = vadd.f32 %v703, %v815
    %v817 = vpop.f32.mrb[0].mxu0
    %v818 = vadd.f32 %v705, %v817
    %v819 = vpop.f32.mrb[0].mxu0
    %v820 = vadd.f32 %v707, %v819
    %v821 = vpop.f32.mrb[0].mxu0
    %v822 = vadd.f32 %v709, %v821
    %823 = vdwg.mxu0
    %v824 = vmul.f32 %v746, 0.5
    %v825 = vmul.f32 %v748, 0.5
    %v826 = vmul.f32 %v750, 0.5
    %v827 = vmul.f32 %v752, 0.5
    %v828 = vmul.f32 %v756, 0.5
    %v829 = vmul.f32 %v758, 0.5
    %v830 = vmul.f32 %v760, 0.5
    %v831 = vmul.f32 %v762, 0.5
    %v832 = vmul.f32 %v766, 0.5
    %v833 = vmul.f32 %v768, 0.5
    %v834 = vmul.f32 %v770, 0.5
    %v835 = vmul.f32 %v772, 0.5
    %v836 = vmul.f32 %v776, 0.5
    %v837 = vmul.f32 %v778, 0.5
    %v838 = vmul.f32 %v780, 0.5
    %v839 = vmul.f32 %v782, 0.5
    %v840 = vmul.f32 %v786, 0.5
    %v841 = vmul.f32 %v788, 0.5
    %v842 = vmul.f32 %v790, 0.5
    %v843 = vmul.f32 %v792, 0.5
    %v844 = vmul.f32 %v796, 0.5
    %v845 = vmul.f32 %v798, 0.5
    %v846 = vmul.f32 %v800, 0.5
    %v847 = vmul.f32 %v802, 0.5
    %v848 = vmul.f32 %v806, 0.5
    %v849 = vmul.f32 %v808, 0.5
    %v850 = vmul.f32 %v810, 0.5
    %v851 = vmul.f32 %v812, 0.5
    %v852 = vmul.f32 %v816, 0.5
    %v853 = vmul.f32 %v818, 0.5
    %v854 = vmul.f32 %v820, 0.5
    %v855 = vmul.f32 %v822, 0.5
    %v856 = vmul.f32 %v746, 0.044715
    %v857 = vmul.f32 %v748, 0.044715
    %v858 = vmul.f32 %v750, 0.044715
    %v859 = vmul.f32 %v752, 0.044715
    %v860 = vmul.f32 %v756, 0.044715
    %v861 = vmul.f32 %v758, 0.044715
    %v862 = vmul.f32 %v760, 0.044715
    %v863 = vmul.f32 %v762, 0.044715
    %v864 = vmul.f32 %v766, 0.044715
    %v865 = vmul.f32 %v768, 0.044715
    %v866 = vmul.f32 %v770, 0.044715
    %v867 = vmul.f32 %v772, 0.044715
    %v868 = vmul.f32 %v776, 0.044715
    %v869 = vmul.f32 %v778, 0.044715
    %v870 = vmul.f32 %v780, 0.044715
    %v871 = vmul.f32 %v782, 0.044715
    %v872 = vmul.f32 %v786, 0.044715
    %v873 = vmul.f32 %v788, 0.044715
    %v874 = vmul.f32 %v790, 0.044715
    %v875 = vmul.f32 %v792, 0.044715
    %v876 = vmul.f32 %v796, 0.044715
    %v877 = vmul.f32 %v798, 0.044715
    %v878 = vmul.f32 %v800, 0.044715
    %v879 = vmul.f32 %v802, 0.044715
    %v880 = vmul.f32 %v806, 0.044715
    %v881 = vmul.f32 %v808, 0.044715
    %v882 = vmul.f32 %v810, 0.044715
    %v883 = vmul.f32 %v812, 0.044715
    %v884 = vmul.f32 %v816, 0.044715
    %v885 = vmul.f32 %v818, 0.044715
    %v886 = vmul.f32 %v820, 0.044715
    %v887 = vmul.f32 %v822, 0.044715
    %v888 = vmul.f32 %v856, %v746
    %v889 = vmul.f32 %v857, %v748
    %v890 = vmul.f32 %v858, %v750
    %v891 = vmul.f32 %v859, %v752
    %v892 = vmul.f32 %v860, %v756
    %v893 = vmul.f32 %v861, %v758
    %v894 = vmul.f32 %v862, %v760
    %v895 = vmul.f32 %v863, %v762
    %v896 = vmul.f32 %v864, %v766
    %v897 = vmul.f32 %v865, %v768
    %v898 = vmul.f32 %v866, %v770
    %v899 = vmul.f32 %v867, %v772
    %v900 = vmul.f32 %v868, %v776
    %v901 = vmul.f32 %v869, %v778
    %v902 = vmul.f32 %v870, %v780
    %v903 = vmul.f32 %v871, %v782
    %v904 = vmul.f32 %v872, %v786
    %v905 = vmul.f32 %v873, %v788
    %v906 = vmul.f32 %v874, %v790
    %v907 = vmul.f32 %v875, %v792
    %v908 = vmul.f32 %v876, %v796
    %v909 = vmul.f32 %v877, %v798
    %v910 = vmul.f32 %v878, %v800
    %v911 = vmul.f32 %v879, %v802
    %v912 = vmul.f32 %v880, %v806
    %v913 = vmul.f32 %v881, %v808
    %v914 = vmul.f32 %v882, %v810
    %v915 = vmul.f32 %v883, %v812
    %v916 = vmul.f32 %v884, %v816
    %v917 = vmul.f32 %v885, %v818
    %v918 = vmul.f32 %v886, %v820
    %v919 = vmul.f32 %v887, %v822
    %v920 = vmul.f32 %v888, %v746
    %v921 = vmul.f32 %v889, %v748
    %v922 = vmul.f32 %v890, %v750
    %v923 = vmul.f32 %v891, %v752
    %v924 = vmul.f32 %v892, %v756
    %v925 = vmul.f32 %v893, %v758
    %v926 = vmul.f32 %v894, %v760
    %v927 = vmul.f32 %v895, %v762
    %v928 = vmul.f32 %v896, %v766
    %v929 = vmul.f32 %v897, %v768
    %v930 = vmul.f32 %v898, %v770
    %v931 = vmul.f32 %v899, %v772
    %v932 = vmul.f32 %v900, %v776
    %v933 = vmul.f32 %v901, %v778
    %v934 = vmul.f32 %v902, %v780
    %v935 = vmul.f32 %v903, %v782
    %v936 = vmul.f32 %v904, %v786
    %v937 = vmul.f32 %v905, %v788
    %v938 = vmul.f32 %v906, %v790
    %v939 = vmul.f32 %v907, %v792
    %v940 = vmul.f32 %v908, %v796
    %v941 = vmul.f32 %v909, %v798
    %v942 = vmul.f32 %v910, %v800
    %v943 = vmul.f32 %v911, %v802
    %v944 = vmul.f32 %v912, %v806
    %v945 = vmul.f32 %v913, %v808
    %v946 = vmul.f32 %v914, %v810
    %v947 = vmul.f32 %v915, %v812
    %v948 = vmul.f32 %v916, %v816
    %v949 = vmul.f32 %v917, %v818
    %v950 = vmul.f32 %v918, %v820
    %v951 = vmul.f32 %v919, %v822
    %v952 = vadd.f32 %v746, %v920
    %v953 = vadd.f32 %v748, %v921
    %v954 = vadd.f32 %v750, %v922
    %v955 = vadd.f32 %v752, %v923
    %v956 = vadd.f32 %v756, %v924
    %v957 = vadd.f32 %v758, %v925
    %v958 = vadd.f32 %v760, %v926
    %v959 = vadd.f32 %v762, %v927
    %v960 = vadd.f32 %v766, %v928
    %v961 = vadd.f32 %v768, %v929
    %v962 = vadd.f32 %v770, %v930
    %v963 = vadd.f32 %v772, %v931
    %v964 = vadd.f32 %v776, %v932
    %v965 = vadd.f32 %v778, %v933
    %v966 = vadd.f32 %v780, %v934
    %v967 = vadd.f32 %v782, %v935
    %v968 = vadd.f32 %v786, %v936
    %v969 = vadd.f32 %v788, %v937
    %v970 = vadd.f32 %v790, %v938
    %v971 = vadd.f32 %v792, %v939
    %v972 = vadd.f32 %v796, %v940
    %v973 = vadd.f32 %v798, %v941
    %v974 = vadd.f32 %v800, %v942
    %v975 = vadd.f32 %v802, %v943
    %v976 = vadd.f32 %v806, %v944
    %v977 = vadd.f32 %v808, %v945
    %v978 = vadd.f32 %v810, %v946
    %v979 = vadd.f32 %v812, %v947
    %v980 = vadd.f32 %v816, %v948
    %v981 = vadd.f32 %v818, %v949
    %v982 = vadd.f32 %v820, %v950
    %v983 = vadd.f32 %v822, %v951
    %v984 = vmul.f32 %v952, 0.7978846
    %v985 = vmul.f32 %v953, 0.7978846
    %v986 = vmul.f32 %v954, 0.7978846
    %v987 = vmul.f32 %v955, 0.7978846
    %v988 = vmul.f32 %v956, 0.7978846
    %v989 = vmul.f32 %v957, 0.7978846
    %v990 = vmul.f32 %v958, 0.7978846
    %v991 = vmul.f32 %v959, 0.7978846
    %v992 = vmul.f32 %v960, 0.7978846
    %v993 = vmul.f32 %v961, 0.7978846
    %v994 = vmul.f32 %v962, 0.7978846
    %v995 = vmul.f32 %v963, 0.7978846
    %v996 = vmul.f32 %v964, 0.7978846
    %v997 = vmul.f32 %v965, 0.7978846
    %v998 = vmul.f32 %v966, 0.7978846
    %v999 = vmul.f32 %v967, 0.7978846
    %v1000 = vmul.f32 %v968, 0.7978846
    %v1001 = vmul.f32 %v969, 0.7978846
    %v1002 = vmul.f32 %v970, 0.7978846
    %v1003 = vmul.f32 %v971, 0.7978846
    %v1004 = vmul.f32 %v972, 0.7978846
    %v1005 = vmul.f32 %v973, 0.7978846
    %v1006 = vmul.f32 %v974, 0.7978846
    %v1007 = vmul.f32 %v975, 0.7978846
    %v1008 = vmul.f32 %v976, 0.7978846
    %v1009 = vmul.f32 %v977, 0.7978846
    %v1010 = vmul.f32 %v978, 0.7978846
    %v1011 = vmul.f32 %v979, 0.7978846
    %v1012 = vmul.f32 %v980, 0.7978846
    %v1013 = vmul.f32 %v981, 0.7978846
    %v1014 = vmul.f32 %v982, 0.7978846
    %v1015 = vmul.f32 %v983, 0.7978846
    %v1016 = vtanh.pop %v984
    %v1017 = vtanh.pop %v985
    %v1018 = vtanh.pop %v986
    %v1019 = vtanh.pop %v987
    %v1020 = vtanh.pop %v988
    %v1021 = vtanh.pop %v989
    %v1022 = vtanh.pop %v990
    %v1023 = vtanh.pop %v991
    %v1024 = vtanh.pop %v992
    %v1025 = vtanh.pop %v993
    %v1026 = vtanh.pop %v994
    %v1027 = vtanh.pop %v995
    %v1028 = vtanh.pop %v996
    %v1029 = vtanh.pop %v997
    %v1030 = vtanh.pop %v998
    %v1031 = vtanh.pop %v999
    %v1032 = vtanh.pop %v1000
    %v1033 = vtanh.pop %v1001
    %v1034 = vtanh.pop %v1002
    %v1035 = vtanh.pop %v1003
    %v1036 = vtanh.pop %v1004
    %v1037 = vtanh.pop %v1005
    %v1038 = vtanh.pop %v1006
    %v1039 = vtanh.pop %v1007
    %v1040 = vtanh.pop %v1008
    %v1041 = vtanh.pop %v1009
    %v1042 = vtanh.pop %v1010
    %v1043 = vtanh.pop %v1011
    %v1044 = vtanh.pop %v1012
    %v1045 = vtanh.pop %v1013
    %v1046 = vtanh.pop %v1014
    %v1047 = vtanh.pop %v1015
    %v1048 = vadd.f32 %v1016, 1.0
    %v1049 = vadd.f32 %v1017, 1.0
    %v1050 = vadd.f32 %v1018, 1.0
    %v1051 = vadd.f32 %v1019, 1.0
    %v1052 = vadd.f32 %v1020, 1.0
    %v1053 = vadd.f32 %v1021, 1.0
    %v1054 = vadd.f32 %v1022, 1.0
    %v1055 = vadd.f32 %v1023, 1.0
    %v1056 = vadd.f32 %v1024, 1.0
    %v1057 = vadd.f32 %v1025, 1.0
    %v1058 = vadd.f32 %v1026, 1.0
    %v1059 = vadd.f32 %v1027, 1.0
    %v1060 = vadd.f32 %v1028, 1.0
    %v1061 = vadd.f32 %v1029, 1.0
    %v1062 = vadd.f32 %v1030, 1.0
    %v1063 = vadd.f32 %v1031, 1.0
    %v1064 = vadd.f32 %v1032, 1.0
    %v1065 = vadd.f32 %v1033, 1.0
    %v1066 = vadd.f32 %v1034, 1.0
    %v1067 = vadd.f32 %v1035, 1.0
    %v1068 = vadd.f32 %v1036, 1.0
    %v1069 = vadd.f32 %v1037, 1.0
    %v1070 = vadd.f32 %v1038, 1.0
    %v1071 = vadd.f32 %v1039, 1.0
    %v1072 = vadd.f32 %v1040, 1.0
    %v1073 = vadd.f32 %v1041, 1.0
    %v1074 = vadd.f32 %v1042, 1.0
    %v1075 = vadd.f32 %v1043, 1.0
    %v1076 = vadd.f32 %v1044, 1.0
    %v1077 = vadd.f32 %v1045, 1.0
    %v1078 = vadd.f32 %v1046, 1.0
    %v1079 = vadd.f32 %v1047, 1.0
    %v1080 = vmul.f32 %v824, %v1048
    %v1081 = vmul.f32 %v825, %v1049
    %v1082 = vmul.f32 %v826, %v1050
    %v1083 = vmul.f32 %v827, %v1051
    %v1084 = vmul.f32 %v828, %v1052
    %v1085 = vmul.f32 %v829, %v1053
    %v1086 = vmul.f32 %v830, %v1054
    %v1087 = vmul.f32 %v831, %v1055
    %v1088 = vmul.f32 %v832, %v1056
    %v1089 = vmul.f32 %v833, %v1057
    %v1090 = vmul.f32 %v834, %v1058
    %v1091 = vmul.f32 %v835, %v1059
    %v1092 = vmul.f32 %v836, %v1060
    %v1093 = vmul.f32 %v837, %v1061
    %v1094 = vmul.f32 %v838, %v1062
    %v1095 = vmul.f32 %v839, %v1063
    %v1096 = vmul.f32 %v840, %v1064
    %v1097 = vmul.f32 %v841, %v1065
    %v1098 = vmul.f32 %v842, %v1066
    %v1099 = vmul.f32 %v843, %v1067
    %v1100 = vmul.f32 %v844, %v1068
    %v1101 = vmul.f32 %v845, %v1069
    %v1102 = vmul.f32 %v846, %v1070
    %v1103 = vmul.f32 %v847, %v1071
    %v1104 = vmul.f32 %v848, %v1072
    %v1105 = vmul.f32 %v849, %v1073
    %v1106 = vmul.f32 %v850, %v1074
    %v1107 = vmul.f32 %v851, %v1075
    %v1108 = vmul.f32 %v852, %v1076
    %v1109 = vmul.f32 %v853, %v1077
    %v1110 = vmul.f32 %v854, %v1078
    %v1111 = vmul.f32 %v855, %v1079
    %v1112 = vpack.c.bf16 %v1082, %v1080
    %v1113 = vpack.c.bf16 %v1083, %v1081
    %v1114 = vpack.c.bf16 %v1086, %v1084
    %v1115 = vpack.c.bf16 %v1087, %v1085
    %v1116 = vpack.c.bf16 %v1090, %v1088
    %v1117 = vpack.c.bf16 %v1091, %v1089
    %v1118 = vpack.c.bf16 %v1094, %v1092
    %v1119 = vpack.c.bf16 %v1095, %v1093
    %v1120 = vpack.c.bf16 %v1098, %v1096
    %v1121 = vpack.c.bf16 %v1099, %v1097
    %v1122 = vpack.c.bf16 %v1102, %v1100
    %v1123 = vpack.c.bf16 %v1103, %v1101
    %v1124 = vpack.c.bf16 %v1106, %v1104
    %v1125 = vpack.c.bf16 %v1107, %v1105
    %v1126 = vpack.c.bf16 %v1110, %v1108
    %v1127 = vpack.c.bf16 %v1111, %v1109
    %v1128 = vld [vmem:[%s4] sm:$0xf]
    %v1129 = vld [vmem:[%s4 + $0x4] sm:$0xf]
    %v1130 = vld [vmem:[%s4 + $0x8] sm:$0xf]
    %v1131 = vld [vmem:[%s4 + $0xc] sm:$0xf]
    %v1132 = vld [vmem:[%s4 + $0x10] sm:$0xf]
    %v1133 = vld [vmem:[%s4 + $0x14] sm:$0xf]
    %v1134 = vld [vmem:[%s4 + $0x18] sm:$0xf]
    %v1135 = vld [vmem:[%s4 + $0x1c] sm:$0xf]
    %v1136 = vld [vmem:[%s4 + $0x20] sm:$0xf]
    %v1137 = vld [vmem:[%s4 + $0x24] sm:$0xf]
    %v1138 = vld [vmem:[%s4 + $0x28] sm:$0xf]
    %v1139 = vld [vmem:[%s4 + $0x2c] sm:$0xf]
    %v1140 = vld [vmem:[%s4 + $0x30] sm:$0xf]
    %v1141 = vld [vmem:[%s4 + $0x34] sm:$0xf]
    %v1142 = vld [vmem:[%s4 + $0x38] sm:$0xf]
    %v1143 = vld [vmem:[%s4 + $0x3c] sm:$0xf]
    %v1144 = vld [vmem:[%s4 + $0x40] sm:$0xf]
    %v1145 = vld [vmem:[%s4 + $0x44] sm:$0xf]
    %v1146 = vld [vmem:[%s4 + $0x48] sm:$0xf]
    %v1147 = vld [vmem:[%s4 + $0x4c] sm:$0xf]
    %v1148 = vld [vmem:[%s4 + $0x50] sm:$0xf]
    %v1149 = vld [vmem:[%s4 + $0x54] sm:$0xf]
    %v1150 = vld [vmem:[%s4 + $0x58] sm:$0xf]
    %v1151 = vld [vmem:[%s4 + $0x5c] sm:$0xf]
    %v1152 = vld [vmem:[%s4 + $0x60] sm:$0xf]
    %v1153 = vld [vmem:[%s4 + $0x64] sm:$0xf]
    %v1154 = vld [vmem:[%s4 + $0x68] sm:$0xf]
    %v1155 = vld [vmem:[%s4 + $0x6c] sm:$0xf]
    %v1156 = vld [vmem:[%s4 + $0x70] sm:$0xf]
    %v1157 = vld [vmem:[%s4 + $0x74] sm:$0xf]
    %v1158 = vld [vmem:[%s4 + $0x78] sm:$0xf]
    %v1159 = vld [vmem:[%s4 + $0x7c] sm:$0xf]
    %v1160 = vld [vmem:[%s5] sm:$0x1]
    %v1162 = vlaneseq
    %v1163 = vshrl.u32 %v1162, 7
    %v1164 = vsub.s32 0, %v1163
    %v1165 = vrot.slane %v1160, %v1164
    %v1199 = vunpack.c.l.b16 %v1128
    %v1200 = vunpack.c.l.b16 %v1129
    %v1201 = vunpack.c.l.b16 %v1130
    %v1202 = vunpack.c.l.b16 %v1131
    %v1203 = vunpack.c.l.b16 %v1132
    %v1204 = vunpack.c.l.b16 %v1133
    %v1205 = vunpack.c.l.b16 %v1134
    %v1206 = vunpack.c.l.b16 %v1135
    %v1207 = vunpack.c.l.b16 %v1136
    %v1208 = vunpack.c.l.b16 %v1137
    %v1209 = vunpack.c.l.b16 %v1138
    %v1210 = vunpack.c.l.b16 %v1139
    %v1211 = vunpack.c.l.b16 %v1140
    %v1212 = vunpack.c.l.b16 %v1141
    %v1213 = vunpack.c.l.b16 %v1142
    %v1214 = vunpack.c.l.b16 %v1143
    %v1215 = vunpack.c.l.b16 %v1144
    %v1216 = vunpack.c.l.b16 %v1145
    %v1217 = vunpack.c.l.b16 %v1146
    %v1218 = vunpack.c.l.b16 %v1147
    %v1219 = vunpack.c.l.b16 %v1148
    %v1220 = vunpack.c.l.b16 %v1149
    %v1221 = vunpack.c.l.b16 %v1150
    %v1222 = vunpack.c.l.b16 %v1151
    %v1223 = vunpack.c.l.b16 %v1152
    %v1224 = vunpack.c.l.b16 %v1153
    %v1225 = vunpack.c.l.b16 %v1154
    %v1226 = vunpack.c.l.b16 %v1155
    %v1227 = vunpack.c.l.b16 %v1156
    %v1228 = vunpack.c.l.b16 %v1157
    %v1229 = vunpack.c.l.b16 %v1158
    %v1230 = vunpack.c.l.b16 %v1159
    %v1231 = vpack.c.b16 %v1200, %v1199
    %v1232 = vpack.c.b16 %v1202, %v1201
    %v1233 = vpack.c.b16 %v1204, %v1203
    %v1234 = vpack.c.b16 %v1206, %v1205
    %v1235 = vpack.c.b16 %v1208, %v1207
    %v1236 = vpack.c.b16 %v1210, %v1209
    %v1237 = vpack.c.b16 %v1212, %v1211
    %v1238 = vpack.c.b16 %v1214, %v1213
    %v1239 = vpack.c.b16 %v1216, %v1215
    %v1240 = vpack.c.b16 %v1218, %v1217
    %v1241 = vpack.c.b16 %v1220, %v1219
    %v1242 = vpack.c.b16 %v1222, %v1221
    %v1243 = vpack.c.b16 %v1224, %v1223
    %v1244 = vpack.c.b16 %v1226, %v1225
    %v1245 = vpack.c.b16 %v1228, %v1227
    %v1246 = vpack.c.b16 %v1230, %v1229
    %1263 = vmatprep.subr.bf16.mxu0 0
    %1264 = vmatpush1.bf16.msra.mxu0 %v1231
    %1265 = vmatprep.subr.bf16.mxu0 0
    %1266 = vmatpush1.bf16.msra.mxu0 %v1232
    %1267 = vmatprep.subr.bf16.mxu0 0
    %1268 = vmatpush1.bf16.msra.mxu0 %v1233
    %1269 = vmatprep.subr.bf16.mxu0 0
    %1270 = vmatpush1.bf16.msra.mxu0 %v1234
    %1271 = vmatprep.subr.bf16.mxu0 0
    %1272 = vmatpush1.bf16.msra.mxu0 %v1235
    %1273 = vmatprep.subr.bf16.mxu0 0
    %1274 = vmatpush1.bf16.msra.mxu0 %v1236
    %1275 = vmatprep.subr.bf16.mxu0 0
    %1276 = vmatpush1.bf16.msra.mxu0 %v1237
    %1277 = vmatprep.subr.bf16.mxu0 0
    %1278 = vmatpush1.bf16.msra.mxu0 %v1238
    %1279 = vmatprep.subr.bf16.mxu0 0
    %1280 = vmatpush1.bf16.msra.mxu0 %v1239
    %1281 = vmatprep.subr.bf16.mxu0 0
    %1282 = vmatpush1.bf16.msra.mxu0 %v1240
    %1283 = vmatprep.subr.bf16.mxu0 0
    %1284 = vmatpush1.bf16.msra.mxu0 %v1241
    %1285 = vmatprep.subr.bf16.mxu0 0
    %1286 = vmatpush1.bf16.msra.mxu0 %v1242
    %1287 = vmatprep.subr.bf16.mxu0 0
    %1288 = vmatpush1.bf16.msra.mxu0 %v1243
    %1289 = vmatprep.subr.bf16.mxu0 0
    %1290 = vmatpush1.bf16.msra.mxu0 %v1244
    %1291 = vmatprep.subr.bf16.mxu0 0
    %1292 = vmatpush1.bf16.msra.mxu0 %v1245
    %1293 = vmatprep.subr.bf16.mxu0 0
    %1294 = vmatpush1.bf16.msra.mxu0 %v1246
    %1295 = vmatprep.mubr.bf16.mxu0 %v1113
    %1296 = vmatmul.mubr.bf16.gmra.mrb[0].mxu0 %v1112
    %v1297 = vpop.f32.mrb[0].mxu0
    %v1298 = vadd.f32 %v1165, %v1297
    %v1299 = vpop.f32.mrb[0].mxu0
    %v1300 = vpop.f32.mrb[0].mxu0
    %v1301 = vadd.f32 %v1165, %v1300
    %v1302 = vpop.f32.mrb[0].mxu0
    %1303 = vmatprep.mubr.bf16.mxu0 %v1115
    %1304 = vmatmul.mubr.bf16.gmra.mrb[0].mxu0 %v1114
    %v1305 = vpop.f32.mrb[0].mxu0
    %v1306 = vadd.f32 %v1165, %v1305
    %v1307 = vpop.f32.mrb[0].mxu0
    %v1308 = vpop.f32.mrb[0].mxu0
    %v1309 = vadd.f32 %v1165, %v1308
    %v1310 = vpop.f32.mrb[0].mxu0
    %1311 = vmatprep.mubr.bf16.mxu0 %v1117
    %1312 = vmatmul.mubr.bf16.gmra.mrb[0].mxu0 %v1116
    %v1313 = vpop.f32.mrb[0].mxu0
    %v1314 = vadd.f32 %v1165, %v1313
    %v1315 = vpop.f32.mrb[0].mxu0
    %v1316 = vpop.f32.mrb[0].mxu0
    %v1317 = vadd.f32 %v1165, %v1316
    %v1318 = vpop.f32.mrb[0].mxu0
    %1319 = vmatprep.mubr.bf16.mxu0 %v1119
    %1320 = vmatmul.mubr.bf16.gmra.mrb[0].mxu0 %v1118
    %v1321 = vpop.f32.mrb[0].mxu0
    %v1322 = vadd.f32 %v1165, %v1321
    %v1323 = vpop.f32.mrb[0].mxu0
    %v1324 = vpop.f32.mrb[0].mxu0
    %v1325 = vadd.f32 %v1165, %v1324
    %v1326 = vpop.f32.mrb[0].mxu0
    %1327 = vmatprep.mubr.bf16.mxu0 %v1121
    %1328 = vmatmul.mubr.bf16.gmra.mrb[0].mxu0 %v1120
    %v1329 = vpop.f32.mrb[0].mxu0
    %v1330 = vadd.f32 %v1165, %v1329
    %v1331 = vpop.f32.mrb[0].mxu0
    %v1332 = vpop.f32.mrb[0].mxu0
    %v1333 = vadd.f32 %v1165, %v1332
    %v1334 = vpop.f32.mrb[0].mxu0
    %1335 = vmatprep.mubr.bf16.mxu0 %v1123
    %1336 = vmatmul.mubr.bf16.gmra.mrb[0].mxu0 %v1122
    %v1337 = vpop.f32.mrb[0].mxu0
    %v1338 = vadd.f32 %v1165, %v1337
    %v1339 = vpop.f32.mrb[0].mxu0
    %v1340 = vpop.f32.mrb[0].mxu0
    %v1341 = vadd.f32 %v1165, %v1340
    %v1342 = vpop.f32.mrb[0].mxu0
    %1343 = vmatprep.mubr.bf16.mxu0 %v1125
    %1344 = vmatmul.mubr.bf16.gmra.mrb[0].mxu0 %v1124
    %v1345 = vpop.f32.mrb[0].mxu0
    %v1346 = vadd.f32 %v1165, %v1345
    %v1347 = vpop.f32.mrb[0].mxu0
    %v1348 = vpop.f32.mrb[0].mxu0
    %v1349 = vadd.f32 %v1165, %v1348
    %v1350 = vpop.f32.mrb[0].mxu0
    %1351 = vmatprep.mubr.bf16.mxu0 %v1127
    %1352 = vmatmul.mubr.bf16.gmra.mrb[0].mxu0 %v1126
    %v1353 = vpop.f32.mrb[0].mxu0
    %v1354 = vadd.f32 %v1165, %v1353
    %v1355 = vpop.f32.mrb[0].mxu0
    %v1356 = vpop.f32.mrb[0].mxu0
    %v1357 = vadd.f32 %v1165, %v1356
    %v1358 = vpop.f32.mrb[0].mxu0
    %1359 = vdwg.mxu0
    %v1360 = vmul.f32 %v1298, 0.5
    %v1361 = vmul.f32 %v1301, 0.5
    %v1362 = vmul.f32 %v1306, 0.5
    %v1363 = vmul.f32 %v1309, 0.5
    %v1364 = vmul.f32 %v1314, 0.5
    %v1365 = vmul.f32 %v1317, 0.5
    %v1366 = vmul.f32 %v1322, 0.5
    %v1367 = vmul.f32 %v1325, 0.5
    %v1368 = vmul.f32 %v1330, 0.5
    %v1369 = vmul.f32 %v1333, 0.5
    %v1370 = vmul.f32 %v1338, 0.5
    %v1371 = vmul.f32 %v1341, 0.5
    %v1372 = vmul.f32 %v1346, 0.5
    %v1373 = vmul.f32 %v1349, 0.5
    %v1374 = vmul.f32 %v1354, 0.5
    %v1375 = vmul.f32 %v1357, 0.5
    %v1376 = vmul.f32 %v1298, 0.044715
    %v1377 = vmul.f32 %v1301, 0.044715
    %v1378 = vmul.f32 %v1306, 0.044715
    %v1379 = vmul.f32 %v1309, 0.044715
    %v1380 = vmul.f32 %v1314, 0.044715
    %v1381 = vmul.f32 %v1317, 0.044715
    %v1382 = vmul.f32 %v1322, 0.044715
    %v1383 = vmul.f32 %v1325, 0.044715
    %v1384 = vmul.f32 %v1330, 0.044715
    %v1385 = vmul.f32 %v1333, 0.044715
    %v1386 = vmul.f32 %v1338, 0.044715
    %v1387 = vmul.f32 %v1341, 0.044715
    %v1388 = vmul.f32 %v1346, 0.044715
    %v1389 = vmul.f32 %v1349, 0.044715
    %v1390 = vmul.f32 %v1354, 0.044715
    %v1391 = vmul.f32 %v1357, 0.044715
    %v1392 = vmul.f32 %v1376, %v1298
    %v1393 = vmul.f32 %v1377, %v1301
    %v1394 = vmul.f32 %v1378, %v1306
    %v1395 = vmul.f32 %v1379, %v1309
    %v1396 = vmul.f32 %v1380, %v1314
    %v1397 = vmul.f32 %v1381, %v1317
    %v1398 = vmul.f32 %v1382, %v1322
    %v1399 = vmul.f32 %v1383, %v1325
    %v1400 = vmul.f32 %v1384, %v1330
    %v1401 = vmul.f32 %v1385, %v1333
    %v1402 = vmul.f32 %v1386, %v1338
    %v1403 = vmul.f32 %v1387, %v1341
    %v1404 = vmul.f32 %v1388, %v1346
    %v1405 = vmul.f32 %v1389, %v1349
    %v1406 = vmul.f32 %v1390, %v1354
    %v1407 = vmul.f32 %v1391, %v1357
    %v1408 = vmul.f32 %v1392, %v1298
    %v1409 = vmul.f32 %v1393, %v1301
    %v1410 = vmul.f32 %v1394, %v1306
    %v1411 = vmul.f32 %v1395, %v1309
    %v1412 = vmul.f32 %v1396, %v1314
    %v1413 = vmul.f32 %v1397, %v1317
    %v1414 = vmul.f32 %v1398, %v1322
    %v1415 = vmul.f32 %v1399, %v1325
    %v1416 = vmul.f32 %v1400, %v1330
    %v1417 = vmul.f32 %v1401, %v1333
    %v1418 = vmul.f32 %v1402, %v1338
    %v1419 = vmul.f32 %v1403, %v1341
    %v1420 = vmul.f32 %v1404, %v1346
    %v1421 = vmul.f32 %v1405, %v1349
    %v1422 = vmul.f32 %v1406, %v1354
    %v1423 = vmul.f32 %v1407, %v1357
    %v1424 = vadd.f32 %v1298, %v1408
    %v1425 = vadd.f32 %v1301, %v1409
    %v1426 = vadd.f32 %v1306, %v1410
    %v1427 = vadd.f32 %v1309, %v1411
    %v1428 = vadd.f32 %v1314, %v1412
    %v1429 = vadd.f32 %v1317, %v1413
    %v1430 = vadd.f32 %v1322, %v1414
    %v1431 = vadd.f32 %v1325, %v1415
    %v1432 = vadd.f32 %v1330, %v1416
    %v1433 = vadd.f32 %v1333, %v1417
    %v1434 = vadd.f32 %v1338, %v1418
    %v1435 = vadd.f32 %v1341, %v1419
    %v1436 = vadd.f32 %v1346, %v1420
    %v1437 = vadd.f32 %v1349, %v1421
    %v1438 = vadd.f32 %v1354, %v1422
    %v1439 = vadd.f32 %v1357, %v1423
    %v1440 = vmul.f32 %v1424, 0.7978846
    %v1441 = vmul.f32 %v1425, 0.7978846
    %v1442 = vmul.f32 %v1426, 0.7978846
    %v1443 = vmul.f32 %v1427, 0.7978846
    %v1444 = vmul.f32 %v1428, 0.7978846
    %v1445 = vmul.f32 %v1429, 0.7978846
    %v1446 = vmul.f32 %v1430, 0.7978846
    %v1447 = vmul.f32 %v1431, 0.7978846
    %v1448 = vmul.f32 %v1432, 0.7978846
    %v1449 = vmul.f32 %v1433, 0.7978846
    %v1450 = vmul.f32 %v1434, 0.7978846
    %v1451 = vmul.f32 %v1435, 0.7978846
    %v1452 = vmul.f32 %v1436, 0.7978846
    %v1453 = vmul.f32 %v1437, 0.7978846
    %v1454 = vmul.f32 %v1438, 0.7978846
    %v1455 = vmul.f32 %v1439, 0.7978846
    %v1456 = vtanh.pop %v1440
    %v1457 = vtanh.pop %v1441
    %v1458 = vtanh.pop %v1442
    %v1459 = vtanh.pop %v1443
    %v1460 = vtanh.pop %v1444
    %v1461 = vtanh.pop %v1445
    %v1462 = vtanh.pop %v1446
    %v1463 = vtanh.pop %v1447
    %v1464 = vtanh.pop %v1448
    %v1465 = vtanh.pop %v1449
    %v1466 = vtanh.pop %v1450
    %v1467 = vtanh.pop %v1451
    %v1468 = vtanh.pop %v1452
    %v1469 = vtanh.pop %v1453
    %v1470 = vtanh.pop %v1454
    %v1471 = vtanh.pop %v1455
    %v1472 = vadd.f32 %v1456, 1.0
    %v1473 = vadd.f32 %v1457, 1.0
    %v1474 = vadd.f32 %v1458, 1.0
    %v1475 = vadd.f32 %v1459, 1.0
    %v1476 = vadd.f32 %v1460, 1.0
    %v1477 = vadd.f32 %v1461, 1.0
    %v1478 = vadd.f32 %v1462, 1.0
    %v1479 = vadd.f32 %v1463, 1.0
    %v1480 = vadd.f32 %v1464, 1.0
    %v1481 = vadd.f32 %v1465, 1.0
    %v1482 = vadd.f32 %v1466, 1.0
    %v1483 = vadd.f32 %v1467, 1.0
    %v1484 = vadd.f32 %v1468, 1.0
    %v1485 = vadd.f32 %v1469, 1.0
    %v1486 = vadd.f32 %v1470, 1.0
    %v1487 = vadd.f32 %v1471, 1.0
    %v1488 = vmul.f32 %v1360, %v1472
    %v1489 = vmul.f32 %v1361, %v1473
    %v1490 = vmul.f32 %v1362, %v1474
    %v1491 = vmul.f32 %v1363, %v1475
    %v1492 = vmul.f32 %v1364, %v1476
    %v1493 = vmul.f32 %v1365, %v1477
    %v1494 = vmul.f32 %v1366, %v1478
    %v1495 = vmul.f32 %v1367, %v1479
    %v1496 = vmul.f32 %v1368, %v1480
    %v1497 = vmul.f32 %v1369, %v1481
    %v1498 = vmul.f32 %v1370, %v1482
    %v1499 = vmul.f32 %v1371, %v1483
    %v1500 = vmul.f32 %v1372, %v1484
    %v1501 = vmul.f32 %v1373, %v1485
    %v1502 = vmul.f32 %v1374, %v1486
    %v1503 = vmul.f32 %v1375, %v1487
    %v1504 = vpack.c.bf16 %v1489, %v1488
    %v1505 = vpack.c.bf16 %v1491, %v1490
    %v1506 = vpack.c.bf16 %v1493, %v1492
    %v1507 = vpack.c.bf16 %v1495, %v1494
    %v1508 = vpack.c.bf16 %v1497, %v1496
    %v1509 = vpack.c.bf16 %v1499, %v1498
    %v1510 = vpack.c.bf16 %v1501, %v1500
    %v1511 = vpack.c.bf16 %v1503, %v1502
    %v1512 = vld [vmem:[%s6] sm:$0xf]
    %v1513 = vld [vmem:[%s6 + $0x4] sm:$0xf]
    %v1514 = vld [vmem:[%s6 + $0x8] sm:$0xf]
    %v1515 = vld [vmem:[%s6 + $0xc] sm:$0xf]
    %v1516 = vld [vmem:[%s6 + $0x10] sm:$0xf]
    %v1517 = vld [vmem:[%s6 + $0x14] sm:$0xf]
    %v1518 = vld [vmem:[%s6 + $0x18] sm:$0xf]
    %v1519 = vld [vmem:[%s6 + $0x1c] sm:$0xf]
    %v1520 = vld [vmem:[%s6 + $0x20] sm:$0xf]
    %v1521 = vld [vmem:[%s6 + $0x24] sm:$0xf]
    %v1522 = vld [vmem:[%s6 + $0x28] sm:$0xf]
    %v1523 = vld [vmem:[%s6 + $0x2c] sm:$0xf]
    %v1524 = vld [vmem:[%s6 + $0x30] sm:$0xf]
    %v1525 = vld [vmem:[%s6 + $0x34] sm:$0xf]
    %v1526 = vld [vmem:[%s6 + $0x38] sm:$0xf]
    %v1527 = vld [vmem:[%s6 + $0x3c] sm:$0xf]
    %v1528 = vld [vmem:[%s7] sm:$0x1]
    %v1530 = vlaneseq
    %v1531 = vshrl.u32 %v1530, 7
    %v1532 = vsub.s32 0, %v1531
    %v1533 = vrot.slane %v1528, %v1532
    %v1551 = vunpack.c.l.b16 %v1512
    %v1552 = vunpack.c.l.b16 %v1513
    %v1553 = vunpack.c.l.b16 %v1514
    %v1554 = vunpack.c.l.b16 %v1515
    %v1555 = vunpack.c.l.b16 %v1516
    %v1556 = vunpack.c.l.b16 %v1517
    %v1557 = vunpack.c.l.b16 %v1518
    %v1558 = vunpack.c.l.b16 %v1519
    %v1559 = vunpack.c.l.b16 %v1520
    %v1560 = vunpack.c.l.b16 %v1521
    %v1561 = vunpack.c.l.b16 %v1522
    %v1562 = vunpack.c.l.b16 %v1523
    %v1563 = vunpack.c.l.b16 %v1524
    %v1564 = vunpack.c.l.b16 %v1525
    %v1565 = vunpack.c.l.b16 %v1526
    %v1566 = vunpack.c.l.b16 %v1527
    %v1567 = vpack.c.b16 %v1552, %v1551
    %v1568 = vpack.c.b16 %v1554, %v1553
    %v1569 = vpack.c.b16 %v1556, %v1555
    %v1570 = vpack.c.b16 %v1558, %v1557
    %v1571 = vpack.c.b16 %v1560, %v1559
    %v1572 = vpack.c.b16 %v1562, %v1561
    %v1573 = vpack.c.b16 %v1564, %v1563
    %v1574 = vpack.c.b16 %v1566, %v1565
    %1583 = vmatprep.subr.bf16.mxu0 0
    %1584 = vmatpush1.bf16.msra.mxu0 %v1567
    %1585 = vmatprep.subr.bf16.mxu0 0
    %1586 = vmatpush1.bf16.msra.mxu0 %v1568
    %1587 = vmatprep.subr.bf16.mxu0 0
    %1588 = vmatpush1.bf16.msra.mxu0 %v1569
    %1589 = vmatprep.subr.bf16.mxu0 0
    %1590 = vmatpush1.bf16.msra.mxu0 %v1570
    %1591 = vmatprep.subr.bf16.mxu0 0
    %1592 = vmatpush1.bf16.msra.mxu0 %v1571
    %1593 = vmatprep.subr.bf16.mxu0 0
    %1594 = vmatpush1.bf16.msra.mxu0 %v1572
    %1595 = vmatprep.subr.bf16.mxu0 0
    %1596 = vmatpush1.bf16.msra.mxu0 %v1573
    %1597 = vmatprep.subr.bf16.mxu0 0
    %1598 = vmatpush1.bf16.msra.mxu0 %v1574
    %1599 = vmatprep.subr.bf16.mxu0 0
    %1600 = vmatpush1.bf16.msra.mxu0 0
    %1601 = vmatprep.subr.bf16.mxu0 0
    %1602 = vmatpush1.bf16.msra.mxu0 0
    %1603 = vmatprep.subr.bf16.mxu0 0
    %1604 = vmatpush1.bf16.msra.mxu0 0
    %1605 = vmatprep.subr.bf16.mxu0 0
    %1606 = vmatpush1.bf16.msra.mxu0 0
    %1607 = vmatprep.subr.bf16.mxu0 0
    %1608 = vmatpush1.bf16.msra.mxu0 0
    %1609 = vmatprep.subr.bf16.mxu0 0
    %1610 = vmatpush1.bf16.msra.mxu0 0
    %1611 = vmatprep.subr.bf16.mxu0 0
    %1612 = vmatpush1.bf16.msra.mxu0 0
    %1613 = vmatprep.subr.bf16.mxu0 0
    %1614 = vmatpush1.bf16.msra.mxu0 0
    %1615 = vmatprep.mubr.bf16.mxu0 0
    %1616 = vmatmul.mubr.bf16.gmra.mrb[0].mxu0 %v1504
    %v1617 = vpop.f32.mrb[0].mxu0
    %v1618 = vadd.f32 %v1533, %v1617
    %v1619 = vpop.f32.mrb[0].mxu0
    %v1620 = vpop.f32.mrb[0].mxu0
    %v1621 = vadd.f32 %v1533, %v1620
    %v1622 = vpop.f32.mrb[0].mxu0
    %1623 = vmatprep.mubr.bf16.mxu0 0
    %1624 = vmatmul.mubr.bf16.gmra.mrb[0].mxu0 %v1505
    %v1625 = vpop.f32.mrb[0].mxu0
    %v1626 = vadd.f32 %v1533, %v1625
    %v1627 = vpop.f32.mrb[0].mxu0
    %v1628 = vpop.f32.mrb[0].mxu0
    %v1629 = vadd.f32 %v1533, %v1628
    %v1630 = vpop.f32.mrb[0].mxu0
    %1631 = vmatprep.mubr.bf16.mxu0 0
    %1632 = vmatmul.mubr.bf16.gmra.mrb[0].mxu0 %v1506
    %v1633 = vpop.f32.mrb[0].mxu0
    %v1634 = vadd.f32 %v1533, %v1633
    %v1635 = vpop.f32.mrb[0].mxu0
    %v1636 = vpop.f32.mrb[0].mxu0
    %v1637 = vadd.f32 %v1533, %v1636
    %v1638 = vpop.f32.mrb[0].mxu0
    %1639 = vmatprep.mubr.bf16.mxu0 0
    %1640 = vmatmul.mubr.bf16.gmra.mrb[0].mxu0 %v1507
    %v1641 = vpop.f32.mrb[0].mxu0
    %v1642 = vadd.f32 %v1533, %v1641
    %v1643 = vpop.f32.mrb[0].mxu0
    %v1644 = vpop.f32.mrb[0].mxu0
    %v1645 = vadd.f32 %v1533, %v1644
    %v1646 = vpop.f32.mrb[0].mxu0
    %1647 = vmatprep.mubr.bf16.mxu0 0
    %1648 = vmatmul.mubr.bf16.gmra.mrb[0].mxu0 %v1508
    %v1649 = vpop.f32.mrb[0].mxu0
    %v1650 = vadd.f32 %v1533, %v1649
    %v1651 = vpop.f32.mrb[0].mxu0
    %v1652 = vpop.f32.mrb[0].mxu0
    %v1653 = vadd.f32 %v1533, %v1652
    %v1654 = vpop.f32.mrb[0].mxu0
    %1655 = vmatprep.mubr.bf16.mxu0 0
    %1656 = vmatmul.mubr.bf16.gmra.mrb[0].mxu0 %v1509
    %v1657 = vpop.f32.mrb[0].mxu0
    %v1658 = vadd.f32 %v1533, %v1657
    %v1659 = vpop.f32.mrb[0].mxu0
    %v1660 = vpop.f32.mrb[0].mxu0
    %v1661 = vadd.f32 %v1533, %v1660
    %v1662 = vpop.f32.mrb[0].mxu0
    %1663 = vmatprep.mubr.bf16.mxu0 0
    %1664 = vmatmul.mubr.bf16.gmra.mrb[0].mxu0 %v1510
    %v1665 = vpop.f32.mrb[0].mxu0
    %v1666 = vadd.f32 %v1533, %v1665
    %v1667 = vpop.f32.mrb[0].mxu0
    %v1668 = vpop.f32.mrb[0].mxu0
    %v1669 = vadd.f32 %v1533, %v1668
    %v1670 = vpop.f32.mrb[0].mxu0
    %1671 = vmatprep.mubr.bf16.mxu0 0
    %1672 = vmatmul.mubr.bf16.gmra.mrb[0].mxu0 %v1511
    %v1673 = vpop.f32.mrb[0].mxu0
    %v1674 = vadd.f32 %v1533, %v1673
    %v1675 = vpop.f32.mrb[0].mxu0
    %v1676 = vpop.f32.mrb[0].mxu0
    %v1677 = vadd.f32 %v1533, %v1676
    %v1678 = vpop.f32.mrb[0].mxu0
    %1679 = vdwg.mxu0
    %1680 = vrot.lane.b32.xlu0 %v1618, 64
    %v1681 = vpop.permute.xlu0 %1680
    %1682 = vrot.lane.b32.xlu0 %v1621, 64
    %v1683 = vpop.permute.xlu0 %1682
    %1684 = vrot.lane.b32.xlu0 %v1626, 64
    %v1685 = vpop.permute.xlu0 %1684
    %1686 = vrot.lane.b32.xlu0 %v1629, 64
    %v1687 = vpop.permute.xlu0 %1686
    %1688 = vrot.lane.b32.xlu0 %v1634, 64
    %v1689 = vpop.permute.xlu0 %1688
    %1690 = vrot.lane.b32.xlu0 %v1637, 64
    %v1691 = vpop.permute.xlu0 %1690
    %1692 = vrot.lane.b32.xlu0 %v1642, 64
    %v1693 = vpop.permute.xlu0 %1692
    %1694 = vrot.lane.b32.xlu0 %v1645, 64
    %v1695 = vpop.permute.xlu0 %1694
    %1696 = vrot.lane.b32.xlu0 %v1650, 64
    %v1697 = vpop.permute.xlu0 %1696
    %1698 = vrot.lane.b32.xlu0 %v1653, 64
    %v1699 = vpop.permute.xlu0 %1698
    %1700 = vrot.lane.b32.xlu0 %v1658, 64
    %v1701 = vpop.permute.xlu0 %1700
    %1702 = vrot.lane.b32.xlu0 %v1661, 64
    %v1703 = vpop.permute.xlu0 %1702
    %1704 = vrot.lane.b32.xlu0 %v1666, 64
    %v1705 = vpop.permute.xlu0 %1704
    %1706 = vrot.lane.b32.xlu0 %v1669, 64
    %v1707 = vpop.permute.xlu0 %1706
    %1708 = vrot.lane.b32.xlu0 %v1674, 64
    %v1709 = vpop.permute.xlu0 %1708
    %1710 = vrot.lane.b32.xlu0 %v1677, 64
    %v1711 = vpop.permute.xlu0 %1710
    %v1712 = vlaneseq
    %v1713 = vand.u32 %v1712, 127
    %vm1714 = vcmp.lt.s32.totalorder %v1713, 2
    %v1715 = vsel %vm1714, %v1681, 0.0
    %v1716 = vsel %vm1714, %v1683, 0.0
    %v1717 = vsel %vm1714, %v1685, 0.0
    %v1718 = vsel %vm1714, %v1687, 0.0
    %v1719 = vsel %vm1714, %v1689, 0.0
    %v1720 = vsel %vm1714, %v1691, 0.0
    %v1721 = vsel %vm1714, %v1693, 0.0
    %v1722 = vsel %vm1714, %v1695, 0.0
    %v1723 = vsel %vm1714, %v1697, 0.0
    %v1724 = vsel %vm1714, %v1699, 0.0
    %v1725 = vsel %vm1714, %v1701, 0.0
    %v1726 = vsel %vm1714, %v1703, 0.0
    %v1727 = vsel %vm1714, %v1705, 0.0
    %v1728 = vsel %vm1714, %v1707, 0.0
    %v1729 = vsel %vm1714, %v1709, 0.0
    %v1730 = vsel %vm1714, %v1711, 0.0
    %v1731 = vld [vmem:[%s1] sm:$0xf]
    %v1732 = vld [vmem:[%s1 + $0x4] sm:$0xf]
    %v1733 = vld [vmem:[%s1 + $0x8] sm:$0xf]
    %v1734 = vld [vmem:[%s1 + $0xc] sm:$0xf]
    %v1735 = vld [vmem:[%s1 + $0x10] sm:$0xf]
    %v1736 = vld [vmem:[%s1 + $0x14] sm:$0xf]
    %v1737 = vld [vmem:[%s1 + $0x18] sm:$0xf]
    %v1738 = vld [vmem:[%s1 + $0x1c] sm:$0xf]
    %v1739 = vld [vmem:[%s1 + $0x20] sm:$0xf]
    %v1740 = vld [vmem:[%s1 + $0x24] sm:$0xf]
    %v1741 = vld [vmem:[%s1 + $0x28] sm:$0xf]
    %v1742 = vld [vmem:[%s1 + $0x2c] sm:$0xf]
    %v1743 = vld [vmem:[%s1 + $0x30] sm:$0xf]
    %v1744 = vld [vmem:[%s1 + $0x34] sm:$0xf]
    %v1745 = vld [vmem:[%s1 + $0x38] sm:$0xf]
    %v1746 = vld [vmem:[%s1 + $0x3c] sm:$0xf]
    %v1747 = vunpack.c.l.bf16 %v1731
    %v1748 = vunpack.c.l.bf16 %v1732
    %v1749 = vunpack.c.l.bf16 %v1733
    %v1750 = vunpack.c.l.bf16 %v1734
    %v1751 = vunpack.c.l.bf16 %v1735
    %v1752 = vunpack.c.l.bf16 %v1736
    %v1753 = vunpack.c.l.bf16 %v1737
    %v1754 = vunpack.c.l.bf16 %v1738
    %v1755 = vunpack.c.l.bf16 %v1739
    %v1756 = vunpack.c.l.bf16 %v1740
    %v1757 = vunpack.c.l.bf16 %v1741
    %v1758 = vunpack.c.l.bf16 %v1742
    %v1759 = vunpack.c.l.bf16 %v1743
    %v1760 = vunpack.c.l.bf16 %v1744
    %v1761 = vunpack.c.l.bf16 %v1745
    %v1762 = vunpack.c.l.bf16 %v1746
    %v1763 = vmul.f32 %v1715, 0.5
    %v1764 = vmul.f32 %v1716, 0.5
    %v1765 = vmul.f32 %v1717, 0.5
    %v1766 = vmul.f32 %v1718, 0.5
    %v1767 = vmul.f32 %v1719, 0.5
    %v1768 = vmul.f32 %v1720, 0.5
    %v1769 = vmul.f32 %v1721, 0.5
    %v1770 = vmul.f32 %v1722, 0.5
    %v1771 = vmul.f32 %v1723, 0.5
    %v1772 = vmul.f32 %v1724, 0.5
    %v1773 = vmul.f32 %v1725, 0.5
    %v1774 = vmul.f32 %v1726, 0.5
    %v1775 = vmul.f32 %v1727, 0.5
    %v1776 = vmul.f32 %v1728, 0.5
    %v1777 = vmul.f32 %v1729, 0.5
    %v1778 = vmul.f32 %v1730, 0.5
    %v1779 = vmul.f32 %v1763, 1.442695
    %v1780 = vpow.pop %v1779
    %v1781 = vmul.f32 %v1764, 1.442695
    %v1782 = vpow.pop %v1781
    %v1783 = vmul.f32 %v1765, 1.442695
    %v1784 = vpow.pop %v1783
    %v1785 = vmul.f32 %v1766, 1.442695
    %v1786 = vpow.pop %v1785
    %v1787 = vmul.f32 %v1767, 1.442695
    %v1788 = vpow.pop %v1787
    %v1789 = vmul.f32 %v1768, 1.442695
    %v1790 = vpow.pop %v1789
    %v1791 = vmul.f32 %v1769, 1.442695
    %v1792 = vpow.pop %v1791
    %v1793 = vmul.f32 %v1770, 1.442695
    %v1794 = vpow.pop %v1793
    %v1795 = vmul.f32 %v1771, 1.442695
    %v1796 = vpow.pop %v1795
    %v1797 = vmul.f32 %v1772, 1.442695
    %v1798 = vpow.pop %v1797
    %v1799 = vmul.f32 %v1773, 1.442695
    %v1800 = vpow.pop %v1799
    %v1801 = vmul.f32 %v1774, 1.442695
    %v1802 = vpow.pop %v1801
    %v1803 = vmul.f32 %v1775, 1.442695
    %v1804 = vpow.pop %v1803
    %v1805 = vmul.f32 %v1776, 1.442695
    %v1806 = vpow.pop %v1805
    %v1807 = vmul.f32 %v1777, 1.442695
    %v1808 = vpow.pop %v1807
    %v1809 = vmul.f32 %v1778, 1.442695
    %v1810 = vpow.pop %v1809
    %v1811 = vmul.f32 %v1747, %v1780
    %v1812 = vmul.f32 %v1748, %v1782
    %v1813 = vmul.f32 %v1749, %v1784
    %v1814 = vmul.f32 %v1750, %v1786
    %v1815 = vmul.f32 %v1751, %v1788
    %v1816 = vmul.f32 %v1752, %v1790
    %v1817 = vmul.f32 %v1753, %v1792
    %v1818 = vmul.f32 %v1754, %v1794
    %v1819 = vmul.f32 %v1755, %v1796
    %v1820 = vmul.f32 %v1756, %v1798
    %v1821 = vmul.f32 %v1757, %v1800
    %v1822 = vmul.f32 %v1758, %v1802
    %v1823 = vmul.f32 %v1759, %v1804
    %v1824 = vmul.f32 %v1760, %v1806
    %v1825 = vmul.f32 %v1761, %v1808
    %v1826 = vmul.f32 %v1762, %v1810
    %v1827 = vadd.f32 %v1811, %v1618
    %v1828 = vadd.f32 %v1812, %v1621
    %v1829 = vadd.f32 %v1813, %v1626
    %v1830 = vadd.f32 %v1814, %v1629
    %v1831 = vadd.f32 %v1815, %v1634
    %v1832 = vadd.f32 %v1816, %v1637
    %v1833 = vadd.f32 %v1817, %v1642
    %v1834 = vadd.f32 %v1818, %v1645
    %v1835 = vadd.f32 %v1819, %v1650
    %v1836 = vadd.f32 %v1820, %v1653
    %v1837 = vadd.f32 %v1821, %v1658
    %v1838 = vadd.f32 %v1822, %v1661
    %v1839 = vadd.f32 %v1823, %v1666
    %v1840 = vadd.f32 %v1824, %v1669
    %v1841 = vadd.f32 %v1825, %v1674
    %v1842 = vadd.f32 %v1826, %v1677
    %v1843 = vpack.c.bf16 %v1828, %v1827
    %v1844 = vpack.c.bf16 %v1830, %v1829
    %v1845 = vpack.c.bf16 %v1832, %v1831
    %v1846 = vpack.c.bf16 %v1834, %v1833
    %v1847 = vpack.c.bf16 %v1836, %v1835
    %v1848 = vpack.c.bf16 %v1838, %v1837
    %v1849 = vpack.c.bf16 %v1840, %v1839
    %v1850 = vpack.c.bf16 %v1842, %v1841
    %v1851 = vld [vmem:[#allocation7] sm:$0xf]
    %v1852 = vld [vmem:[#allocation7 + $0x4] sm:$0xf]
    %v1853 = vld [vmem:[#allocation7 + $0x8] sm:$0xf]
    %v1854 = vld [vmem:[#allocation7 + $0xc] sm:$0xf]
    %v1855 = vld [vmem:[#allocation7 + $0x10] sm:$0xf]
    %v1856 = vld [vmem:[#allocation7 + $0x14] sm:$0xf]
    %v1857 = vld [vmem:[#allocation7 + $0x18] sm:$0xf]
    %v1858 = vld [vmem:[#allocation7 + $0x1c] sm:$0xf]
    %v1859 = vld [vmem:[#allocation7 + $0x20] sm:$0xf]
    %v1860 = vld [vmem:[#allocation7 + $0x24] sm:$0xf]
    %v1861 = vld [vmem:[#allocation7 + $0x28] sm:$0xf]
    %v1862 = vld [vmem:[#allocation7 + $0x2c] sm:$0xf]
    %v1863 = vld [vmem:[#allocation7 + $0x30] sm:$0xf]
    %v1864 = vld [vmem:[#allocation7 + $0x34] sm:$0xf]
    %v1865 = vld [vmem:[#allocation7 + $0x38] sm:$0xf]
    %v1866 = vld [vmem:[#allocation7 + $0x3c] sm:$0xf]
    %v1867 = vld [vmem:[%s9] sm:$0x1]
    %v1869 = vlaneseq
    %v1870 = vshrl.u32 %v1869, 7
    %v1871 = vsub.s32 0, %v1870
    %v1872 = vrot.slane %v1867, %v1871
    %v1890 = vunpack.c.l.b16 %v1851
    %v1891 = vunpack.c.l.b16 %v1852
    %v1892 = vunpack.c.l.b16 %v1853
    %v1893 = vunpack.c.l.b16 %v1854
    %v1894 = vunpack.c.l.b16 %v1855
    %v1895 = vunpack.c.l.b16 %v1856
    %v1896 = vunpack.c.l.b16 %v1857
    %v1897 = vunpack.c.l.b16 %v1858
    %v1898 = vunpack.c.l.b16 %v1859
    %v1899 = vunpack.c.l.b16 %v1860
    %v1900 = vunpack.c.l.b16 %v1861
    %v1901 = vunpack.c.l.b16 %v1862
    %v1902 = vunpack.c.l.b16 %v1863
    %v1903 = vunpack.c.l.b16 %v1864
    %v1904 = vunpack.c.l.b16 %v1865
    %v1905 = vunpack.c.l.b16 %v1866
    %v1906 = vpack.c.b16 %v1891, %v1890
    %v1907 = vpack.c.b16 %v1893, %v1892
    %v1908 = vpack.c.b16 %v1895, %v1894
    %v1909 = vpack.c.b16 %v1897, %v1896
    %v1910 = vpack.c.b16 %v1899, %v1898
    %v1911 = vpack.c.b16 %v1901, %v1900
    %v1912 = vpack.c.b16 %v1903, %v1902
    %v1913 = vpack.c.b16 %v1905, %v1904
    %1922 = vmatprep.subr.bf16.mxu0 0
    %1923 = vmatpush1.bf16.msra.mxu0 %v1906
    %1924 = vmatprep.subr.bf16.mxu0 0
    %1925 = vmatpush1.bf16.msra.mxu0 %v1907
    %1926 = vmatprep.subr.bf16.mxu0 0
    %1927 = vmatpush1.bf16.msra.mxu0 %v1908
    %1928 = vmatprep.subr.bf16.mxu0 0
    %1929 = vmatpush1.bf16.msra.mxu0 %v1909
    %1930 = vmatprep.subr.bf16.mxu0 0
    %1931 = vmatpush1.bf16.msra.mxu0 %v1910
    %1932 = vmatprep.subr.bf16.mxu0 0
    %1933 = vmatpush1.bf16.msra.mxu0 %v1911
    %1934 = vmatprep.subr.bf16.mxu0 0
    %1935 = vmatpush1.bf16.msra.mxu0 %v1912
    %1936 = vmatprep.subr.bf16.mxu0 0
    %1937 = vmatpush1.bf16.msra.mxu0 %v1913
    %1938 = vmatprep.subr.bf16.mxu0 0
    %1939 = vmatpush1.bf16.msra.mxu0 0
    %1940 = vmatprep.subr.bf16.mxu0 0
    %1941 = vmatpush1.bf16.msra.mxu0 0
    %1942 = vmatprep.subr.bf16.mxu0 0
    %1943 = vmatpush1.bf16.msra.mxu0 0
    %1944 = vmatprep.subr.bf16.mxu0 0
    %1945 = vmatpush1.bf16.msra.mxu0 0
    %1946 = vmatprep.subr.bf16.mxu0 0
    %1947 = vmatpush1.bf16.msra.mxu0 0
    %1948 = vmatprep.subr.bf16.mxu0 0
    %1949 = vmatpush1.bf16.msra.mxu0 0
    %1950 = vmatprep.subr.bf16.mxu0 0
    %1951 = vmatpush1.bf16.msra.mxu0 0
    %1952 = vmatprep.subr.bf16.mxu0 0
    %1953 = vmatpush1.bf16.msra.mxu0 0
    %1954 = vmatprep.mubr.bf16.mxu0 0
    %1955 = vmatmul.mubr.bf16.gmra.mrb[0].mxu0 %v1843
    %v1956 = vpop.f32.mrb[0].mxu0
    %v1957 = vadd.f32 %v1872, %v1956
    %v1958 = vpop.f32.mrb[0].mxu0
    %v1959 = vpop.f32.mrb[0].mxu0
    %v1960 = vadd.f32 %v1872, %v1959
    %v1961 = vpop.f32.mrb[0].mxu0
    %1962 = vmatprep.mubr.bf16.mxu0 0
    %1963 = vmatmul.mubr.bf16.gmra.mrb[0].mxu0 %v1844
    %v1964 = vpop.f32.mrb[0].mxu0
    %v1965 = vadd.f32 %v1872, %v1964
    %v1966 = vpop.f32.mrb[0].mxu0
    %v1967 = vpop.f32.mrb[0].mxu0
    %v1968 = vadd.f32 %v1872, %v1967
    %v1969 = vpop.f32.mrb[0].mxu0
    %1970 = vmatprep.mubr.bf16.mxu0 0
    %1971 = vmatmul.mubr.bf16.gmra.mrb[0].mxu0 %v1845
    %v1972 = vpop.f32.mrb[0].mxu0
    %v1973 = vadd.f32 %v1872, %v1972
    %v1974 = vpop.f32.mrb[0].mxu0
    %v1975 = vpop.f32.mrb[0].mxu0
    %v1976 = vadd.f32 %v1872, %v1975
    %v1977 = vpop.f32.mrb[0].mxu0
    %1978 = vmatprep.mubr.bf16.mxu0 0
    %1979 = vmatmul.mubr.bf16.gmra.mrb[0].mxu0 %v1846
    %v1980 = vpop.f32.mrb[0].mxu0
    %v1981 = vadd.f32 %v1872, %v1980
    %v1982 = vpop.f32.mrb[0].mxu0
    %v1983 = vpop.f32.mrb[0].mxu0
    %v1984 = vadd.f32 %v1872, %v1983
    %v1985 = vpop.f32.mrb[0].mxu0
    %1986 = vmatprep.mubr.bf16.mxu0 0
    %1987 = vmatmul.mubr.bf16.gmra.mrb[0].mxu0 %v1847
    %v1988 = vpop.f32.mrb[0].mxu0
    %v1989 = vadd.f32 %v1872, %v1988
    %v1990 = vpop.f32.mrb[0].mxu0
    %v1991 = vpop.f32.mrb[0].mxu0
    %v1992 = vadd.f32 %v1872, %v1991
    %v1993 = vpop.f32.mrb[0].mxu0
    %1994 = vmatprep.mubr.bf16.mxu0 0
    %1995 = vmatmul.mubr.bf16.gmra.mrb[0].mxu0 %v1848
    %v1996 = vpop.f32.mrb[0].mxu0
    %v1997 = vadd.f32 %v1872, %v1996
    %v1998 = vpop.f32.mrb[0].mxu0
    %v1999 = vpop.f32.mrb[0].mxu0
    %v2000 = vadd.f32 %v1872, %v1999
    %v2001 = vpop.f32.mrb[0].mxu0
    %2002 = vmatprep.mubr.bf16.mxu0 0
    %2003 = vmatmul.mubr.bf16.gmra.mrb[0].mxu0 %v1849
    %v2004 = vpop.f32.mrb[0].mxu0
    %v2005 = vadd.f32 %v1872, %v2004
    %v2006 = vpop.f32.mrb[0].mxu0
    %v2007 = vpop.f32.mrb[0].mxu0
    %v2008 = vadd.f32 %v1872, %v2007
    %v2009 = vpop.f32.mrb[0].mxu0
    %2010 = vmatprep.mubr.bf16.mxu0 0
    %2011 = vmatmul.mubr.bf16.gmra.mrb[0].mxu0 %v1850
    %v2012 = vpop.f32.mrb[0].mxu0
    %v2013 = vadd.f32 %v1872, %v2012
    %v2014 = vpop.f32.mrb[0].mxu0
    %v2015 = vpop.f32.mrb[0].mxu0
    %v2016 = vadd.f32 %v1872, %v2015
    %v2017 = vpop.f32.mrb[0].mxu0
    %2018 = vdwg.mxu0
    %v2019 = vmul.f32 %v1957, 0.5
    %v2020 = vmul.f32 %v1960, 0.5
    %v2021 = vmul.f32 %v1965, 0.5
    %v2022 = vmul.f32 %v1968, 0.5
    %v2023 = vmul.f32 %v1973, 0.5
    %v2024 = vmul.f32 %v1976, 0.5
    %v2025 = vmul.f32 %v1981, 0.5
    %v2026 = vmul.f32 %v1984, 0.5
    %v2027 = vmul.f32 %v1989, 0.5
    %v2028 = vmul.f32 %v1992, 0.5
    %v2029 = vmul.f32 %v1997, 0.5
    %v2030 = vmul.f32 %v2000, 0.5
    %v2031 = vmul.f32 %v2005, 0.5
    %v2032 = vmul.f32 %v2008, 0.5
    %v2033 = vmul.f32 %v2013, 0.5
    %v2034 = vmul.f32 %v2016, 0.5
    %v2035 = vmul.f32 %v1957, 0.044715
    %v2036 = vmul.f32 %v1960, 0.044715
    %v2037 = vmul.f32 %v1965, 0.044715
    %v2038 = vmul.f32 %v1968, 0.044715
    %v2039 = vmul.f32 %v1973, 0.044715
    %v2040 = vmul.f32 %v1976, 0.044715
    %v2041 = vmul.f32 %v1981, 0.044715
    %v2042 = vmul.f32 %v1984, 0.044715
    %v2043 = vmul.f32 %v1989, 0.044715
    %v2044 = vmul.f32 %v1992, 0.044715
    %v2045 = vmul.f32 %v1997, 0.044715
    %v2046 = vmul.f32 %v2000, 0.044715
    %v2047 = vmul.f32 %v2005, 0.044715
    %v2048 = vmul.f32 %v2008, 0.044715
    %v2049 = vmul.f32 %v2013, 0.044715
    %v2050 = vmul.f32 %v2016, 0.044715
    %v2051 = vmul.f32 %v2035, %v1957
    %v2052 = vmul.f32 %v2036, %v1960
    %v2053 = vmul.f32 %v2037, %v1965
    %v2054 = vmul.f32 %v2038, %v1968
    %v2055 = vmul.f32 %v2039, %v1973
    %v2056 = vmul.f32 %v2040, %v1976
    %v2057 = vmul.f32 %v2041, %v1981
    %v2058 = vmul.f32 %v2042, %v1984
    %v2059 = vmul.f32 %v2043, %v1989
    %v2060 = vmul.f32 %v2044, %v1992
    %v2061 = vmul.f32 %v2045, %v1997
    %v2062 = vmul.f32 %v2046, %v2000
    %v2063 = vmul.f32 %v2047, %v2005
    %v2064 = vmul.f32 %v2048, %v2008
    %v2065 = vmul.f32 %v2049, %v2013
    %v2066 = vmul.f32 %v2050, %v2016
    %v2067 = vmul.f32 %v2051, %v1957
    %v2068 = vmul.f32 %v2052, %v1960
    %v2069 = vmul.f32 %v2053, %v1965
    %v2070 = vmul.f32 %v2054, %v1968
    %v2071 = vmul.f32 %v2055, %v1973
    %v2072 = vmul.f32 %v2056, %v1976
    %v2073 = vmul.f32 %v2057, %v1981
    %v2074 = vmul.f32 %v2058, %v1984
    %v2075 = vmul.f32 %v2059, %v1989
    %v2076 = vmul.f32 %v2060, %v1992
    %v2077 = vmul.f32 %v2061, %v1997
    %v2078 = vmul.f32 %v2062, %v2000
    %v2079 = vmul.f32 %v2063, %v2005
    %v2080 = vmul.f32 %v2064, %v2008
    %v2081 = vmul.f32 %v2065, %v2013
    %v2082 = vmul.f32 %v2066, %v2016
    %v2083 = vadd.f32 %v1957, %v2067
    %v2084 = vadd.f32 %v1960, %v2068
    %v2085 = vadd.f32 %v1965, %v2069
    %v2086 = vadd.f32 %v1968, %v2070
    %v2087 = vadd.f32 %v1973, %v2071
    %v2088 = vadd.f32 %v1976, %v2072
    %v2089 = vadd.f32 %v1981, %v2073
    %v2090 = vadd.f32 %v1984, %v2074
    %v2091 = vadd.f32 %v1989, %v2075
    %v2092 = vadd.f32 %v1992, %v2076
    %v2093 = vadd.f32 %v1997, %v2077
    %v2094 = vadd.f32 %v2000, %v2078
    %v2095 = vadd.f32 %v2005, %v2079
    %v2096 = vadd.f32 %v2008, %v2080
    %v2097 = vadd.f32 %v2013, %v2081
    %v2098 = vadd.f32 %v2016, %v2082
    %v2099 = vmul.f32 %v2083, 0.7978846
    %v2100 = vmul.f32 %v2084, 0.7978846
    %v2101 = vmul.f32 %v2085, 0.7978846
    %v2102 = vmul.f32 %v2086, 0.7978846
    %v2103 = vmul.f32 %v2087, 0.7978846
    %v2104 = vmul.f32 %v2088, 0.7978846
    %v2105 = vmul.f32 %v2089, 0.7978846
    %v2106 = vmul.f32 %v2090, 0.7978846
    %v2107 = vmul.f32 %v2091, 0.7978846
    %v2108 = vmul.f32 %v2092, 0.7978846
    %v2109 = vmul.f32 %v2093, 0.7978846
    %v2110 = vmul.f32 %v2094, 0.7978846
    %v2111 = vmul.f32 %v2095, 0.7978846
    %v2112 = vmul.f32 %v2096, 0.7978846
    %v2113 = vmul.f32 %v2097, 0.7978846
    %v2114 = vmul.f32 %v2098, 0.7978846
    %v2115 = vtanh.pop %v2099
    %v2116 = vtanh.pop %v2100
    %v2117 = vtanh.pop %v2101
    %v2118 = vtanh.pop %v2102
    %v2119 = vtanh.pop %v2103
    %v2120 = vtanh.pop %v2104
    %v2121 = vtanh.pop %v2105
    %v2122 = vtanh.pop %v2106
    %v2123 = vtanh.pop %v2107
    %v2124 = vtanh.pop %v2108
    %v2125 = vtanh.pop %v2109
    %v2126 = vtanh.pop %v2110
    %v2127 = vtanh.pop %v2111
    %v2128 = vtanh.pop %v2112
    %v2129 = vtanh.pop %v2113
    %v2130 = vtanh.pop %v2114
    %v2131 = vadd.f32 %v2115, 1.0
    %v2132 = vadd.f32 %v2116, 1.0
    %v2133 = vadd.f32 %v2117, 1.0
    %v2134 = vadd.f32 %v2118, 1.0
    %v2135 = vadd.f32 %v2119, 1.0
    %v2136 = vadd.f32 %v2120, 1.0
    %v2137 = vadd.f32 %v2121, 1.0
    %v2138 = vadd.f32 %v2122, 1.0
    %v2139 = vadd.f32 %v2123, 1.0
    %v2140 = vadd.f32 %v2124, 1.0
    %v2141 = vadd.f32 %v2125, 1.0
    %v2142 = vadd.f32 %v2126, 1.0
    %v2143 = vadd.f32 %v2127, 1.0
    %v2144 = vadd.f32 %v2128, 1.0
    %v2145 = vadd.f32 %v2129, 1.0
    %v2146 = vadd.f32 %v2130, 1.0
    %v2147 = vmul.f32 %v2019, %v2131
    %v2148 = vmul.f32 %v2020, %v2132
    %v2149 = vmul.f32 %v2021, %v2133
    %v2150 = vmul.f32 %v2022, %v2134
    %v2151 = vmul.f32 %v2023, %v2135
    %v2152 = vmul.f32 %v2024, %v2136
    %v2153 = vmul.f32 %v2025, %v2137
    %v2154 = vmul.f32 %v2026, %v2138
    %v2155 = vmul.f32 %v2027, %v2139
    %v2156 = vmul.f32 %v2028, %v2140
    %v2157 = vmul.f32 %v2029, %v2141
    %v2158 = vmul.f32 %v2030, %v2142
    %v2159 = vmul.f32 %v2031, %v2143
    %v2160 = vmul.f32 %v2032, %v2144
    %v2161 = vmul.f32 %v2033, %v2145
    %v2162 = vmul.f32 %v2034, %v2146
    %v2163 = vpack.c.bf16 %v2148, %v2147
    %v2164 = vpack.c.bf16 %v2150, %v2149
    %v2165 = vpack.c.bf16 %v2152, %v2151
    %v2166 = vpack.c.bf16 %v2154, %v2153
    %v2167 = vpack.c.bf16 %v2156, %v2155
    %v2168 = vpack.c.bf16 %v2158, %v2157
    %v2169 = vpack.c.bf16 %v2160, %v2159
    %v2170 = vpack.c.bf16 %v2162, %v2161
    %v2171 = vld [vmem:[%s10] sm:$0xff]
    %v2172 = vld [vmem:[%s10 + $0x8] sm:$0xff]
    %v2173 = vld [vmem:[%s10 + $0x10] sm:$0xff]
    %v2174 = vld [vmem:[%s10 + $0x18] sm:$0xff]
    %v2175 = vld [vmem:[%s10 + $0x20] sm:$0xff]
    %v2176 = vld [vmem:[%s10 + $0x28] sm:$0xff]
    %v2177 = vld [vmem:[%s10 + $0x30] sm:$0xff]
    %v2178 = vld [vmem:[%s10 + $0x38] sm:$0xff]
    %v2179 = vld [vmem:[%s10 + $0x40] sm:$0xff]
    %v2180 = vld [vmem:[%s10 + $0x48] sm:$0xff]
    %v2181 = vld [vmem:[%s10 + $0x50] sm:$0xff]
    %v2182 = vld [vmem:[%s10 + $0x58] sm:$0xff]
    %v2183 = vld [vmem:[%s10 + $0x60] sm:$0xff]
    %v2184 = vld [vmem:[%s10 + $0x68] sm:$0xff]
    %v2185 = vld [vmem:[%s10 + $0x70] sm:$0xff]
    %v2186 = vld [vmem:[%s10 + $0x78] sm:$0xff]
    %v2187 = vld [vmem:[%s11] sm:$0x3]
    %v2189 = vlaneseq
    %v2190 = vshrl.u32 %v2189, 7
    %v2191 = vsub.s32 0, %v2190
    %v2192 = vrot.slane %v2187, %v2191
    %v2193 = vlaneseq
    %v2194 = vshrl.u32 %v2193, 7
    %v2195 = vsub.s32 1, %v2194
    %v2196 = vrot.slane %v2187, %v2195
    %v2215 = vunpack.c.l.b16 %v2171
    %v2216 = vunpack.c.h.b16 %v2171
    %v2217 = vunpack.c.l.b16 %v2172
    %v2218 = vunpack.c.h.b16 %v2172
    %v2219 = vunpack.c.l.b16 %v2173
    %v2220 = vunpack.c.h.b16 %v2173
    %v2221 = vunpack.c.l.b16 %v2174
    %v2222 = vunpack.c.h.b16 %v2174
    %v2223 = vunpack.c.l.b16 %v2175
    %v2224 = vunpack.c.h.b16 %v2175
    %v2225 = vunpack.c.l.b16 %v2176
    %v2226 = vunpack.c.h.b16 %v2176
    %v2227 = vunpack.c.l.b16 %v2177
    %v2228 = vunpack.c.h.b16 %v2177
    %v2229 = vunpack.c.l.b16 %v2178
    %v2230 = vunpack.c.h.b16 %v2178
    %v2231 = vunpack.c.l.b16 %v2179
    %v2232 = vunpack.c.h.b16 %v2179
    %v2233 = vunpack.c.l.b16 %v2180
    %v2234 = vunpack.c.h.b16 %v2180
    %v2235 = vunpack.c.l.b16 %v2181
    %v2236 = vunpack.c.h.b16 %v2181
    %v2237 = vunpack.c.l.b16 %v2182
    %v2238 = vunpack.c.h.b16 %v2182
    %v2239 = vunpack.c.l.b16 %v2183
    %v2240 = vunpack.c.h.b16 %v2183
    %v2241 = vunpack.c.l.b16 %v2184
    %v2242 = vunpack.c.h.b16 %v2184
    %v2243 = vunpack.c.l.b16 %v2185
    %v2244 = vunpack.c.h.b16 %v2185
    %v2245 = vunpack.c.l.b16 %v2186
    %v2246 = vunpack.c.h.b16 %v2186
    %v2247 = vpack.c.b16 %v2217, %v2215
    %v2248 = vpack.c.b16 %v2218, %v2216
    %v2249 = vpack.c.b16 %v2221, %v2219
    %v2250 = vpack.c.b16 %v2222, %v2220
    %v2251 = vpack.c.b16 %v2225, %v2223
    %v2252 = vpack.c.b16 %v2226, %v2224
    %v2253 = vpack.c.b16 %v2229, %v2227
    %v2254 = vpack.c.b16 %v2230, %v2228
    %v2255 = vpack.c.b16 %v2233, %v2231
    %v2256 = vpack.c.b16 %v2234, %v2232
    %v2257 = vpack.c.b16 %v2237, %v2235
    %v2258 = vpack.c.b16 %v2238, %v2236
    %v2259 = vpack.c.b16 %v2241, %v2239
    %v2260 = vpack.c.b16 %v2242, %v2240
    %v2261 = vpack.c.b16 %v2245, %v2243
    %v2262 = vpack.c.b16 %v2246, %v2244
    %2279 = vmatprep.subr.bf16.mxu0 %v2248
    %2280 = vmatpush1.bf16.msra.mxu0 %v2247
    %2281 = vmatprep.subr.bf16.mxu0 %v2250
    %2282 = vmatpush1.bf16.msra.mxu0 %v2249
    %2283 = vmatprep.subr.bf16.mxu0 %v2252
    %2284 = vmatpush1.bf16.msra.mxu0 %v2251
    %2285 = vmatprep.subr.bf16.mxu0 %v2254
    %2286 = vmatpush1.bf16.msra.mxu0 %v2253
    %2287 = vmatprep.subr.bf16.mxu0 %v2256
    %2288 = vmatpush1.bf16.msra.mxu0 %v2255
    %2289 = vmatprep.subr.bf16.mxu0 %v2258
    %2290 = vmatpush1.bf16.msra.mxu0 %v2257
    %2291 = vmatprep.subr.bf16.mxu0 %v2260
    %2292 = vmatpush1.bf16.msra.mxu0 %v2259
    %2293 = vmatprep.subr.bf16.mxu0 %v2262
    %2294 = vmatpush1.bf16.msra.mxu0 %v2261
    %2295 = vmatprep.subr.bf16.mxu0 0
    %2296 = vmatpush1.bf16.msra.mxu0 0
    %2297 = vmatprep.subr.bf16.mxu0 0
    %2298 = vmatpush1.bf16.msra.mxu0 0
    %2299 = vmatprep.subr.bf16.mxu0 0
    %2300 = vmatpush1.bf16.msra.mxu0 0
    %2301 = vmatprep.subr.bf16.mxu0 0
    %2302 = vmatpush1.bf16.msra.mxu0 0
    %2303 = vmatprep.subr.bf16.mxu0 0
    %2304 = vmatpush1.bf16.msra.mxu0 0
    %2305 = vmatprep.subr.bf16.mxu0 0
    %2306 = vmatpush1.bf16.msra.mxu0 0
    %2307 = vmatprep.subr.bf16.mxu0 0
    %2308 = vmatpush1.bf16.msra.mxu0 0
    %2309 = vmatprep.subr.bf16.mxu0 0
    %2310 = vmatpush1.bf16.msra.mxu0 0
    %2311 = vmatprep.mubr.bf16.mxu0 0
    %2312 = vmatmul.mubr.bf16.gmra.mrb[0].mxu0 %v2163
    %v2313 = vpop.f32.mrb[0].mxu0
    %v2314 = vadd.f32 %v2192, %v2313
    %v2315 = vpop.f32.mrb[0].mxu0
    %v2316 = vadd.f32 %v2196, %v2315
    %v2317 = vpop.f32.mrb[0].mxu0
    %v2318 = vadd.f32 %v2192, %v2317
    %v2319 = vpop.f32.mrb[0].mxu0
    %v2320 = vadd.f32 %v2196, %v2319
    %2321 = vmatprep.mubr.bf16.mxu0 0
    %2322 = vmatmul.mubr.bf16.gmra.mrb[0].mxu0 %v2164
    %v2323 = vpop.f32.mrb[0].mxu0
    %v2324 = vadd.f32 %v2192, %v2323
    %v2325 = vpop.f32.mrb[0].mxu0
    %v2326 = vadd.f32 %v2196, %v2325
    %v2327 = vpop.f32.mrb[0].mxu0
    %v2328 = vadd.f32 %v2192, %v2327
    %v2329 = vpop.f32.mrb[0].mxu0
    %v2330 = vadd.f32 %v2196, %v2329
    %2331 = vmatprep.mubr.bf16.mxu0 0
    %2332 = vmatmul.mubr.bf16.gmra.mrb[0].mxu0 %v2165
    %v2333 = vpop.f32.mrb[0].mxu0
    %v2334 = vadd.f32 %v2192, %v2333
    %v2335 = vpop.f32.mrb[0].mxu0
    %v2336 = vadd.f32 %v2196, %v2335
    %v2337 = vpop.f32.mrb[0].mxu0
    %v2338 = vadd.f32 %v2192, %v2337
    %v2339 = vpop.f32.mrb[0].mxu0
    %v2340 = vadd.f32 %v2196, %v2339
    %2341 = vmatprep.mubr.bf16.mxu0 0
    %2342 = vmatmul.mubr.bf16.gmra.mrb[0].mxu0 %v2166
    %v2343 = vpop.f32.mrb[0].mxu0
    %v2344 = vadd.f32 %v2192, %v2343
    %v2345 = vpop.f32.mrb[0].mxu0
    %v2346 = vadd.f32 %v2196, %v2345
    %v2347 = vpop.f32.mrb[0].mxu0
    %v2348 = vadd.f32 %v2192, %v2347
    %v2349 = vpop.f32.mrb[0].mxu0
    %v2350 = vadd.f32 %v2196, %v2349
    %2351 = vmatprep.mubr.bf16.mxu0 0
    %2352 = vmatmul.mubr.bf16.gmra.mrb[0].mxu0 %v2167
    %v2353 = vpop.f32.mrb[0].mxu0
    %v2354 = vadd.f32 %v2192, %v2353
    %v2355 = vpop.f32.mrb[0].mxu0
    %v2356 = vadd.f32 %v2196, %v2355
    %v2357 = vpop.f32.mrb[0].mxu0
    %v2358 = vadd.f32 %v2192, %v2357
    %v2359 = vpop.f32.mrb[0].mxu0
    %v2360 = vadd.f32 %v2196, %v2359
    %2361 = vmatprep.mubr.bf16.mxu0 0
    %2362 = vmatmul.mubr.bf16.gmra.mrb[0].mxu0 %v2168
    %v2363 = vpop.f32.mrb[0].mxu0
    %v2364 = vadd.f32 %v2192, %v2363
    %v2365 = vpop.f32.mrb[0].mxu0
    %v2366 = vadd.f32 %v2196, %v2365
    %v2367 = vpop.f32.mrb[0].mxu0
    %v2368 = vadd.f32 %v2192, %v2367
    %v2369 = vpop.f32.mrb[0].mxu0
    %v2370 = vadd.f32 %v2196, %v2369
    %2371 = vmatprep.mubr.bf16.mxu0 0
    %2372 = vmatmul.mubr.bf16.gmra.mrb[0].mxu0 %v2169
    %v2373 = vpop.f32.mrb[0].mxu0
    %v2374 = vadd.f32 %v2192, %v2373
    %v2375 = vpop.f32.mrb[0].mxu0
    %v2376 = vadd.f32 %v2196, %v2375
    %v2377 = vpop.f32.mrb[0].mxu0
    %v2378 = vadd.f32 %v2192, %v2377
    %v2379 = vpop.f32.mrb[0].mxu0
    %v2380 = vadd.f32 %v2196, %v2379
    %2381 = vmatprep.mubr.bf16.mxu0 0
    %2382 = vmatmul.mubr.bf16.gmra.mrb[0].mxu0 %v2170
    %v2383 = vpop.f32.mrb[0].mxu0
    %v2384 = vadd.f32 %v2192, %v2383
    %v2385 = vpop.f32.mrb[0].mxu0
    %v2386 = vadd.f32 %v2196, %v2385
    %v2387 = vpop.f32.mrb[0].mxu0
    %v2388 = vadd.f32 %v2192, %v2387
    %v2389 = vpop.f32.mrb[0].mxu0
    %v2390 = vadd.f32 %v2196, %v2389
    %2391 = vdwg.mxu0
    %v2392 = vmul.f32 %v2314, 0.5
    %v2393 = vmul.f32 %v2316, 0.5
    %v2394 = vmul.f32 %v2318, 0.5
    %v2395 = vmul.f32 %v2320, 0.5
    %v2396 = vmul.f32 %v2324, 0.5
    %v2397 = vmul.f32 %v2326, 0.5
    %v2398 = vmul.f32 %v2328, 0.5
    %v2399 = vmul.f32 %v2330, 0.5
    %v2400 = vmul.f32 %v2334, 0.5
    %v2401 = vmul.f32 %v2336, 0.5
    %v2402 = vmul.f32 %v2338, 0.5
    %v2403 = vmul.f32 %v2340, 0.5
    %v2404 = vmul.f32 %v2344, 0.5
    %v2405 = vmul.f32 %v2346, 0.5
    %v2406 = vmul.f32 %v2348, 0.5
    %v2407 = vmul.f32 %v2350, 0.5
    %v2408 = vmul.f32 %v2354, 0.5
    %v2409 = vmul.f32 %v2356, 0.5
    %v2410 = vmul.f32 %v2358, 0.5
    %v2411 = vmul.f32 %v2360, 0.5
    %v2412 = vmul.f32 %v2364, 0.5
    %v2413 = vmul.f32 %v2366, 0.5
    %v2414 = vmul.f32 %v2368, 0.5
    %v2415 = vmul.f32 %v2370, 0.5
    %v2416 = vmul.f32 %v2374, 0.5
    %v2417 = vmul.f32 %v2376, 0.5
    %v2418 = vmul.f32 %v2378, 0.5
    %v2419 = vmul.f32 %v2380, 0.5
    %v2420 = vmul.f32 %v2384, 0.5
    %v2421 = vmul.f32 %v2386, 0.5
    %v2422 = vmul.f32 %v2388, 0.5
    %v2423 = vmul.f32 %v2390, 0.5
    %v2424 = vmul.f32 %v2314, 0.044715
    %v2425 = vmul.f32 %v2316, 0.044715
    %v2426 = vmul.f32 %v2318, 0.044715
    %v2427 = vmul.f32 %v2320, 0.044715
    %v2428 = vmul.f32 %v2324, 0.044715
    %v2429 = vmul.f32 %v2326, 0.044715
    %v2430 = vmul.f32 %v2328, 0.044715
    %v2431 = vmul.f32 %v2330, 0.044715
    %v2432 = vmul.f32 %v2334, 0.044715
    %v2433 = vmul.f32 %v2336, 0.044715
    %v2434 = vmul.f32 %v2338, 0.044715
    %v2435 = vmul.f32 %v2340, 0.044715
    %v2436 = vmul.f32 %v2344, 0.044715
    %v2437 = vmul.f32 %v2346, 0.044715
    %v2438 = vmul.f32 %v2348, 0.044715
    %v2439 = vmul.f32 %v2350, 0.044715
    %v2440 = vmul.f32 %v2354, 0.044715
    %v2441 = vmul.f32 %v2356, 0.044715
    %v2442 = vmul.f32 %v2358, 0.044715
    %v2443 = vmul.f32 %v2360, 0.044715
    %v2444 = vmul.f32 %v2364, 0.044715
    %v2445 = vmul.f32 %v2366, 0.044715
    %v2446 = vmul.f32 %v2368, 0.044715
    %v2447 = vmul.f32 %v2370, 0.044715
    %v2448 = vmul.f32 %v2374, 0.044715
    %v2449 = vmul.f32 %v2376, 0.044715
    %v2450 = vmul.f32 %v2378, 0.044715
    %v2451 = vmul.f32 %v2380, 0.044715
    %v2452 = vmul.f32 %v2384, 0.044715
    %v2453 = vmul.f32 %v2386, 0.044715
    %v2454 = vmul.f32 %v2388, 0.044715
    %v2455 = vmul.f32 %v2390, 0.044715
    %v2456 = vmul.f32 %v2424, %v2314
    %v2457 = vmul.f32 %v2425, %v2316
    %v2458 = vmul.f32 %v2426, %v2318
    %v2459 = vmul.f32 %v2427, %v2320
    %v2460 = vmul.f32 %v2428, %v2324
    %v2461 = vmul.f32 %v2429, %v2326
    %v2462 = vmul.f32 %v2430, %v2328
    %v2463 = vmul.f32 %v2431, %v2330
    %v2464 = vmul.f32 %v2432, %v2334
    %v2465 = vmul.f32 %v2433, %v2336
    %v2466 = vmul.f32 %v2434, %v2338
    %v2467 = vmul.f32 %v2435, %v2340
    %v2468 = vmul.f32 %v2436, %v2344
    %v2469 = vmul.f32 %v2437, %v2346
    %v2470 = vmul.f32 %v2438, %v2348
    %v2471 = vmul.f32 %v2439, %v2350
    %v2472 = vmul.f32 %v2440, %v2354
    %v2473 = vmul.f32 %v2441, %v2356
    %v2474 = vmul.f32 %v2442, %v2358
    %v2475 = vmul.f32 %v2443, %v2360
    %v2476 = vmul.f32 %v2444, %v2364
    %v2477 = vmul.f32 %v2445, %v2366
    %v2478 = vmul.f32 %v2446, %v2368
    %v2479 = vmul.f32 %v2447, %v2370
    %v2480 = vmul.f32 %v2448, %v2374
    %v2481 = vmul.f32 %v2449, %v2376
    %v2482 = vmul.f32 %v2450, %v2378
    %v2483 = vmul.f32 %v2451, %v2380
    %v2484 = vmul.f32 %v2452, %v2384
    %v2485 = vmul.f32 %v2453, %v2386
    %v2486 = vmul.f32 %v2454, %v2388
    %v2487 = vmul.f32 %v2455, %v2390
    %v2488 = vmul.f32 %v2456, %v2314
    %v2489 = vmul.f32 %v2457, %v2316
    %v2490 = vmul.f32 %v2458, %v2318
    %v2491 = vmul.f32 %v2459, %v2320
    %v2492 = vmul.f32 %v2460, %v2324
    %v2493 = vmul.f32 %v2461, %v2326
    %v2494 = vmul.f32 %v2462, %v2328
    %v2495 = vmul.f32 %v2463, %v2330
    %v2496 = vmul.f32 %v2464, %v2334
    %v2497 = vmul.f32 %v2465, %v2336
    %v2498 = vmul.f32 %v2466, %v2338
    %v2499 = vmul.f32 %v2467, %v2340
    %v2500 = vmul.f32 %v2468, %v2344
    %v2501 = vmul.f32 %v2469, %v2346
    %v2502 = vmul.f32 %v2470, %v2348
    %v2503 = vmul.f32 %v2471, %v2350
    %v2504 = vmul.f32 %v2472, %v2354
    %v2505 = vmul.f32 %v2473, %v2356
    %v2506 = vmul.f32 %v2474, %v2358
    %v2507 = vmul.f32 %v2475, %v2360
    %v2508 = vmul.f32 %v2476, %v2364
    %v2509 = vmul.f32 %v2477, %v2366
    %v2510 = vmul.f32 %v2478, %v2368
    %v2511 = vmul.f32 %v2479, %v2370
    %v2512 = vmul.f32 %v2480, %v2374
    %v2513 = vmul.f32 %v2481, %v2376
    %v2514 = vmul.f32 %v2482, %v2378
    %v2515 = vmul.f32 %v2483, %v2380
    %v2516 = vmul.f32 %v2484, %v2384
    %v2517 = vmul.f32 %v2485, %v2386
    %v2518 = vmul.f32 %v2486, %v2388
    %v2519 = vmul.f32 %v2487, %v2390
    %v2520 = vadd.f32 %v2314, %v2488
    %v2521 = vadd.f32 %v2316, %v2489
    %v2522 = vadd.f32 %v2318, %v2490
    %v2523 = vadd.f32 %v2320, %v2491
    %v2524 = vadd.f32 %v2324, %v2492
    %v2525 = vadd.f32 %v2326, %v2493
    %v2526 = vadd.f32 %v2328, %v2494
    %v2527 = vadd.f32 %v2330, %v2495
    %v2528 = vadd.f32 %v2334, %v2496
    %v2529 = vadd.f32 %v2336, %v2497
    %v2530 = vadd.f32 %v2338, %v2498
    %v2531 = vadd.f32 %v2340, %v2499
    %v2532 = vadd.f32 %v2344, %v2500
    %v2533 = vadd.f32 %v2346, %v2501
    %v2534 = vadd.f32 %v2348, %v2502
    %v2535 = vadd.f32 %v2350, %v2503
    %v2536 = vadd.f32 %v2354, %v2504
    %v2537 = vadd.f32 %v2356, %v2505
    %v2538 = vadd.f32 %v2358, %v2506
    %v2539 = vadd.f32 %v2360, %v2507
    %v2540 = vadd.f32 %v2364, %v2508
    %v2541 = vadd.f32 %v2366, %v2509
    %v2542 = vadd.f32 %v2368, %v2510
    %v2543 = vadd.f32 %v2370, %v2511
    %v2544 = vadd.f32 %v2374, %v2512
    %v2545 = vadd.f32 %v2376, %v2513
    %v2546 = vadd.f32 %v2378, %v2514
    %v2547 = vadd.f32 %v2380, %v2515
    %v2548 = vadd.f32 %v2384, %v2516
    %v2549 = vadd.f32 %v2386, %v2517
    %v2550 = vadd.f32 %v2388, %v2518
    %v2551 = vadd.f32 %v2390, %v2519
    %v2552 = vmul.f32 %v2520, 0.7978846
    %v2553 = vmul.f32 %v2521, 0.7978846
    %v2554 = vmul.f32 %v2522, 0.7978846
    %v2555 = vmul.f32 %v2523, 0.7978846
    %v2556 = vmul.f32 %v2524, 0.7978846
    %v2557 = vmul.f32 %v2525, 0.7978846
    %v2558 = vmul.f32 %v2526, 0.7978846
    %v2559 = vmul.f32 %v2527, 0.7978846
    %v2560 = vmul.f32 %v2528, 0.7978846
    %v2561 = vmul.f32 %v2529, 0.7978846
    %v2562 = vmul.f32 %v2530, 0.7978846
    %v2563 = vmul.f32 %v2531, 0.7978846
    %v2564 = vmul.f32 %v2532, 0.7978846
    %v2565 = vmul.f32 %v2533, 0.7978846
    %v2566 = vmul.f32 %v2534, 0.7978846
    %v2567 = vmul.f32 %v2535, 0.7978846
    %v2568 = vmul.f32 %v2536, 0.7978846
    %v2569 = vmul.f32 %v2537, 0.7978846
    %v2570 = vmul.f32 %v2538, 0.7978846
    %v2571 = vmul.f32 %v2539, 0.7978846
    %v2572 = vmul.f32 %v2540, 0.7978846
    %v2573 = vmul.f32 %v2541, 0.7978846
    %v2574 = vmul.f32 %v2542, 0.7978846
    %v2575 = vmul.f32 %v2543, 0.7978846
    %v2576 = vmul.f32 %v2544, 0.7978846
    %v2577 = vmul.f32 %v2545, 0.7978846
    %v2578 = vmul.f32 %v2546, 0.7978846
    %v2579 = vmul.f32 %v2547, 0.7978846
    %v2580 = vmul.f32 %v2548, 0.7978846
    %v2581 = vmul.f32 %v2549, 0.7978846
    %v2582 = vmul.f32 %v2550, 0.7978846
    %v2583 = vmul.f32 %v2551, 0.7978846
    %v2584 = vtanh.pop %v2552
    %v2585 = vtanh.pop %v2553
    %v2586 = vtanh.pop %v2554
    %v2587 = vtanh.pop %v2555
    %v2588 = vtanh.pop %v2556
    %v2589 = vtanh.pop %v2557
    %v2590 = vtanh.pop %v2558
    %v2591 = vtanh.pop %v2559
    %v2592 = vtanh.pop %v2560
    %v2593 = vtanh.pop %v2561
    %v2594 = vtanh.pop %v2562
    %v2595 = vtanh.pop %v2563
    %v2596 = vtanh.pop %v2564
    %v2597 = vtanh.pop %v2565
    %v2598 = vtanh.pop %v2566
    %v2599 = vtanh.pop %v2567
    %v2600 = vtanh.pop %v2568
    %v2601 = vtanh.pop %v2569
    %v2602 = vtanh.pop %v2570
    %v2603 = vtanh.pop %v2571
    %v2604 = vtanh.pop %v2572
    %v2605 = vtanh.pop %v2573
    %v2606 = vtanh.pop %v2574
    %v2607 = vtanh.pop %v2575
    %v2608 = vtanh.pop %v2576
    %v2609 = vtanh.pop %v2577
    %v2610 = vtanh.pop %v2578
    %v2611 = vtanh.pop %v2579
    %v2612 = vtanh.pop %v2580
    %v2613 = vtanh.pop %v2581
    %v2614 = vtanh.pop %v2582
    %v2615 = vtanh.pop %v2583
    %v2616 = vadd.f32 %v2584, 1.0
    %v2617 = vadd.f32 %v2585, 1.0
    %v2618 = vadd.f32 %v2586, 1.0
    %v2619 = vadd.f32 %v2587, 1.0
    %v2620 = vadd.f32 %v2588, 1.0
    %v2621 = vadd.f32 %v2589, 1.0
    %v2622 = vadd.f32 %v2590, 1.0
    %v2623 = vadd.f32 %v2591, 1.0
    %v2624 = vadd.f32 %v2592, 1.0
    %v2625 = vadd.f32 %v2593, 1.0
    %v2626 = vadd.f32 %v2594, 1.0
    %v2627 = vadd.f32 %v2595, 1.0
    %v2628 = vadd.f32 %v2596, 1.0
    %v2629 = vadd.f32 %v2597, 1.0
    %v2630 = vadd.f32 %v2598, 1.0
    %v2631 = vadd.f32 %v2599, 1.0
    %v2632 = vadd.f32 %v2600, 1.0
    %v2633 = vadd.f32 %v2601, 1.0
    %v2634 = vadd.f32 %v2602, 1.0
    %v2635 = vadd.f32 %v2603, 1.0
    %v2636 = vadd.f32 %v2604, 1.0
    %v2637 = vadd.f32 %v2605, 1.0
    %v2638 = vadd.f32 %v2606, 1.0
    %v2639 = vadd.f32 %v2607, 1.0
    %v2640 = vadd.f32 %v2608, 1.0
    %v2641 = vadd.f32 %v2609, 1.0
    %v2642 = vadd.f32 %v2610, 1.0
    %v2643 = vadd.f32 %v2611, 1.0
    %v2644 = vadd.f32 %v2612, 1.0
    %v2645 = vadd.f32 %v2613, 1.0
    %v2646 = vadd.f32 %v2614, 1.0
    %v2647 = vadd.f32 %v2615, 1.0
    %v2648 = vmul.f32 %v2392, %v2616
    %v2649 = vmul.f32 %v2393, %v2617
    %v2650 = vmul.f32 %v2394, %v2618
    %v2651 = vmul.f32 %v2395, %v2619
    %v2652 = vmul.f32 %v2396, %v2620
    %v2653 = vmul.f32 %v2397, %v2621
    %v2654 = vmul.f32 %v2398, %v2622
    %v2655 = vmul.f32 %v2399, %v2623
    %v2656 = vmul.f32 %v2400, %v2624
    %v2657 = vmul.f32 %v2401, %v2625
    %v2658 = vmul.f32 %v2402, %v2626
    %v2659 = vmul.f32 %v2403, %v2627
    %v2660 = vmul.f32 %v2404, %v2628
    %v2661 = vmul.f32 %v2405, %v2629
    %v2662 = vmul.f32 %v2406, %v2630
    %v2663 = vmul.f32 %v2407, %v2631
    %v2664 = vmul.f32 %v2408, %v2632
    %v2665 = vmul.f32 %v2409, %v2633
    %v2666 = vmul.f32 %v2410, %v2634
    %v2667 = vmul.f32 %v2411, %v2635
    %v2668 = vmul.f32 %v2412, %v2636
    %v2669 = vmul.f32 %v2413, %v2637
    %v2670 = vmul.f32 %v2414, %v2638
    %v2671 = vmul.f32 %v2415, %v2639
    %v2672 = vmul.f32 %v2416, %v2640
    %v2673 = vmul.f32 %v2417, %v2641
    %v2674 = vmul.f32 %v2418, %v2642
    %v2675 = vmul.f32 %v2419, %v2643
    %v2676 = vmul.f32 %v2420, %v2644
    %v2677 = vmul.f32 %v2421, %v2645
    %v2678 = vmul.f32 %v2422, %v2646
    %v2679 = vmul.f32 %v2423, %v2647
    %v2680 = vpack.c.bf16 %v2650, %v2648
    %v2681 = vpack.c.bf16 %v2651, %v2649
    %v2682 = vpack.c.bf16 %v2654, %v2652
    %v2683 = vpack.c.bf16 %v2655, %v2653
    %v2684 = vpack.c.bf16 %v2658, %v2656
    %v2685 = vpack.c.bf16 %v2659, %v2657
    %v2686 = vpack.c.bf16 %v2662, %v2660
    %v2687 = vpack.c.bf16 %v2663, %v2661
    %v2688 = vpack.c.bf16 %v2666, %v2664
    %v2689 = vpack.c.bf16 %v2667, %v2665
    %v2690 = vpack.c.bf16 %v2670, %v2668
    %v2691 = vpack.c.bf16 %v2671, %v2669
    %v2692 = vpack.c.bf16 %v2674, %v2672
    %v2693 = vpack.c.bf16 %v2675, %v2673
    %v2694 = vpack.c.bf16 %v2678, %v2676
    %v2695 = vpack.c.bf16 %v2679, %v2677
    %v2696 = vld [vmem:[#allocation8] sm:$0xff]
    %v2697 = vld [vmem:[#allocation8 + $0x8] sm:$0xff]
    %v2698 = vld [vmem:[#allocation8 + $0x10] sm:$0xff]
    %v2699 = vld [vmem:[#allocation8 + $0x18] sm:$0xff]
    %v2700 = vld [vmem:[#allocation8 + $0x20] sm:$0xff]
    %v2701 = vld [vmem:[#allocation8 + $0x28] sm:$0xff]
    %v2702 = vld [vmem:[#allocation8 + $0x30] sm:$0xff]
    %v2703 = vld [vmem:[#allocation8 + $0x38] sm:$0xff]
    %v2704 = vld [vmem:[#allocation8 + $0x40] sm:$0xff]
    %v2705 = vld [vmem:[#allocation8 + $0x48] sm:$0xff]
    %v2706 = vld [vmem:[#allocation8 + $0x50] sm:$0xff]
    %v2707 = vld [vmem:[#allocation8 + $0x58] sm:$0xff]
    %v2708 = vld [vmem:[#allocation8 + $0x60] sm:$0xff]
    %v2709 = vld [vmem:[#allocation8 + $0x68] sm:$0xff]
    %v2710 = vld [vmem:[#allocation8 + $0x70] sm:$0xff]
    %v2711 = vld [vmem:[#allocation8 + $0x78] sm:$0xff]
    %v2712 = vld [vmem:[#allocation8 + $0x80] sm:$0xff]
    %v2713 = vld [vmem:[#allocation8 + $0x88] sm:$0xff]
    %v2714 = vld [vmem:[#allocation8 + $0x90] sm:$0xff]
    %v2715 = vld [vmem:[#allocation8 + $0x98] sm:$0xff]
    %v2716 = vld [vmem:[#allocation8 + $0xa0] sm:$0xff]
    %v2717 = vld [vmem:[#allocation8 + $0xa8] sm:$0xff]
    %v2718 = vld [vmem:[#allocation8 + $0xb0] sm:$0xff]
    %v2719 = vld [vmem:[#allocation8 + $0xb8] sm:$0xff]
    %v2720 = vld [vmem:[#allocation8 + $0xc0] sm:$0xff]
    %v2721 = vld [vmem:[#allocation8 + $0xc8] sm:$0xff]
    %v2722 = vld [vmem:[#allocation8 + $0xd0] sm:$0xff]
    %v2723 = vld [vmem:[#allocation8 + $0xd8] sm:$0xff]
    %v2724 = vld [vmem:[#allocation8 + $0xe0] sm:$0xff]
    %v2725 = vld [vmem:[#allocation8 + $0xe8] sm:$0xff]
    %v2726 = vld [vmem:[#allocation8 + $0xf0] sm:$0xff]
    %v2727 = vld [vmem:[#allocation8 + $0xf8] sm:$0xff]
    %v2728 = vld [vmem:[#allocation8 + $0x100] sm:$0xff]
    %v2729 = vld [vmem:[#allocation8 + $0x108] sm:$0xff]
    %v2730 = vld [vmem:[#allocation8 + $0x110] sm:$0xff]
    %v2731 = vld [vmem:[#allocation8 + $0x118] sm:$0xff]
    %v2732 = vld [vmem:[#allocation8 + $0x120] sm:$0xff]
    %v2733 = vld [vmem:[#allocation8 + $0x128] sm:$0xff]
    %v2734 = vld [vmem:[#allocation8 + $0x130] sm:$0xff]
    %v2735 = vld [vmem:[#allocation8 + $0x138] sm:$0xff]
    %v2736 = vld [vmem:[#allocation8 + $0x140] sm:$0xff]
    %v2737 = vld [vmem:[#allocation8 + $0x148] sm:$0xff]
    %v2738 = vld [vmem:[#allocation8 + $0x150] sm:$0xff]
    %v2739 = vld [vmem:[#allocation8 + $0x158] sm:$0xff]
    %v2740 = vld [vmem:[#allocation8 + $0x160] sm:$0xff]
    %v2741 = vld [vmem:[#allocation8 + $0x168] sm:$0xff]
    %v2742 = vld [vmem:[#allocation8 + $0x170] sm:$0xff]
    %v2743 = vld [vmem:[#allocation8 + $0x178] sm:$0xff]
    %v2744 = vld [vmem:[#allocation8 + $0x180] sm:$0xff]
    %v2745 = vld [vmem:[#allocation8 + $0x188] sm:$0xff]
    %v2746 = vld [vmem:[#allocation8 + $0x190] sm:$0xff]
    %v2747 = vld [vmem:[#allocation8 + $0x198] sm:$0xff]
    %v2748 = vld [vmem:[#allocation8 + $0x1a0] sm:$0xff]
    %v2749 = vld [vmem:[#allocation8 + $0x1a8] sm:$0xff]
    %v2750 = vld [vmem:[#allocation8 + $0x1b0] sm:$0xff]
    %v2751 = vld [vmem:[#allocation8 + $0x1b8] sm:$0xff]
    %v2752 = vld [vmem:[#allocation8 + $0x1c0] sm:$0xff]
    %v2753 = vld [vmem:[#allocation8 + $0x1c8] sm:$0xff]
    %v2754 = vld [vmem:[#allocation8 + $0x1d0] sm:$0xff]
    %v2755 = vld [vmem:[#allocation8 + $0x1d8] sm:$0xff]
    %v2756 = vld [vmem:[#allocation8 + $0x1e0] sm:$0xff]
    %v2757 = vld [vmem:[#allocation8 + $0x1e8] sm:$0xff]
    %v2758 = vld [vmem:[#allocation8 + $0x1f0] sm:$0xff]
    %v2759 = vld [vmem:[#allocation8 + $0x1f8] sm:$0xff]
    %v2760 = vld [vmem:[%s13] sm:$0xf]
    %v2762 = vlaneseq
    %v2763 = vshrl.u32 %v2762, 7
    %v2764 = vsub.s32 0, %v2763
    %v2765 = vrot.slane %v2760, %v2764
    %v2766 = vlaneseq
    %v2767 = vshrl.u32 %v2766, 7
    %v2768 = vsub.s32 1, %v2767
    %v2769 = vrot.slane %v2760, %v2768
    %v2770 = vlaneseq
    %v2771 = vshrl.u32 %v2770, 7
    %v2772 = vsub.s32 2, %v2771
    %v2773 = vrot.slane %v2760, %v2772
    %v2774 = vlaneseq
    %v2775 = vshrl.u32 %v2774, 7
    %v2776 = vsub.s32 3, %v2775
    %v2777 = vrot.slane %v2760, %v2776
    %v2846 = vunpack.c.l.b16 %v2696
    %v2847 = vunpack.c.h.b16 %v2696
    %v2848 = vunpack.c.l.b16 %v2697
    %v2849 = vunpack.c.h.b16 %v2697
    %v2850 = vunpack.c.l.b16 %v2698
    %v2851 = vunpack.c.h.b16 %v2698
    %v2852 = vunpack.c.l.b16 %v2699
    %v2853 = vunpack.c.h.b16 %v2699
    %v2854 = vunpack.c.l.b16 %v2700
    %v2855 = vunpack.c.h.b16 %v2700
    %v2856 = vunpack.c.l.b16 %v2701
    %v2857 = vunpack.c.h.b16 %v2701
    %v2858 = vunpack.c.l.b16 %v2702
    %v2859 = vunpack.c.h.b16 %v2702
    %v2860 = vunpack.c.l.b16 %v2703
    %v2861 = vunpack.c.h.b16 %v2703
    %v2862 = vunpack.c.l.b16 %v2704
    %v2863 = vunpack.c.h.b16 %v2704
    %v2864 = vunpack.c.l.b16 %v2705
    %v2865 = vunpack.c.h.b16 %v2705
    %v2866 = vunpack.c.l.b16 %v2706
    %v2867 = vunpack.c.h.b16 %v2706
    %v2868 = vunpack.c.l.b16 %v2707
    %v2869 = vunpack.c.h.b16 %v2707
    %v2870 = vunpack.c.l.b16 %v2708
    %v2871 = vunpack.c.h.b16 %v2708
    %v2872 = vunpack.c.l.b16 %v2709
    %v2873 = vunpack.c.h.b16 %v2709
    %v2874 = vunpack.c.l.b16 %v2710
    %v2875 = vunpack.c.h.b16 %v2710
    %v2876 = vunpack.c.l.b16 %v2711
    %v2877 = vunpack.c.h.b16 %v2711
    %v2878 = vunpack.c.l.b16 %v2712
    %v2879 = vunpack.c.h.b16 %v2712
    %v2880 = vunpack.c.l.b16 %v2713
    %v2881 = vunpack.c.h.b16 %v2713
    %v2882 = vunpack.c.l.b16 %v2714
    %v2883 = vunpack.c.h.b16 %v2714
    %v2884 = vunpack.c.l.b16 %v2715
    %v2885 = vunpack.c.h.b16 %v2715
    %v2886 = vunpack.c.l.b16 %v2716
    %v2887 = vunpack.c.h.b16 %v2716
    %v2888 = vunpack.c.l.b16 %v2717
    %v2889 = vunpack.c.h.b16 %v2717
    %v2890 = vunpack.c.l.b16 %v2718
    %v2891 = vunpack.c.h.b16 %v2718
    %v2892 = vunpack.c.l.b16 %v2719
    %v2893 = vunpack.c.h.b16 %v2719
    %v2894 = vunpack.c.l.b16 %v2720
    %v2895 = vunpack.c.h.b16 %v2720
    %v2896 = vunpack.c.l.b16 %v2721
    %v2897 = vunpack.c.h.b16 %v2721
    %v2898 = vunpack.c.l.b16 %v2722
    %v2899 = vunpack.c.h.b16 %v2722
    %v2900 = vunpack.c.l.b16 %v2723
    %v2901 = vunpack.c.h.b16 %v2723
    %v2902 = vunpack.c.l.b16 %v2724
    %v2903 = vunpack.c.h.b16 %v2724
    %v2904 = vunpack.c.l.b16 %v2725
    %v2905 = vunpack.c.h.b16 %v2725
    %v2906 = vunpack.c.l.b16 %v2726
    %v2907 = vunpack.c.h.b16 %v2726
    %v2908 = vunpack.c.l.b16 %v2727
    %v2909 = vunpack.c.h.b16 %v2727
    %v2910 = vunpack.c.l.b16 %v2728
    %v2911 = vunpack.c.h.b16 %v2728
    %v2912 = vunpack.c.l.b16 %v2729
    %v2913 = vunpack.c.h.b16 %v2729
    %v2914 = vunpack.c.l.b16 %v2730
    %v2915 = vunpack.c.h.b16 %v2730
    %v2916 = vunpack.c.l.b16 %v2731
    %v2917 = vunpack.c.h.b16 %v2731
    %v2918 = vunpack.c.l.b16 %v2732
    %v2919 = vunpack.c.h.b16 %v2732
    %v2920 = vunpack.c.l.b16 %v2733
    %v2921 = vunpack.c.h.b16 %v2733
    %v2922 = vunpack.c.l.b16 %v2734
    %v2923 = vunpack.c.h.b16 %v2734
    %v2924 = vunpack.c.l.b16 %v2735
    %v2925 = vunpack.c.h.b16 %v2735
    %v2926 = vunpack.c.l.b16 %v2736
    %v2927 = vunpack.c.h.b16 %v2736
    %v2928 = vunpack.c.l.b16 %v2737
    %v2929 = vunpack.c.h.b16 %v2737
    %v2930 = vunpack.c.l.b16 %v2738
    %v2931 = vunpack.c.h.b16 %v2738
    %v2932 = vunpack.c.l.b16 %v2739
    %v2933 = vunpack.c.h.b16 %v2739
    %v2934 = vunpack.c.l.b16 %v2740
    %v2935 = vunpack.c.h.b16 %v2740
    %v2936 = vunpack.c.l.b16 %v2741
    %v2937 = vunpack.c.h.b16 %v2741
    %v2938 = vunpack.c.l.b16 %v2742
    %v2939 = vunpack.c.h.b16 %v2742
    %v2940 = vunpack.c.l.b16 %v2743
    %v2941 = vunpack.c.h.b16 %v2743
    %v2942 = vunpack.c.l.b16 %v2744
    %v2943 = vunpack.c.h.b16 %v2744
    %v2944 = vunpack.c.l.b16 %v2745
    %v2945 = vunpack.c.h.b16 %v2745
    %v2946 = vunpack.c.l.b16 %v2746
    %v2947 = vunpack.c.h.b16 %v2746
    %v2948 = vunpack.c.l.b16 %v2747
    %v2949 = vunpack.c.h.b16 %v2747
    %v2950 = vunpack.c.l.b16 %v2748
    %v2951 = vunpack.c.h.b16 %v2748
    %v2952 = vunpack.c.l.b16 %v2749
    %v2953 = vunpack.c.h.b16 %v2749
    %v2954 = vunpack.c.l.b16 %v2750
    %v2955 = vunpack.c.h.b16 %v2750
    %v2956 = vunpack.c.l.b16 %v2751
    %v2957 = vunpack.c.h.b16 %v2751
    %v2958 = vunpack.c.l.b16 %v2752
    %v2959 = vunpack.c.h.b16 %v2752
    %v2960 = vunpack.c.l.b16 %v2753
    %v2961 = vunpack.c.h.b16 %v2753
    %v2962 = vunpack.c.l.b16 %v2754
    %v2963 = vunpack.c.h.b16 %v2754
    %v2964 = vunpack.c.l.b16 %v2755
    %v2965 = vunpack.c.h.b16 %v2755
    %v2966 = vunpack.c.l.b16 %v2756
    %v2967 = vunpack.c.h.b16 %v2756
    %v2968 = vunpack.c.l.b16 %v2757
    %v2969 = vunpack.c.h.b16 %v2757
    %v2970 = vunpack.c.l.b16 %v2758
    %v2971 = vunpack.c.h.b16 %v2758
    %v2972 = vunpack.c.l.b16 %v2759
    %v2973 = vunpack.c.h.b16 %v2759
    %v2974 = vpack.c.b16 %v2850, %v2846
    %v2975 = vpack.c.b16 %v2851, %v2847
    %v2976 = vpack.c.b16 %v2852, %v2848
    %v2977 = vpack.c.b16 %v2853, %v2849
    %v2978 = vpack.c.b16 %v2858, %v2854
    %v2979 = vpack.c.b16 %v2859, %v2855
    %v2980 = vpack.c.b16 %v2860, %v2856
    %v2981 = vpack.c.b16 %v2861, %v2857
    %v2982 = vpack.c.b16 %v2866, %v2862
    %v2983 = vpack.c.b16 %v2867, %v2863
    %v2984 = vpack.c.b16 %v2868, %v2864
    %v2985 = vpack.c.b16 %v2869, %v2865
    %v2986 = vpack.c.b16 %v2874, %v2870
    %v2987 = vpack.c.b16 %v2875, %v2871
    %v2988 = vpack.c.b16 %v2876, %v2872
    %v2989 = vpack.c.b16 %v2877, %v2873
    %v2990 = vpack.c.b16 %v2882, %v2878
    %v2991 = vpack.c.b16 %v2883, %v2879
    %v2992 = vpack.c.b16 %v2884, %v2880
    %v2993 = vpack.c.b16 %v2885, %v2881
    %v2994 = vpack.c.b16 %v2890, %v2886
    %v2995 = vpack.c.b16 %v2891, %v2887
    %v2996 = vpack.c.b16 %v2892, %v2888
    %v2997 = vpack.c.b16 %v2893, %v2889
    %v2998 = vpack.c.b16 %v2898, %v2894
    %v2999 = vpack.c.b16 %v2899, %v2895
    %v3000 = vpack.c.b16 %v2900, %v2896
    %v3001 = vpack.c.b16 %v2901, %v2897
    %v3002 = vpack.c.b16 %v2906, %v2902
    %v3003 = vpack.c.b16 %v2907, %v2903
    %v3004 = vpack.c.b16 %v2908, %v2904
    %v3005 = vpack.c.b16 %v2909, %v2905
    %v3006 = vpack.c.b16 %v2914, %v2910
    %v3007 = vpack.c.b16 %v2915, %v2911
    %v3008 = vpack.c.b16 %v2916, %v2912
    %v3009 = vpack.c.b16 %v2917, %v2913
    %v3010 = vpack.c.b16 %v2922, %v2918
    %v3011 = vpack.c.b16 %v2923, %v2919
    %v3012 = vpack.c.b16 %v2924, %v2920
    %v3013 = vpack.c.b16 %v2925, %v2921
    %v3014 = vpack.c.b16 %v2930, %v2926
    %v3015 = vpack.c.b16 %v2931, %v2927
    %v3016 = vpack.c.b16 %v2932, %v2928
    %v3017 = vpack.c.b16 %v2933, %v2929
    %v3018 = vpack.c.b16 %v2938, %v2934
    %v3019 = vpack.c.b16 %v2939, %v2935
    %v3020 = vpack.c.b16 %v2940, %v2936
    %v3021 = vpack.c.b16 %v2941, %v2937
    %v3022 = vpack.c.b16 %v2946, %v2942
    %v3023 = vpack.c.b16 %v2947, %v2943
    %v3024 = vpack.c.b16 %v2948, %v2944
    %v3025 = vpack.c.b16 %v2949, %v2945
    %v3026 = vpack.c.b16 %v2954, %v2950
    %v3027 = vpack.c.b16 %v2955, %v2951
    %v3028 = vpack.c.b16 %v2956, %v2952
    %v3029 = vpack.c.b16 %v2957, %v2953
    %v3030 = vpack.c.b16 %v2962, %v2958
    %v3031 = vpack.c.b16 %v2963, %v2959
    %v3032 = vpack.c.b16 %v2964, %v2960
    %v3033 = vpack.c.b16 %v2965, %v2961
    %v3034 = vpack.c.b16 %v2970, %v2966
    %v3035 = vpack.c.b16 %v2971, %v2967
    %v3036 = vpack.c.b16 %v2972, %v2968
    %v3037 = vpack.c.b16 %v2973, %v2969
    %3102 = vmatprep.subr.bf16.mxu0 %v2975
    %3103 = vmatpush1.bf16.msra.mxu0 %v2974
    %3104 = vmatprep.subr.bf16.mxu0 %v2979
    %3105 = vmatpush1.bf16.msra.mxu0 %v2978
    %3106 = vmatprep.subr.bf16.mxu0 %v2983
    %3107 = vmatpush1.bf16.msra.mxu0 %v2982
    %3108 = vmatprep.subr.bf16.mxu0 %v2987
    %3109 = vmatpush1.bf16.msra.mxu0 %v2986
    %3110 = vmatprep.subr.bf16.mxu0 %v2991
    %3111 = vmatpush1.bf16.msra.mxu0 %v2990
    %3112 = vmatprep.subr.bf16.mxu0 %v2995
    %3113 = vmatpush1.bf16.msra.mxu0 %v2994
    %3114 = vmatprep.subr.bf16.mxu0 %v2999
    %3115 = vmatpush1.bf16.msra.mxu0 %v2998
    %3116 = vmatprep.subr.bf16.mxu0 %v3003
    %3117 = vmatpush1.bf16.msra.mxu0 %v3002
    %3118 = vmatprep.subr.bf16.mxu0 %v3007
    %3119 = vmatpush1.bf16.msra.mxu0 %v3006
    %3120 = vmatprep.subr.bf16.mxu0 %v3011
    %3121 = vmatpush1.bf16.msra.mxu0 %v3010
    %3122 = vmatprep.subr.bf16.mxu0 %v3015
    %3123 = vmatpush1.bf16.msra.mxu0 %v3014
    %3124 = vmatprep.subr.bf16.mxu0 %v3019
    %3125 = vmatpush1.bf16.msra.mxu0 %v3018
    %3126 = vmatprep.subr.bf16.mxu0 %v3023
    %3127 = vmatpush1.bf16.msra.mxu0 %v3022
    %3128 = vmatprep.subr.bf16.mxu0 %v3027
    %3129 = vmatpush1.bf16.msra.mxu0 %v3026
    %3130 = vmatprep.subr.bf16.mxu0 %v3031
    %3131 = vmatpush1.bf16.msra.mxu0 %v3030
    %3132 = vmatprep.subr.bf16.mxu0 %v3035
    %3133 = vmatpush1.bf16.msra.mxu0 %v3034
    %3134 = vmatprep.mubr.bf16.mxu0 %v2681
    %3135 = vmatmul.mubr.bf16.gmra.mrb[0].mxu0 %v2680
    %v3136 = vpop.f32.mrb[0].mxu0
    %v3137 = vadd.f32 %v2765, %v3136
    %v3138 = vpop.f32.mrb[0].mxu0
    %v3139 = vadd.f32 %v2769, %v3138
    %v3140 = vpop.f32.mrb[0].mxu0
    %v3141 = vadd.f32 %v2765, %v3140
    %v3142 = vpop.f32.mrb[0].mxu0
    %v3143 = vadd.f32 %v2769, %v3142
    %3144 = vmatprep.mubr.bf16.mxu0 %v2683
    %3145 = vmatmul.mubr.bf16.gmra.mrb[0].mxu0 %v2682
    %v3146 = vpop.f32.mrb[0].mxu0
    %v3147 = vadd.f32 %v2765, %v3146
    %v3148 = vpop.f32.mrb[0].mxu0
    %v3149 = vadd.f32 %v2769, %v3148
    %v3150 = vpop.f32.mrb[0].mxu0
    %v3151 = vadd.f32 %v2765, %v3150
    %v3152 = vpop.f32.mrb[0].mxu0
    %v3153 = vadd.f32 %v2769, %v3152
    %3154 = vmatprep.mubr.bf16.mxu0 %v2685
    %3155 = vmatmul.mubr.bf16.gmra.mrb[0].mxu0 %v2684
    %v3156 = vpop.f32.mrb[0].mxu0
    %v3157 = vadd.f32 %v2765, %v3156
    %v3158 = vpop.f32.mrb[0].mxu0
    %v3159 = vadd.f32 %v2769, %v3158
    %v3160 = vpop.f32.mrb[0].mxu0
    %v3161 = vadd.f32 %v2765, %v3160
    %v3162 = vpop.f32.mrb[0].mxu0
    %v3163 = vadd.f32 %v2769, %v3162
    %3164 = vmatprep.mubr.bf16.mxu0 %v2687
    %3165 = vmatmul.mubr.bf16.gmra.mrb[0].mxu0 %v2686
    %v3166 = vpop.f32.mrb[0].mxu0
    %v3167 = vadd.f32 %v2765, %v3166
    %v3168 = vpop.f32.mrb[0].mxu0
    %v3169 = vadd.f32 %v2769, %v3168
    %v3170 = vpop.f32.mrb[0].mxu0
    %v3171 = vadd.f32 %v2765, %v3170
    %v3172 = vpop.f32.mrb[0].mxu0
    %v3173 = vadd.f32 %v2769, %v3172
    %3174 = vmatprep.mubr.bf16.mxu0 %v2689
    %3175 = vmatmul.mubr.bf16.gmra.mrb[0].mxu0 %v2688
    %v3176 = vpop.f32.mrb[0].mxu0
    %v3177 = vadd.f32 %v2765, %v3176
    %v3178 = vpop.f32.mrb[0].mxu0
    %v3179 = vadd.f32 %v2769, %v3178
    %v3180 = vpop.f32.mrb[0].mxu0
    %v3181 = vadd.f32 %v2765, %v3180
    %v3182 = vpop.f32.mrb[0].mxu0
    %v3183 = vadd.f32 %v2769, %v3182
    %3184 = vmatprep.mubr.bf16.mxu0 %v2691
    %3185 = vmatmul.mubr.bf16.gmra.mrb[0].mxu0 %v2690
    %v3186 = vpop.f32.mrb[0].mxu0
    %v3187 = vadd.f32 %v2765, %v3186
    %v3188 = vpop.f32.mrb[0].mxu0
    %v3189 = vadd.f32 %v2769, %v3188
    %v3190 = vpop.f32.mrb[0].mxu0
    %v3191 = vadd.f32 %v2765, %v3190
    %v3192 = vpop.f32.mrb[0].mxu0
    %v3193 = vadd.f32 %v2769, %v3192
    %3194 = vmatprep.mubr.bf16.mxu0 %v2693
    %3195 = vmatmul.mubr.bf16.gmra.mrb[0].mxu0 %v2692
    %v3196 = vpop.f32.mrb[0].mxu0
    %v3197 = vadd.f32 %v2765, %v3196
    %v3198 = vpop.f32.mrb[0].mxu0
    %v3199 = vadd.f32 %v2769, %v3198
    %v3200 = vpop.f32.mrb[0].mxu0
    %v3201 = vadd.f32 %v2765, %v3200
    %v3202 = vpop.f32.mrb[0].mxu0
    %v3203 = vadd.f32 %v2769, %v3202
    %3204 = vmatprep.mubr.bf16.mxu0 %v2695
    %3205 = vmatmul.mubr.bf16.gmra.mrb[0].mxu0 %v2694
    %v3206 = vpop.f32.mrb[0].mxu0
    %v3207 = vadd.f32 %v2765, %v3206
    %v3208 = vpop.f32.mrb[0].mxu0
    %v3209 = vadd.f32 %v2769, %v3208
    %v3210 = vpop.f32.mrb[0].mxu0
    %v3211 = vadd.f32 %v2765, %v3210
    %v3212 = vpop.f32.mrb[0].mxu0
    %v3213 = vadd.f32 %v2769, %v3212
    %3214 = vdwg.mxu0
    %3215 = vmatprep.subr.bf16.mxu0 %v2977
    %3216 = vmatpush1.bf16.msra.mxu0 %v2976
    %3217 = vmatprep.subr.bf16.mxu0 %v2981
    %3218 = vmatpush1.bf16.msra.mxu0 %v2980
    %3219 = vmatprep.subr.bf16.mxu0 %v2985
    %3220 = vmatpush1.bf16.msra.mxu0 %v2984
    %3221 = vmatprep.subr.bf16.mxu0 %v2989
    %3222 = vmatpush1.bf16.msra.mxu0 %v2988
    %3223 = vmatprep.subr.bf16.mxu0 %v2993
    %3224 = vmatpush1.bf16.msra.mxu0 %v2992
    %3225 = vmatprep.subr.bf16.mxu0 %v2997
    %3226 = vmatpush1.bf16.msra.mxu0 %v2996
    %3227 = vmatprep.subr.bf16.mxu0 %v3001
    %3228 = vmatpush1.bf16.msra.mxu0 %v3000
    %3229 = vmatprep.subr.bf16.mxu0 %v3005
    %3230 = vmatpush1.bf16.msra.mxu0 %v3004
    %3231 = vmatprep.subr.bf16.mxu0 %v3009
    %3232 = vmatpush1.bf16.msra.mxu0 %v3008
    %3233 = vmatprep.subr.bf16.mxu0 %v3013
    %3234 = vmatpush1.bf16.msra.mxu0 %v3012
    %3235 = vmatprep.subr.bf16.mxu0 %v3017
    %3236 = vmatpush1.bf16.msra.mxu0 %v3016
    %3237 = vmatprep.subr.bf16.mxu0 %v3021
    %3238 = vmatpush1.bf16.msra.mxu0 %v3020
    %3239 = vmatprep.subr.bf16.mxu0 %v3025
    %3240 = vmatpush1.bf16.msra.mxu0 %v3024
    %3241 = vmatprep.subr.bf16.mxu0 %v3029
    %3242 = vmatpush1.bf16.msra.mxu0 %v3028
    %3243 = vmatprep.subr.bf16.mxu0 %v3033
    %3244 = vmatpush1.bf16.msra.mxu0 %v3032
    %3245 = vmatprep.subr.bf16.mxu0 %v3037
    %3246 = vmatpush1.bf16.msra.mxu0 %v3036
    %3247 = vmatprep.mubr.bf16.mxu0 %v2681
    %3248 = vmatmul.mubr.bf16.gmra.mrb[0].mxu0 %v2680
    %v3249 = vpop.f32.mrb[0].mxu0
    %v3250 = vadd.f32 %v2773, %v3249
    %v3251 = vpop.f32.mrb[0].mxu0
    %v3252 = vadd.f32 %v2777, %v3251
    %v3253 = vpop.f32.mrb[0].mxu0
    %v3254 = vadd.f32 %v2773, %v3253
    %v3255 = vpop.f32.mrb[0].mxu0
    %v3256 = vadd.f32 %v2777, %v3255
    %3257 = vmatprep.mubr.bf16.mxu0 %v2683
    %3258 = vmatmul.mubr.bf16.gmra.mrb[0].mxu0 %v2682
    %v3259 = vpop.f32.mrb[0].mxu0
    %v3260 = vadd.f32 %v2773, %v3259
    %v3261 = vpop.f32.mrb[0].mxu0
    %v3262 = vadd.f32 %v2777, %v3261
    %v3263 = vpop.f32.mrb[0].mxu0
    %v3264 = vadd.f32 %v2773, %v3263
    %v3265 = vpop.f32.mrb[0].mxu0
    %v3266 = vadd.f32 %v2777, %v3265
    %3267 = vmatprep.mubr.bf16.mxu0 %v2685
    %3268 = vmatmul.mubr.bf16.gmra.mrb[0].mxu0 %v2684
    %v3269 = vpop.f32.mrb[0].mxu0
    %v3270 = vadd.f32 %v2773, %v3269
    %v3271 = vpop.f32.mrb[0].mxu0
    %v3272 = vadd.f32 %v2777, %v3271
    %v3273 = vpop.f32.mrb[0].mxu0
    %v3274 = vadd.f32 %v2773, %v3273
    %v3275 = vpop.f32.mrb[0].mxu0
    %v3276 = vadd.f32 %v2777, %v3275
    %3277 = vmatprep.mubr.bf16.mxu0 %v2687
    %3278 = vmatmul.mubr.bf16.gmra.mrb[0].mxu0 %v2686
    %v3279 = vpop.f32.mrb[0].mxu0
    %v3280 = vadd.f32 %v2773, %v3279
    %v3281 = vpop.f32.mrb[0].mxu0
    %v3282 = vadd.f32 %v2777, %v3281
    %v3283 = vpop.f32.mrb[0].mxu0
    %v3284 = vadd.f32 %v2773, %v3283
    %v3285 = vpop.f32.mrb[0].mxu0
    %v3286 = vadd.f32 %v2777, %v3285
    %3287 = vmatprep.mubr.bf16.mxu0 %v2689
    %3288 = vmatmul.mubr.bf16.gmra.mrb[0].mxu0 %v2688
    %v3289 = vpop.f32.mrb[0].mxu0
    %v3290 = vadd.f32 %v2773, %v3289
    %v3291 = vpop.f32.mrb[0].mxu0
    %v3292 = vadd.f32 %v2777, %v3291
    %v3293 = vpop.f32.mrb[0].mxu0
    %v3294 = vadd.f32 %v2773, %v3293
    %v3295 = vpop.f32.mrb[0].mxu0
    %v3296 = vadd.f32 %v2777, %v3295
    %3297 = vmatprep.mubr.bf16.mxu0 %v2691
    %3298 = vmatmul.mubr.bf16.gmra.mrb[0].mxu0 %v2690
    %v3299 = vpop.f32.mrb[0].mxu0
    %v3300 = vadd.f32 %v2773, %v3299
    %v3301 = vpop.f32.mrb[0].mxu0
    %v3302 = vadd.f32 %v2777, %v3301
    %v3303 = vpop.f32.mrb[0].mxu0
    %v3304 = vadd.f32 %v2773, %v3303
    %v3305 = vpop.f32.mrb[0].mxu0
    %v3306 = vadd.f32 %v2777, %v3305
    %3307 = vmatprep.mubr.bf16.mxu0 %v2693
    %3308 = vmatmul.mubr.bf16.gmra.mrb[0].mxu0 %v2692
    %v3309 = vpop.f32.mrb[0].mxu0
    %v3310 = vadd.f32 %v2773, %v3309
    %v3311 = vpop.f32.mrb[0].mxu0
    %v3312 = vadd.f32 %v2777, %v3311
    %v3313 = vpop.f32.mrb[0].mxu0
    %v3314 = vadd.f32 %v2773, %v3313
    %v3315 = vpop.f32.mrb[0].mxu0
    %v3316 = vadd.f32 %v2777, %v3315
    %3317 = vmatprep.mubr.bf16.mxu0 %v2695
    %3318 = vmatmul.mubr.bf16.gmra.mrb[0].mxu0 %v2694
    %v3319 = vpop.f32.mrb[0].mxu0
    %v3320 = vadd.f32 %v2773, %v3319
    %v3321 = vpop.f32.mrb[0].mxu0
    %v3322 = vadd.f32 %v2777, %v3321
    %v3323 = vpop.f32.mrb[0].mxu0
    %v3324 = vadd.f32 %v2773, %v3323
    %v3325 = vpop.f32.mrb[0].mxu0
    %v3326 = vadd.f32 %v2777, %v3325
    %3327 = vdwg.mxu0
    %v3328 = vxor.u32 %v3137, 2147483648
    %v3329 = vxor.u32 %v3139, 2147483648
    %v3330 = vxor.u32 %v3250, 2147483648
    %v3331 = vxor.u32 %v3252, 2147483648
    %v3332 = vxor.u32 %v3141, 2147483648
    %v3333 = vxor.u32 %v3143, 2147483648
    %v3334 = vxor.u32 %v3254, 2147483648
    %v3335 = vxor.u32 %v3256, 2147483648
    %v3336 = vxor.u32 %v3147, 2147483648
    %v3337 = vxor.u32 %v3149, 2147483648
    %v3338 = vxor.u32 %v3260, 2147483648
    %v3339 = vxor.u32 %v3262, 2147483648
    %v3340 = vxor.u32 %v3151, 2147483648
    %v3341 = vxor.u32 %v3153, 2147483648
    %v3342 = vxor.u32 %v3264, 2147483648
    %v3343 = vxor.u32 %v3266, 2147483648
    %v3344 = vxor.u32 %v3157, 2147483648
    %v3345 = vxor.u32 %v3159, 2147483648
    %v3346 = vxor.u32 %v3270, 2147483648
    %v3347 = vxor.u32 %v3272, 2147483648
    %v3348 = vxor.u32 %v3161, 2147483648
    %v3349 = vxor.u32 %v3163, 2147483648
    %v3350 = vxor.u32 %v3274, 2147483648
    %v3351 = vxor.u32 %v3276, 2147483648
    %v3352 = vxor.u32 %v3167, 2147483648
    %v3353 = vxor.u32 %v3169, 2147483648
    %v3354 = vxor.u32 %v3280, 2147483648
    %v3355 = vxor.u32 %v3282, 2147483648
    %v3356 = vxor.u32 %v3171, 2147483648
    %v3357 = vxor.u32 %v3173, 2147483648
    %v3358 = vxor.u32 %v3284, 2147483648
    %v3359 = vxor.u32 %v3286, 2147483648
    %v3360 = vxor.u32 %v3177, 2147483648
    %v3361 = vxor.u32 %v3179, 2147483648
    %v3362 = vxor.u32 %v3290, 2147483648
    %v3363 = vxor.u32 %v3292, 2147483648
    %v3364 = vxor.u32 %v3181, 2147483648
    %v3365 = vxor.u32 %v3183, 2147483648
    %v3366 = vxor.u32 %v3294, 2147483648
    %v3367 = vxor.u32 %v3296, 2147483648
    %v3368 = vxor.u32 %v3187, 2147483648
    %v3369 = vxor.u32 %v3189, 2147483648
    %v3370 = vxor.u32 %v3300, 2147483648
    %v3371 = vxor.u32 %v3302, 2147483648
    %v3372 = vxor.u32 %v3191, 2147483648
    %v3373 = vxor.u32 %v3193, 2147483648
    %v3374 = vxor.u32 %v3304, 2147483648
    %v3375 = vxor.u32 %v3306, 2147483648
    %v3376 = vxor.u32 %v3197, 2147483648
    %v3377 = vxor.u32 %v3199, 2147483648
    %v3378 = vxor.u32 %v3310, 2147483648
    %v3379 = vxor.u32 %v3312, 2147483648
    %v3380 = vxor.u32 %v3201, 2147483648
    %v3381 = vxor.u32 %v3203, 2147483648
    %v3382 = vxor.u32 %v3314, 2147483648
    %v3383 = vxor.u32 %v3316, 2147483648
    %v3384 = vxor.u32 %v3207, 2147483648
    %v3385 = vxor.u32 %v3209, 2147483648
    %v3386 = vxor.u32 %v3320, 2147483648
    %v3387 = vxor.u32 %v3322, 2147483648
    %v3388 = vxor.u32 %v3211, 2147483648
    %v3389 = vxor.u32 %v3213, 2147483648
    %v3390 = vxor.u32 %v3324, 2147483648
    %v3391 = vxor.u32 %v3326, 2147483648
    %v3392 = vmul.f32 %v3328, 1.442695
    %v3393 = vpow.pop %v3392
    %v3394 = vmul.f32 %v3329, 1.442695
    %v3395 = vpow.pop %v3394
    %v3396 = vmul.f32 %v3330, 1.442695
    %v3397 = vpow.pop %v3396
    %v3398 = vmul.f32 %v3331, 1.442695
    %v3399 = vpow.pop %v3398
    %v3400 = vmul.f32 %v3332, 1.442695
    %v3401 = vpow.pop %v3400
    %v3402 = vmul.f32 %v3333, 1.442695
    %v3403 = vpow.pop %v3402
    %v3404 = vmul.f32 %v3334, 1.442695
    %v3405 = vpow.pop %v3404
    %v3406 = vmul.f32 %v3335, 1.442695
    %v3407 = vpow.pop %v3406
    %v3408 = vmul.f32 %v3336, 1.442695
    %v3409 = vpow.pop %v3408
    %v3410 = vmul.f32 %v3337, 1.442695
    %v3411 = vpow.pop %v3410
    %v3412 = vmul.f32 %v3338, 1.442695
    %v3413 = vpow.pop %v3412
    %v3414 = vmul.f32 %v3339, 1.442695
    %v3415 = vpow.pop %v3414
    %v3416 = vmul.f32 %v3340, 1.442695
    %v3417 = vpow.pop %v3416
    %v3418 = vmul.f32 %v3341, 1.442695
    %v3419 = vpow.pop %v3418
    %v3420 = vmul.f32 %v3342, 1.442695
    %v3421 = vpow.pop %v3420
    %v3422 = vmul.f32 %v3343, 1.442695
    %v3423 = vpow.pop %v3422
    %v3424 = vmul.f32 %v3344, 1.442695
    %v3425 = vpow.pop %v3424
    %v3426 = vmul.f32 %v3345, 1.442695
    %v3427 = vpow.pop %v3426
    %v3428 = vmul.f32 %v3346, 1.442695
    %v3429 = vpow.pop %v3428
    %v3430 = vmul.f32 %v3347, 1.442695
    %v3431 = vpow.pop %v3430
    %v3432 = vmul.f32 %v3348, 1.442695
    %v3433 = vpow.pop %v3432
    %v3434 = vmul.f32 %v3349, 1.442695
    %v3435 = vpow.pop %v3434
    %v3436 = vmul.f32 %v3350, 1.442695
    %v3437 = vpow.pop %v3436
    %v3438 = vmul.f32 %v3351, 1.442695
    %v3439 = vpow.pop %v3438
    %v3440 = vmul.f32 %v3352, 1.442695
    %v3441 = vpow.pop %v3440
    %v3442 = vmul.f32 %v3353, 1.442695
    %v3443 = vpow.pop %v3442
    %v3444 = vmul.f32 %v3354, 1.442695
    %v3445 = vpow.pop %v3444
    %v3446 = vmul.f32 %v3355, 1.442695
    %v3447 = vpow.pop %v3446
    %v3448 = vmul.f32 %v3356, 1.442695
    %v3449 = vpow.pop %v3448
    %v3450 = vmul.f32 %v3357, 1.442695
    %v3451 = vpow.pop %v3450
    %v3452 = vmul.f32 %v3358, 1.442695
    %v3453 = vpow.pop %v3452
    %v3454 = vmul.f32 %v3359, 1.442695
    %v3455 = vpow.pop %v3454
    %v3456 = vmul.f32 %v3360, 1.442695
    %v3457 = vpow.pop %v3456
    %v3458 = vmul.f32 %v3361, 1.442695
    %v3459 = vpow.pop %v3458
    %v3460 = vmul.f32 %v3362, 1.442695
    %v3461 = vpow.pop %v3460
    %v3462 = vmul.f32 %v3363, 1.442695
    %v3463 = vpow.pop %v3462
    %v3464 = vmul.f32 %v3364, 1.442695
    %v3465 = vpow.pop %v3464
    %v3466 = vmul.f32 %v3365, 1.442695
    %v3467 = vpow.pop %v3466
    %v3468 = vmul.f32 %v3366, 1.442695
    %v3469 = vpow.pop %v3468
    %v3470 = vmul.f32 %v3367, 1.442695
    %v3471 = vpow.pop %v3470
    %v3472 = vmul.f32 %v3368, 1.442695
    %v3473 = vpow.pop %v3472
    %v3474 = vmul.f32 %v3369, 1.442695
    %v3475 = vpow.pop %v3474
    %v3476 = vmul.f32 %v3370, 1.442695
    %v3477 = vpow.pop %v3476
    %v3478 = vmul.f32 %v3371, 1.442695
    %v3479 = vpow.pop %v3478
    %v3480 = vmul.f32 %v3372, 1.442695
    %v3481 = vpow.pop %v3480
    %v3482 = vmul.f32 %v3373, 1.442695
    %v3483 = vpow.pop %v3482
    %v3484 = vmul.f32 %v3374, 1.442695
    %v3485 = vpow.pop %v3484
    %v3486 = vmul.f32 %v3375, 1.442695
    %v3487 = vpow.pop %v3486
    %v3488 = vmul.f32 %v3376, 1.442695
    %v3489 = vpow.pop %v3488
    %v3490 = vmul.f32 %v3377, 1.442695
    %v3491 = vpow.pop %v3490
    %v3492 = vmul.f32 %v3378, 1.442695
    %v3493 = vpow.pop %v3492
    %v3494 = vmul.f32 %v3379, 1.442695
    %v3495 = vpow.pop %v3494
    %v3496 = vmul.f32 %v3380, 1.442695
    %v3497 = vpow.pop %v3496
    %v3498 = vmul.f32 %v3381, 1.442695
    %v3499 = vpow.pop %v3498
    %v3500 = vmul.f32 %v3382, 1.442695
    %v3501 = vpow.pop %v3500
    %v3502 = vmul.f32 %v3383, 1.442695
    %v3503 = vpow.pop %v3502
    %v3504 = vmul.f32 %v3384, 1.442695
    %v3505 = vpow.pop %v3504
    %v3506 = vmul.f32 %v3385, 1.442695
    %v3507 = vpow.pop %v3506
    %v3508 = vmul.f32 %v3386, 1.442695
    %v3509 = vpow.pop %v3508
    %v3510 = vmul.f32 %v3387, 1.442695
    %v3511 = vpow.pop %v3510
    %v3512 = vmul.f32 %v3388, 1.442695
    %v3513 = vpow.pop %v3512
    %v3514 = vmul.f32 %v3389, 1.442695
    %v3515 = vpow.pop %v3514
    %v3516 = vmul.f32 %v3390, 1.442695
    %v3517 = vpow.pop %v3516
    %v3518 = vmul.f32 %v3391, 1.442695
    %v3519 = vpow.pop %v3518
    %v3520 = vadd.f32 %v3393, 1.0
    %v3521 = vadd.f32 %v3395, 1.0
    %v3522 = vadd.f32 %v3397, 1.0
    %v3523 = vadd.f32 %v3399, 1.0
    %v3524 = vadd.f32 %v3401, 1.0
    %v3525 = vadd.f32 %v3403, 1.0
    %v3526 = vadd.f32 %v3405, 1.0
    %v3527 = vadd.f32 %v3407, 1.0
    %v3528 = vadd.f32 %v3409, 1.0
    %v3529 = vadd.f32 %v3411, 1.0
    %v3530 = vadd.f32 %v3413, 1.0
    %v3531 = vadd.f32 %v3415, 1.0
    %v3532 = vadd.f32 %v3417, 1.0
    %v3533 = vadd.f32 %v3419, 1.0
    %v3534 = vadd.f32 %v3421, 1.0
    %v3535 = vadd.f32 %v3423, 1.0
    %v3536 = vadd.f32 %v3425, 1.0
    %v3537 = vadd.f32 %v3427, 1.0
    %v3538 = vadd.f32 %v3429, 1.0
    %v3539 = vadd.f32 %v3431, 1.0
    %v3540 = vadd.f32 %v3433, 1.0
    %v3541 = vadd.f32 %v3435, 1.0
    %v3542 = vadd.f32 %v3437, 1.0
    %v3543 = vadd.f32 %v3439, 1.0
    %v3544 = vadd.f32 %v3441, 1.0
    %v3545 = vadd.f32 %v3443, 1.0
    %v3546 = vadd.f32 %v3445, 1.0
    %v3547 = vadd.f32 %v3447, 1.0
    %v3548 = vadd.f32 %v3449, 1.0
    %v3549 = vadd.f32 %v3451, 1.0
    %v3550 = vadd.f32 %v3453, 1.0
    %v3551 = vadd.f32 %v3455, 1.0
    %v3552 = vadd.f32 %v3457, 1.0
    %v3553 = vadd.f32 %v3459, 1.0
    %v3554 = vadd.f32 %v3461, 1.0
    %v3555 = vadd.f32 %v3463, 1.0
    %v3556 = vadd.f32 %v3465, 1.0
    %v3557 = vadd.f32 %v3467, 1.0
    %v3558 = vadd.f32 %v3469, 1.0
    %v3559 = vadd.f32 %v3471, 1.0
    %v3560 = vadd.f32 %v3473, 1.0
    %v3561 = vadd.f32 %v3475, 1.0
    %v3562 = vadd.f32 %v3477, 1.0
    %v3563 = vadd.f32 %v3479, 1.0
    %v3564 = vadd.f32 %v3481, 1.0
    %v3565 = vadd.f32 %v3483, 1.0
    %v3566 = vadd.f32 %v3485, 1.0
    %v3567 = vadd.f32 %v3487, 1.0
    %v3568 = vadd.f32 %v3489, 1.0
    %v3569 = vadd.f32 %v3491, 1.0
    %v3570 = vadd.f32 %v3493, 1.0
    %v3571 = vadd.f32 %v3495, 1.0
    %v3572 = vadd.f32 %v3497, 1.0
    %v3573 = vadd.f32 %v3499, 1.0
    %v3574 = vadd.f32 %v3501, 1.0
    %v3575 = vadd.f32 %v3503, 1.0
    %v3576 = vadd.f32 %v3505, 1.0
    %v3577 = vadd.f32 %v3507, 1.0
    %v3578 = vadd.f32 %v3509, 1.0
    %v3579 = vadd.f32 %v3511, 1.0
    %v3580 = vadd.f32 %v3513, 1.0
    %v3581 = vadd.f32 %v3515, 1.0
    %v3582 = vadd.f32 %v3517, 1.0
    %v3583 = vadd.f32 %v3519, 1.0
    %v3584 = vrcp.pop %v3520
    %v3585 = vmul.f32 1.0, %v3584
    %v3586 = vrcp.pop %v3521
    %v3587 = vmul.f32 1.0, %v3586
    %v3588 = vrcp.pop %v3522
    %v3589 = vmul.f32 1.0, %v3588
    %v3590 = vrcp.pop %v3523
    %v3591 = vmul.f32 1.0, %v3590
    %v3592 = vrcp.pop %v3524
    %v3593 = vmul.f32 1.0, %v3592
    %v3594 = vrcp.pop %v3525
    %v3595 = vmul.f32 1.0, %v3594
    %v3596 = vrcp.pop %v3526
    %v3597 = vmul.f32 1.0, %v3596
    %v3598 = vrcp.pop %v3527
    %v3599 = vmul.f32 1.0, %v3598
    %v3600 = vrcp.pop %v3528
    %v3601 = vmul.f32 1.0, %v3600
    %v3602 = vrcp.pop %v3529
    %v3603 = vmul.f32 1.0, %v3602
    %v3604 = vrcp.pop %v3530
    %v3605 = vmul.f32 1.0, %v3604
    %v3606 = vrcp.pop %v3531
    %v3607 = vmul.f32 1.0, %v3606
    %v3608 = vrcp.pop %v3532
    %v3609 = vmul.f32 1.0, %v3608
    %v3610 = vrcp.pop %v3533
    %v3611 = vmul.f32 1.0, %v3610
    %v3612 = vrcp.pop %v3534
    %v3613 = vmul.f32 1.0, %v3612
    %v3614 = vrcp.pop %v3535
    %v3615 = vmul.f32 1.0, %v3614
    %v3616 = vrcp.pop %v3536
    %v3617 = vmul.f32 1.0, %v3616
    %v3618 = vrcp.pop %v3537
    %v3619 = vmul.f32 1.0, %v3618
    %v3620 = vrcp.pop %v3538
    %v3621 = vmul.f32 1.0, %v3620
    %v3622 = vrcp.pop %v3539
    %v3623 = vmul.f32 1.0, %v3622
    %v3624 = vrcp.pop %v3540
    %v3625 = vmul.f32 1.0, %v3624
    %v3626 = vrcp.pop %v3541
    %v3627 = vmul.f32 1.0, %v3626
    %v3628 = vrcp.pop %v3542
    %v3629 = vmul.f32 1.0, %v3628
    %v3630 = vrcp.pop %v3543
    %v3631 = vmul.f32 1.0, %v3630
    %v3632 = vrcp.pop %v3544
    %v3633 = vmul.f32 1.0, %v3632
    %v3634 = vrcp.pop %v3545
    %v3635 = vmul.f32 1.0, %v3634
    %v3636 = vrcp.pop %v3546
    %v3637 = vmul.f32 1.0, %v3636
    %v3638 = vrcp.pop %v3547
    %v3639 = vmul.f32 1.0, %v3638
    %v3640 = vrcp.pop %v3548
    %v3641 = vmul.f32 1.0, %v3640
    %v3642 = vrcp.pop %v3549
    %v3643 = vmul.f32 1.0, %v3642
    %v3644 = vrcp.pop %v3550
    %v3645 = vmul.f32 1.0, %v3644
    %v3646 = vrcp.pop %v3551
    %v3647 = vmul.f32 1.0, %v3646
    %v3648 = vrcp.pop %v3552
    %v3649 = vmul.f32 1.0, %v3648
    %v3650 = vrcp.pop %v3553
    %v3651 = vmul.f32 1.0, %v3650
    %v3652 = vrcp.pop %v3554
    %v3653 = vmul.f32 1.0, %v3652
    %v3654 = vrcp.pop %v3555
    %v3655 = vmul.f32 1.0, %v3654
    %v3656 = vrcp.pop %v3556
    %v3657 = vmul.f32 1.0, %v3656
    %v3658 = vrcp.pop %v3557
    %v3659 = vmul.f32 1.0, %v3658
    %v3660 = vrcp.pop %v3558
    %v3661 = vmul.f32 1.0, %v3660
    %v3662 = vrcp.pop %v3559
    %v3663 = vmul.f32 1.0, %v3662
    %v3664 = vrcp.pop %v3560
    %v3665 = vmul.f32 1.0, %v3664
    %v3666 = vrcp.pop %v3561
    %v3667 = vmul.f32 1.0, %v3666
    %v3668 = vrcp.pop %v3562
    %v3669 = vmul.f32 1.0, %v3668
    %v3670 = vrcp.pop %v3563
    %v3671 = vmul.f32 1.0, %v3670
    %v3672 = vrcp.pop %v3564
    %v3673 = vmul.f32 1.0, %v3672
    %v3674 = vrcp.pop %v3565
    %v3675 = vmul.f32 1.0, %v3674
    %v3676 = vrcp.pop %v3566
    %v3677 = vmul.f32 1.0, %v3676
    %v3678 = vrcp.pop %v3567
    %v3679 = vmul.f32 1.0, %v3678
    %v3680 = vrcp.pop %v3568
    %v3681 = vmul.f32 1.0, %v3680
    %v3682 = vrcp.pop %v3569
    %v3683 = vmul.f32 1.0, %v3682
    %v3684 = vrcp.pop %v3570
    %v3685 = vmul.f32 1.0, %v3684
    %v3686 = vrcp.pop %v3571
    %v3687 = vmul.f32 1.0, %v3686
    %v3688 = vrcp.pop %v3572
    %v3689 = vmul.f32 1.0, %v3688
    %v3690 = vrcp.pop %v3573
    %v3691 = vmul.f32 1.0, %v3690
    %v3692 = vrcp.pop %v3574
    %v3693 = vmul.f32 1.0, %v3692
    %v3694 = vrcp.pop %v3575
    %v3695 = vmul.f32 1.0, %v3694
    %v3696 = vrcp.pop %v3576
    %v3697 = vmul.f32 1.0, %v3696
    %v3698 = vrcp.pop %v3577
    %v3699 = vmul.f32 1.0, %v3698
    %v3700 = vrcp.pop %v3578
    %v3701 = vmul.f32 1.0, %v3700
    %v3702 = vrcp.pop %v3579
    %v3703 = vmul.f32 1.0, %v3702
    %v3704 = vrcp.pop %v3580
    %v3705 = vmul.f32 1.0, %v3704
    %v3706 = vrcp.pop %v3581
    %v3707 = vmul.f32 1.0, %v3706
    %v3708 = vrcp.pop %v3582
    %v3709 = vmul.f32 1.0, %v3708
    %v3710 = vrcp.pop %v3583
    %v3711 = vmul.f32 1.0, %v3710
    %3712 = vst [vmem:[#allocation10] sm:$0xff] %v3585
    %3713 = vst [vmem:[#allocation10 + $0x8] sm:$0xff] %v3587
    %3714 = vst [vmem:[#allocation10 + $0x10] sm:$0xff] %v3589
    %3715 = vst [vmem:[#allocation10 + $0x18] sm:$0xff] %v3591
    %3716 = vst [vmem:[#allocation10 + $0x20] sm:$0xff] %v3593
    %3717 = vst [vmem:[#allocation10 + $0x28] sm:$0xff] %v3595
    %3718 = vst [vmem:[#allocation10 + $0x30] sm:$0xff] %v3597
    %3719 = vst [vmem:[#allocation10 + $0x38] sm:$0xff] %v3599
    %3720 = vst [vmem:[#allocation10 + $0x40] sm:$0xff] %v3601
    %3721 = vst [vmem:[#allocation10 + $0x48] sm:$0xff] %v3603
    %3722 = vst [vmem:[#allocation10 + $0x50] sm:$0xff] %v3605
    %3723 = vst [vmem:[#allocation10 + $0x58] sm:$0xff] %v3607
    %3724 = vst [vmem:[#allocation10 + $0x60] sm:$0xff] %v3609
    %3725 = vst [vmem:[#allocation10 + $0x68] sm:$0xff] %v3611
    %3726 = vst [vmem:[#allocation10 + $0x70] sm:$0xff] %v3613
    %3727 = vst [vmem:[#allocation10 + $0x78] sm:$0xff] %v3615
    %3728 = vst [vmem:[#allocation10 + $0x80] sm:$0xff] %v3617
    %3729 = vst [vmem:[#allocation10 + $0x88] sm:$0xff] %v3619
    %3730 = vst [vmem:[#allocation10 + $0x90] sm:$0xff] %v3621
    %3731 = vst [vmem:[#allocation10 + $0x98] sm:$0xff] %v3623
    %3732 = vst [vmem:[#allocation10 + $0xa0] sm:$0xff] %v3625
    %3733 = vst [vmem:[#allocation10 + $0xa8] sm:$0xff] %v3627
    %3734 = vst [vmem:[#allocation10 + $0xb0] sm:$0xff] %v3629
    %3735 = vst [vmem:[#allocation10 + $0xb8] sm:$0xff] %v3631
    %3736 = vst [vmem:[#allocation10 + $0xc0] sm:$0xff] %v3633
    %3737 = vst [vmem:[#allocation10 + $0xc8] sm:$0xff] %v3635
    %3738 = vst [vmem:[#allocation10 + $0xd0] sm:$0xff] %v3637
    %3739 = vst [vmem:[#allocation10 + $0xd8] sm:$0xff] %v3639
    %3740 = vst [vmem:[#allocation10 + $0xe0] sm:$0xff] %v3641
    %3741 = vst [vmem:[#allocation10 + $0xe8] sm:$0xff] %v3643
    %3742 = vst [vmem:[#allocation10 + $0xf0] sm:$0xff] %v3645
    %3743 = vst [vmem:[#allocation10 + $0xf8] sm:$0xff] %v3647
    %3744 = vst [vmem:[#allocation10 + $0x100] sm:$0xff] %v3649
    %3745 = vst [vmem:[#allocation10 + $0x108] sm:$0xff] %v3651
    %3746 = vst [vmem:[#allocation10 + $0x110] sm:$0xff] %v3653
    %3747 = vst [vmem:[#allocation10 + $0x118] sm:$0xff] %v3655
    %3748 = vst [vmem:[#allocation10 + $0x120] sm:$0xff] %v3657
    %3749 = vst [vmem:[#allocation10 + $0x128] sm:$0xff] %v3659
    %3750 = vst [vmem:[#allocation10 + $0x130] sm:$0xff] %v3661
    %3751 = vst [vmem:[#allocation10 + $0x138] sm:$0xff] %v3663
    %3752 = vst [vmem:[#allocation10 + $0x140] sm:$0xff] %v3665
    %3753 = vst [vmem:[#allocation10 + $0x148] sm:$0xff] %v3667
    %3754 = vst [vmem:[#allocation10 + $0x150] sm:$0xff] %v3669
    %3755 = vst [vmem:[#allocation10 + $0x158] sm:$0xff] %v3671
    %3756 = vst [vmem:[#allocation10 + $0x160] sm:$0xff] %v3673
    %3757 = vst [vmem:[#allocation10 + $0x168] sm:$0xff] %v3675
    %3758 = vst [vmem:[#allocation10 + $0x170] sm:$0xff] %v3677
    %3759 = vst [vmem:[#allocation10 + $0x178] sm:$0xff] %v3679
    %3760 = vst [vmem:[#allocation10 + $0x180] sm:$0xff] %v3681
    %3761 = vst [vmem:[#allocation10 + $0x188] sm:$0xff] %v3683
    %3762 = vst [vmem:[#allocation10 + $0x190] sm:$0xff] %v3685
    %3763 = vst [vmem:[#allocation10 + $0x198] sm:$0xff] %v3687
    %3764 = vst [vmem:[#allocation10 + $0x1a0] sm:$0xff] %v3689
    %3765 = vst [vmem:[#allocation10 + $0x1a8] sm:$0xff] %v3691
    %3766 = vst [vmem:[#allocation10 + $0x1b0] sm:$0xff] %v3693
    %3767 = vst [vmem:[#allocation10 + $0x1b8] sm:$0xff] %v3695
    %3768 = vst [vmem:[#allocation10 + $0x1c0] sm:$0xff] %v3697
    %3769 = vst [vmem:[#allocation10 + $0x1c8] sm:$0xff] %v3699
    %3770 = vst [vmem:[#allocation10 + $0x1d0] sm:$0xff] %v3701
    %3771 = vst [vmem:[#allocation10 + $0x1d8] sm:$0xff] %v3703
    %3772 = vst [vmem:[#allocation10 + $0x1e0] sm:$0xff] %v3705
    %3773 = vst [vmem:[#allocation10 + $0x1e8] sm:$0xff] %v3707
    %3774 = vst [vmem:[#allocation10 + $0x1f0] sm:$0xff] %v3709
    %3775 = vst [vmem:[#allocation10 + $0x1f8] sm:$0xff] %v3711
    %3776 = vst [vmem:[%s15] sm:$0xff] %v1618
    %3777 = vst [vmem:[%s15 + $0x8] sm:$0xff] %v1621
    %3778 = vst [vmem:[%s15 + $0x10] sm:$0xff] %v1626
    %3779 = vst [vmem:[%s15 + $0x18] sm:$0xff] %v1629
    %3780 = vst [vmem:[%s15 + $0x20] sm:$0xff] %v1634
    %3781 = vst [vmem:[%s15 + $0x28] sm:$0xff] %v1637
    %3782 = vst [vmem:[%s15 + $0x30] sm:$0xff] %v1642
    %3783 = vst [vmem:[%s15 + $0x38] sm:$0xff] %v1645
    %3784 = vst [vmem:[%s15 + $0x40] sm:$0xff] %v1650
    %3785 = vst [vmem:[%s15 + $0x48] sm:$0xff] %v1653
    %3786 = vst [vmem:[%s15 + $0x50] sm:$0xff] %v1658
    %3787 = vst [vmem:[%s15 + $0x58] sm:$0xff] %v1661
    %3788 = vst [vmem:[%s15 + $0x60] sm:$0xff] %v1666
    %3789 = vst [vmem:[%s15 + $0x68] sm:$0xff] %v1669
    %3790 = vst [vmem:[%s15 + $0x70] sm:$0xff] %v1674
    %3791 = vst [vmem:[%s15 + $0x78] sm:$0xff] %v1677
    // Predicated region
    $region74: #{vae_forward.1} parent=1 // pred_check
      _
    $region75: #{vae_forward.1} parent=1 // pred_check_branch
      %3793 = sbr.rel (0) target = $region77
    $region76: #{vae_forward.1} parent=1 // pred_region
      %s3795 = ssub.s32 8192, 8192
      %3796 = vsyncadd [#allocation4], %s3795
      %s3797 = sshll.u32 [#allocation10], 4
      %s3798 = int_to_ptr.vmem [resolvable:$true] %s3797
      %3803 = dma.vmem_to_hbm [thread:$0]  %s3798, 8192, %s14, [#allocation4], 512, 512, 32
    $region77: #{vae_forward.1} parent=1 // pred_fallthru
      _
    // Predicated region
    $region78: #{vae_forward.1} parent=1 // pred_check
      _
    $region79: #{vae_forward.1} parent=1 // pred_check_branch
      %3805 = sbr.rel (0) target = $region81
    $region80: #{vae_forward.1} parent=1 // pred_region
      _
    $region81: #{vae_forward.1} parent=1 // pred_fallthru
      _
    // Predicated region
    $region82: #{vae_forward.1} parent=1 // pred_check
      _
    $region83: #{vae_forward.1} parent=1 // pred_check_branch
      %3807 = sbr.rel (0) target = $region85
    $region84: #{vae_forward.1} parent=1 // pred_region
      %3808 = dma.done [#allocation4], 8192
    $region85: #{vae_forward.1} parent=1 // pred_fallthru
      _
    // Predicated region
    $region86: #{vae_forward.1} parent=1 // pred_check
      _
    $region87: #{vae_forward.1} parent=1 // pred_check_branch
      %3810 = sbr.rel (0) target = $region89
    $region88: #{vae_forward.1} parent=1 // pred_region
      _
    $region89: #{vae_forward.1} parent=1 // pred_fallthru
      _
    %3811 = vsyncpa [#allocation3], 1
    %3812 = vsyncpa [#allocation6], 1
    %3813 = vsyncpa [#allocation9], 1
    %3814 = vsyncpa [#allocation4], 1

</llo_original>
